<compile_context>
chip_gen: v5e
topology: v5e:2x2
jax: 0.10.0
libtpu: 0.0.40
codegen_flags: <defaults>
</compile_context>

<pallas_src>
import functools

import jax
import jax.numpy as jnp
from jax.experimental import pallas as pl
from jax.experimental.pallas import tpu as pltpu

VMEM = pltpu.MemorySpace.VMEM

# MXU operand dtype: bf16 inputs + f32 accumulation (set to jnp.float32 for
# bit-closer numerics; perf review asks for bf16 on v6e/v7x).
MM_DTYPE = jnp.bfloat16
LN_EPS = 1e-12


def _mm(a, b):
    """a @ b with bf16 MXU operands and f32 accumulation."""
    return jnp.dot(a.astype(MM_DTYPE), b.astype(MM_DTYPE),
                   preferred_element_type=jnp.float32)


def _mm_nt(a, b):
    """a @ b.T (contract last dims) without materializing a transpose."""
    return jax.lax.dot_general(
        a.astype(MM_DTYPE), b.astype(MM_DTYPE),
        dimension_numbers=(((1,), (1,)), ((), ())),
        preferred_element_type=jnp.float32)


def _layernorm(x, g, b):
    mu = jnp.mean(x, axis=-1, keepdims=True)
    var = jnp.mean((x - mu) ** 2, axis=-1, keepdims=True)
    return (x - mu) * jax.lax.rsqrt(var + LN_EPS) * g + b


# --------------------------------------------------------------------------
# embedding LayerNorm (no residual), grid over batch ("parallel" for megacore)
# --------------------------------------------------------------------------
def _emb_ln_kernel(x_ref, g_ref, b_ref, o_ref):
    o_ref[...] = _layernorm(x_ref[...], g_ref[...], b_ref[...])


def embedding_layernorm(x, gamma, beta, *, batch, seq):
    n, h = x.shape
    return pl.pallas_call(
        _emb_ln_kernel,
        out_shape=jax.ShapeDtypeStruct((n, h), jnp.float32),
        grid=(batch,),
        in_specs=[
            pl.BlockSpec((seq, h), lambda b: (b, 0)),
            pl.BlockSpec((1, h), lambda b: (0, 0)),
            pl.BlockSpec((1, h), lambda b: (0, 0)),
        ],
        out_specs=pl.BlockSpec((seq, h), lambda b: (b, 0)),
        compiler_params=pltpu.CompilerParams(
            dimension_semantics=("parallel",)),
    )(x, gamma.reshape(1, -1), beta.reshape(1, -1))


# --------------------------------------------------------------------------
# fused encoder layer: QKV matmul + MHA + out-proj + add-LN + FFN + add-LN
# grid over batch; emits only the head-mean CLS attention row (B, 1, S)
# --------------------------------------------------------------------------
def _encoder_layer_kernel(x_ref, mask_ref,
                          wqkv_ref, bqkv_ref, wo_ref, bo_ref,
                          ln1g_ref, ln1b_ref,
                          w1_ref, b1_ref, w2_ref, b2_ref,
                          ln2g_ref, ln2b_ref,
                          o_ref, cls_ref, *, n_heads, scale):
    x = x_ref[...]                              # (S, H) f32
    seq, hidden = x.shape
    dh = hidden // n_heads
    mask = mask_ref[0]                          # (1, S) additive mask

    # fused Q/K/V projection: (S, 3H) — one MXU launch, lane-dense output
    qkv = _mm(x, wqkv_ref[...]) + bqkv_ref[...]

    attn_out = jnp.zeros((seq, hidden), jnp.float32)
    cls_acc = jnp.zeros((1, seq), jnp.float32)
    for h in range(n_heads):                    # unrolled static head loop
        qh = qkv[:, h * dh:(h + 1) * dh]
        kh = qkv[:, hidden + h * dh:hidden + (h + 1) * dh]
        vh = qkv[:, 2 * hidden + h * dh:2 * hidden + (h + 1) * dh]
        s = _mm_nt(qh, kh) * scale + mask       # (S, S)
        mx = jnp.max(s, axis=-1, keepdims=True)
        e = jnp.exp(s - mx)
        p = e * pl.reciprocal(jnp.sum(e, axis=-1, keepdims=True), approx=True)
        cls_acc = cls_acc + p[0:1, :]           # CLS query row of this head
        ctx_h = _mm(p, vh)                      # (S, Dh)
        # output projection folded per head: ctx @ Wo == sum_h ctx_h @ Wo[h]
        attn_out = attn_out + _mm(ctx_h, wo_ref[h * dh:(h + 1) * dh, :])

    cls_ref[0] = cls_acc * (1.0 / n_heads)      # head-mean CLS attention
    attn_out = attn_out + bo_ref[...]

    h1 = _layernorm(attn_out + x, ln1g_ref[...], ln1b_ref[...])

    # TODO(synk): HF BERT "gelu" is erf-based; tanh approximation used for
    # guaranteed Mosaic lowering (max abs diff ~1e-3).
    f = jax.nn.gelu(_mm(h1, w1_ref[...]) + b1_ref[...], approximate=True)
    f = _mm(f, w2_ref[...]) + b2_ref[...]
    o_ref[...] = _layernorm(f + h1, ln2g_ref[...], ln2b_ref[...])


def encoder_layer(x, ext_mask, L, *, batch, seq, n_heads):
    n, hidden = x.shape
    ffn = L["w1"].shape[1]
    scale = 1.0 / float(hidden // n_heads) ** 0.5

    def rep(shape):  # whole-array block, constant index (fetched once)
        nd = len(shape)
        return pl.BlockSpec(shape, lambda b, _nd=nd: (0,) * _nd)

    out, cls = pl.pallas_call(
        functools.partial(_encoder_layer_kernel, n_heads=n_heads, scale=scale),
        out_shape=(jax.ShapeDtypeStruct((n, hidden), jnp.float32),
                   jax.ShapeDtypeStruct((batch, 1, seq), jnp.float32)),
        grid=(batch,),
        in_specs=[
            pl.BlockSpec((seq, hidden), lambda b: (b, 0)),     # x
            pl.BlockSpec((1, 1, seq), lambda b: (b, 0, 0)),    # additive mask
            rep((hidden, 3 * hidden)), rep((1, 3 * hidden)),   # W_qkv, b_qkv
            rep((hidden, hidden)), rep((1, hidden)),           # W_o, b_o
            rep((1, hidden)), rep((1, hidden)),                # ln1 g, b
            rep((hidden, ffn)), rep((1, ffn)),                 # W1, b1
            rep((ffn, hidden)), rep((1, hidden)),              # W2, b2
            rep((1, hidden)), rep((1, hidden)),                # ln2 g, b
        ],
        out_specs=(pl.BlockSpec((seq, hidden), lambda b: (b, 0)),
                   pl.BlockSpec((1, 1, seq), lambda b: (b, 0, 0))),
        compiler_params=pltpu.CompilerParams(
            dimension_semantics=("parallel",)),
    )(x, ext_mask,
      L["wqkv"], L["bqkv"].reshape(1, -1),
      L["wo"], L["bo"].reshape(1, -1),
      L["ln1_g"].reshape(1, -1), L["ln1_b"].reshape(1, -1),
      L["w1"], L["b1"].reshape(1, -1),
      L["w2"], L["b2"].reshape(1, -1),
      L["ln2_g"].reshape(1, -1), L["ln2_b"].reshape(1, -1))
    return out, cls[:, 0, :]                                   # (B*S,H), (B,S)


# --------------------------------------------------------------------------
# classifier only (labels is None path)
# --------------------------------------------------------------------------
def _classifier_kernel(x_ref, w_ref, b_ref, o_ref):
    o_ref[...] = _mm(x_ref[...], w_ref[...]) + b_ref[...]


def classifier(x, w, b):
    n = x.shape[0]
    c = w.shape[1]
    return pl.pallas_call(
        _classifier_kernel,
        out_shape=jax.ShapeDtypeStruct((n, c), jnp.float32),
        in_specs=[pl.BlockSpec(memory_space=VMEM)] * 3,
        out_specs=pl.BlockSpec(memory_space=VMEM),
    )(x, w, b.reshape(1, -1))


# --------------------------------------------------------------------------
# fused classifier + cross-entropy (ignore_index=-100) + KL attention loss
# logits stay in VMEM between the matmul and the loss reductions
# --------------------------------------------------------------------------
def _classifier_loss_kernel(x_ref, w_ref, b_ref, labels_col_ref, labels_bs_ref,
                            cls_attn_ref, logits_ref, loss_ref, lcls_ref,
                            lattn_ref, *, alpha):
    logits = _mm(x_ref[...], w_ref[...]) + b_ref[...]          # (N, C)
    logits_ref[...] = logits

    # ---- cross-entropy with ignore_index=-100, mean over valid tokens ----
    labels = labels_col_ref[...]                               # (N, 1) int32
    mx = jnp.max(logits, axis=-1, keepdims=True)
    lse = jnp.log(jnp.sum(jnp.exp(logits - mx), axis=-1, keepdims=True)) + mx
    logp = logits - lse
    cls_ids = jax.lax.broadcasted_iota(jnp.int32, logits.shape, 1)
    onehot = (cls_ids == labels).astype(jnp.float32)
    picked = jnp.sum(onehot * logp, axis=-1, keepdims=True)    # (N, 1)
    valid = (labels != -100).astype(jnp.float32)               # (N, 1)
    loss_sum = jnp.sum(-picked * valid, axis=0, keepdims=True)  # (1, 1)
    cnt = jnp.sum(valid, axis=0, keepdims=True)                 # (1, 1)
    # NOTE: no guard on cnt==0 — matches PyTorch (nan when all labels ignored)
    loss_cls = loss_sum / cnt

    # ---- KL-div attention loss (batchmean) on head-mean CLS attention ----
    a = cls_attn_ref[...]                                      # (B, S)
    lab = labels_bs_ref[...]                                   # (B, S) int32
    tgt = jnp.logical_or(lab == 1, lab == 2).astype(jnp.float32)
    p = a / (jnp.sum(a, axis=-1, keepdims=True) + 1e-8)
    t = tgt / (jnp.sum(tgt, axis=-1, keepdims=True) + 1e-8)
    log_p = jnp.log(p)
    safe_t = jnp.where(t > 0, t, 1.0)
    # torch.kl_div convention: contribution is 0 where target == 0
    elem = jnp.where(t > 0, t * (jnp.log(safe_t) - log_p), 0.0)
    row_sum = jnp.sum(elem, axis=-1, keepdims=True)            # (B, 1)
    loss_attn = jnp.sum(row_sum, axis=0, keepdims=True) / a.shape[0]

    loss_ref[...] = loss_cls + alpha * loss_attn
    lcls_ref[...] = loss_cls
    lattn_ref[...] = loss_attn


def classifier_with_losses(x, w, b, labels, cls_attn_mean, *, alpha):
    n = x.shape[0]
    c = w.shape[1]
    logits, loss, lcls, lattn = pl.pallas_call(
        functools.partial(_classifier_loss_kernel, alpha=alpha),
        out_shape=(jax.ShapeDtypeStruct((n, c), jnp.float32),
                   jax.ShapeDtypeStruct((1, 1), jnp.float32),
                   jax.ShapeDtypeStruct((1, 1), jnp.float32),
                   jax.ShapeDtypeStruct((1, 1), jnp.float32)),
        in_specs=[pl.BlockSpec(memory_space=VMEM)] * 6,
        out_specs=(pl.BlockSpec(memory_space=VMEM),) * 4,
    )(x, w, b.reshape(1, -1),
      labels.reshape(n, 1).astype(jnp.int32),
      labels.astype(jnp.int32),
      cls_attn_mean)
    return logits, loss[0, 0], lcls[0, 0], lattn[0, 0]


# --------------------------------------------------------------------------
# parameter initialization (synthetic, deterministic); QKV weights pre-fused
# --------------------------------------------------------------------------
def init_params(key, *, vocab, hidden, n_layers, ffn, max_pos, n_labels):
    def nrm(k, shape):
        return jax.random.normal(k, shape, jnp.float32) * 0.02

    keys = iter(jax.random.split(key, 8 + 6 * n_layers))
    params = dict(
        word_emb=nrm(next(keys), (vocab, hidden)),
        pos_emb=nrm(next(keys), (max_pos, hidden)),
        type_emb=nrm(next(keys), (2, hidden)),
        emb_ln_g=jnp.ones((hidden,), jnp.float32),
        emb_ln_b=jnp.zeros((hidden,), jnp.float32),
        cls_w=nrm(next(keys), (hidden, n_labels)),
        cls_b=jnp.zeros((n_labels,), jnp.float32),
        layers=[],
    )
    for _ in range(n_layers):
        params["layers"].append(dict(
            wqkv=nrm(next(keys), (hidden, 3 * hidden)),       # [Wq | Wk | Wv]
            bqkv=jnp.zeros((3 * hidden,), jnp.float32),
            wo=nrm(next(keys), (hidden, hidden)),
            bo=jnp.zeros((hidden,), jnp.float32),
            ln1_g=jnp.ones((hidden,), jnp.float32),
            ln1_b=jnp.zeros((hidden,), jnp.float32),
            w1=nrm(next(keys), (hidden, ffn)),
            b1=jnp.zeros((ffn,), jnp.float32),
            w2=nrm(next(keys), (ffn, hidden)),
            b2=jnp.zeros((hidden,), jnp.float32),
            ln2_g=jnp.ones((hidden,), jnp.float32),
            ln2_b=jnp.zeros((hidden,), jnp.float32),
        ))
    return params


# --------------------------------------------------------------------------
# full forward pass (BERT encoder + classifier + losses)
# --------------------------------------------------------------------------
def forward(params, input_ids, attention_mask, labels=None, *,
            n_heads=4, alpha=1.0):
    B, S = input_ids.shape
    H = params["word_emb"].shape[1]
    n_labels = params["cls_w"].shape[1]

    # ---- embeddings (gather is JAX glue, LN in Pallas) ----
    x = (jnp.take(params["word_emb"], input_ids, axis=0)
         + params["pos_emb"][None, :S, :]
         + params["type_emb"][0][None, None, :])
    x = x.reshape(B * S, H).astype(jnp.float32)
    x = embedding_layernorm(x, params["emb_ln_g"], params["emb_ln_b"],
                            batch=B, seq=S)
    # dropout(p=0.1): identity in eval-mode forward

    ext_mask = ((1.0 - attention_mask.astype(jnp.float32)) * -10000.0
                ).reshape(B, 1, S)

    cls_attn_mean = None
    for L in params["layers"]:
        x, cls_attn_mean = encoder_layer(x, ext_mask, L,
                                         batch=B, seq=S, n_heads=n_heads)

    # ---- classifier head (+ losses, fused) ----
    if labels is None:
        logits = classifier(x, params["cls_w"], params["cls_b"])
        return {"logits": logits.reshape(B, S, n_labels)}

    logits2d, loss, loss_cls, loss_attn = classifier_with_losses(
        x, params["cls_w"], params["cls_b"], labels, cls_attn_mean,
        alpha=alpha)
    return {"logits": logits2d.reshape(B, S, n_labels),
            "loss": loss, "loss_cls": loss_cls, "loss_attn": loss_attn}


# --------------------------------------------------------------------------
if __name__ == "__main__":
    key = jax.random.PRNGKey(0)
    pk, ik, lk = jax.random.split(key, 3)

    B, S = 2, 8
    VOCAB, HIDDEN, N_LAYERS, N_HEADS, FFN, MAX_POS, N_LABELS = 100, 32, 2, 4, 64, 16, 3

    params = init_params(pk, vocab=VOCAB, hidden=HIDDEN, n_layers=N_LAYERS,
                         ffn=FFN, max_pos=MAX_POS, n_labels=N_LABELS)

    input_ids = jax.random.randint(ik, (B, S), 0, VOCAB, dtype=jnp.int32)
    attention_mask = jnp.ones((B, S), jnp.int32)
    labels = jax.random.randint(lk, (B, S), 0, N_LABELS, dtype=jnp.int32)
    labels = labels.at[0, 0].set(-100)   # exercise ignore_index

    fwd = jax.jit(functools.partial(forward, n_heads=N_HEADS, alpha=1.0))
    out = fwd(params, input_ids, attention_mask, labels)
    jax.block_until_ready(out)
    print("KERNEL_OK")
</pallas_src>

<mosaic_0001>
module attributes {stable_mosaic.version = 11 : i64} {
  func.func @_emb_ln_kernel(%arg0: i32, %arg1: memref<8x32xf32, #tpu.memory_space<vmem>>, %arg2: memref<1x32xf32, #tpu.memory_space<vmem>>, %arg3: memref<1x32xf32, #tpu.memory_space<vmem>>, %arg4: memref<8x32xf32, #tpu.memory_space<vmem>>) attributes {dimension_semantics = [#tpu.dimension_semantics<parallel>], iteration_bounds = array<i64: 2>, scalar_prefetch = 0 : i64, scratch_operands = 0 : i64, tpu.core_type = #tpu.core_type<tc>, window_params = [{transform_indices = @transform_0, window_bounds = array<i64: 8, 32>}, {pipeline_mode = #tpu.pipeline_mode<synchronous>, transform_indices = @transform_1, window_bounds = array<i64: 1, 32>}, {pipeline_mode = #tpu.pipeline_mode<synchronous>, transform_indices = @transform_2, window_bounds = array<i64: 1, 32>}, {transform_indices = @transform_3, window_bounds = array<i64: 8, 32>}]} {
    %c0 = arith.constant 0 : index
    %c0_0 = arith.constant 0 : index
    %0 = vector.load %arg1[%c0, %c0_0] : memref<8x32xf32, #tpu.memory_space<vmem>>, vector<8x32xf32>
    %c0_1 = arith.constant 0 : index
    %c0_2 = arith.constant 0 : index
    %1 = vector.load %arg2[%c0_1, %c0_2] : memref<1x32xf32, #tpu.memory_space<vmem>>, vector<1x32xf32>
    %c0_3 = arith.constant 0 : index
    %c0_4 = arith.constant 0 : index
    %2 = vector.load %arg3[%c0_3, %c0_4] : memref<1x32xf32, #tpu.memory_space<vmem>>, vector<1x32xf32>
    %cst = arith.constant dense<0.000000e+00> : vector<8xf32>
    %3 = vector.multi_reduction <add>, %0, %cst [1] : vector<8x32xf32> to vector<8xf32>
    %4 = vector.shape_cast %3 : vector<8xf32> to vector<8x1xf32>
    %cst_5 = arith.constant 3.200000e+01 : f32
    %5 = vector.broadcast %cst_5 : f32 to vector<8x1xf32>
    %6 = arith.divf %4, %5 : vector<8x1xf32>
    %7 = vector.broadcast %6 : vector<8x1xf32> to vector<8x32xf32>
    %8 = arith.subf %0, %7 : vector<8x32xf32>
    %9 = arith.mulf %8, %8 : vector<8x32xf32>
    %cst_6 = arith.constant dense<0.000000e+00> : vector<8xf32>
    %10 = vector.multi_reduction <add>, %9, %cst_6 [1] : vector<8x32xf32> to vector<8xf32>
    %11 = vector.shape_cast %10 : vector<8xf32> to vector<8x1xf32>
    %cst_7 = arith.constant 3.200000e+01 : f32
    %12 = vector.broadcast %cst_7 : f32 to vector<8x1xf32>
    %13 = arith.divf %11, %12 : vector<8x1xf32>
    %14 = vector.broadcast %6 : vector<8x1xf32> to vector<8x32xf32>
    %15 = arith.subf %0, %14 : vector<8x32xf32>
    %cst_8 = arith.constant 9.99999996E-13 : f32
    %16 = vector.broadcast %cst_8 : f32 to vector<8x1xf32>
    %17 = arith.addf %13, %16 : vector<8x1xf32>
    %18 = math.rsqrt %17 : vector<8x1xf32>
    %19 = vector.broadcast %18 : vector<8x1xf32> to vector<8x32xf32>
    %20 = arith.mulf %15, %19 : vector<8x32xf32>
    %21 = vector.broadcast %1 : vector<1x32xf32> to vector<8x32xf32>
    %22 = arith.mulf %20, %21 : vector<8x32xf32>
    %23 = vector.broadcast %2 : vector<1x32xf32> to vector<8x32xf32>
    %24 = arith.addf %22, %23 : vector<8x32xf32>
    %c0_9 = arith.constant 0 : index
    %c0_10 = arith.constant 0 : index
    %25 = vector.load %arg4[%c0_9, %c0_10] : memref<8x32xf32, #tpu.memory_space<vmem>>, vector<8x32xf32>
    tpu.vector_store %arg4[%c0_9, %c0_10], %24 {strides = array<i32>} : memref<8x32xf32, #tpu.memory_space<vmem>>, vector<8x32xf32>,
    return
  }
  func.func @transform_0(%arg0: i32) -> (i32, i32) {
    %c0_i32 = arith.constant 0 : i32
    %c0_i32_0 = arith.constant 0 : i32
    return %arg0, %c0_i32 : i32, i32
  }
  func.func @transform_1(%arg0: i32) -> (i32, i32) {
    %c0_i32 = arith.constant 0 : i32
    %c0_i32_0 = arith.constant 0 : i32
    %c0_i32_1 = arith.constant 0 : i32
    return %c0_i32, %c0_i32_0 : i32, i32
  }
  func.func @transform_2(%arg0: i32) -> (i32, i32) {
    %c0_i32 = arith.constant 0 : i32
    %c0_i32_0 = arith.constant 0 : i32
    %c0_i32_1 = arith.constant 0 : i32
    return %c0_i32, %c0_i32_0 : i32, i32
  }
  func.func @transform_3(%arg0: i32) -> (i32, i32) {
    %c0_i32 = arith.constant 0 : i32
    %c0_i32_0 = arith.constant 0 : i32
    return %arg0, %c0_i32 : i32, i32
  }
}

module attributes {stable_mosaic.version = 11 : i64} {
  func.func @_encoder_layer_kernel(%arg0: i32, %arg1: memref<8x32xf32, #tpu.memory_space<vmem>>, %arg2: memref<1x1x8xf32, #tpu.memory_space<vmem>>, %arg3: memref<32x96xf32, #tpu.memory_space<vmem>>, %arg4: memref<1x96xf32, #tpu.memory_space<vmem>>, %arg5: memref<32x32xf32, #tpu.memory_space<vmem>>, %arg6: memref<1x32xf32, #tpu.memory_space<vmem>>, %arg7: memref<1x32xf32, #tpu.memory_space<vmem>>, %arg8: memref<1x32xf32, #tpu.memory_space<vmem>>, %arg9: memref<32x64xf32, #tpu.memory_space<vmem>>, %arg10: memref<1x64xf32, #tpu.memory_space<vmem>>, %arg11: memref<64x32xf32, #tpu.memory_space<vmem>>, %arg12: memref<1x32xf32, #tpu.memory_space<vmem>>, %arg13: memref<1x32xf32, #tpu.memory_space<vmem>>, %arg14: memref<1x32xf32, #tpu.memory_space<vmem>>, %arg15: memref<8x32xf32, #tpu.memory_space<vmem>>, %arg16: memref<1x1x8xf32, #tpu.memory_space<vmem>>) attributes {dimension_semantics = [#tpu.dimension_semantics<parallel>], iteration_bounds = array<i64: 2>, scalar_prefetch = 0 : i64, scratch_operands = 0 : i64, tpu.core_type = #tpu.core_type<tc>, window_params = [{transform_indices = @transform_0, window_bounds = array<i64: 8, 32>}, {transform_indices = @transform_1, window_bounds = array<i64: 1, 1, 8>}, {pipeline_mode = #tpu.pipeline_mode<synchronous>, transform_indices = @transform_2, window_bounds = array<i64: 32, 96>}, {pipeline_mode = #tpu.pipeline_mode<synchronous>, transform_indices = @transform_3, window_bounds = array<i64: 1, 96>}, {pipeline_mode = #tpu.pipeline_mode<synchronous>, transform_indices = @transform_4, window_bounds = array<i64: 32, 32>}, {pipeline_mode = #tpu.pipeline_mode<synchronous>, transform_indices = @transform_5, window_bounds = array<i64: 1, 32>}, {pipeline_mode = #tpu.pipeline_mode<synchronous>, transform_indices = @transform_6, window_bounds = array<i64: 1, 32>}, {pipeline_mode = #tpu.pipeline_mode<synchronous>, transform_indices = @transform_7, window_bounds = array<i64: 1, 32>}, {pipeline_mode = #tpu.pipeline_mode<synchronous>, transform_indices = @transform_8, window_bounds = array<i64: 32, 64>}, {pipeline_mode = #tpu.pipeline_mode<synchronous>, transform_indices = @transform_9, window_bounds = array<i64: 1, 64>}, {pipeline_mode = #tpu.pipeline_mode<synchronous>, transform_indices = @transform_10, window_bounds = array<i64: 64, 32>}, {pipeline_mode = #tpu.pipeline_mode<synchronous>, transform_indices = @transform_11, window_bounds = array<i64: 1, 32>}, {pipeline_mode = #tpu.pipeline_mode<synchronous>, transform_indices = @transform_12, window_bounds = array<i64: 1, 32>}, {pipeline_mode = #tpu.pipeline_mode<synchronous>, transform_indices = @transform_13, window_bounds = array<i64: 1, 32>}, {transform_indices = @transform_14, window_bounds = array<i64: 8, 32>}, {transform_indices = @transform_15, window_bounds = array<i64: 1, 1, 8>}]} {
    %c0 = arith.constant 0 : index
    %c0_0 = arith.constant 0 : index
    %0 = vector.load %arg1[%c0, %c0_0] : memref<8x32xf32, #tpu.memory_space<vmem>>, vector<8x32xf32>
    %c0_1 = arith.constant 0 : index
    %c0_2 = arith.constant 0 : index
    %c0_3 = arith.constant 0 : index
    %1 = vector.load %arg2[%c0_1, %c0_2, %c0_3] : memref<1x1x8xf32, #tpu.memory_space<vmem>>, vector<1x1x8xf32>
    %2 = vector.shape_cast %1 : vector<1x1x8xf32> to vector<1x8xf32>
    %c0_4 = arith.constant 0 : index
    %c0_5 = arith.constant 0 : index
    %3 = vector.load %arg3[%c0_4, %c0_5] : memref<32x96xf32, #tpu.memory_space<vmem>>, vector<32x96xf32>
    %4 = arith.truncf %0 : vector<8x32xf32> to vector<8x32xbf16>
    %5 = arith.truncf %3 : vector<32x96xf32> to vector<32x96xbf16>
    %cst = arith.constant dense<0.000000e+00> : vector<8x96xf32>
    %6 = tpu.matmul %4, %5, %cst {dimension_numbers = #tpu.dot_dimension_numbers<[1], [0], [0], [1], [0, 0, 1, 1], [], []>} : vector<8x32xbf16>, vector<32x96xbf16>, vector<8x96xf32> -> vector<8x96xf32>
    %c0_6 = arith.constant 0 : index
    %c0_7 = arith.constant 0 : index
    %7 = vector.load %arg4[%c0_6, %c0_7] : memref<1x96xf32, #tpu.memory_space<vmem>>, vector<1x96xf32>
    %8 = vector.broadcast %7 : vector<1x96xf32> to vector<8x96xf32>
    %9 = arith.addf %6, %8 : vector<8x96xf32>
    %cst_8 = arith.constant 0.000000e+00 : f32
    %10 = vector.broadcast %cst_8 : f32 to vector<8x32xf32>
    %cst_9 = arith.constant 0.000000e+00 : f32
    %11 = vector.broadcast %cst_9 : f32 to vector<1x8xf32>
    %12 = vector.extract_strided_slice %9 {offsets = [0, 0], sizes = [8, 8], strides = [1, 1]} : vector<8x96xf32> to vector<8x8xf32>
    %13 = vector.extract_strided_slice %9 {offsets = [0, 32], sizes = [8, 8], strides = [1, 1]} : vector<8x96xf32> to vector<8x8xf32>
    %14 = vector.extract_strided_slice %9 {offsets = [0, 64], sizes = [8, 8], strides = [1, 1]} : vector<8x96xf32> to vector<8x8xf32>
    %15 = arith.truncf %12 : vector<8x8xf32> to vector<8x8xbf16>
    %16 = arith.truncf %13 : vector<8x8xf32> to vector<8x8xbf16>
    %cst_10 = arith.constant dense<0.000000e+00> : vector<8x8xf32>
    %17 = tpu.matmul %15, %16, %cst_10 {dimension_numbers = #tpu.dot_dimension_numbers<[1], [1], [0], [0], [0, 0, 1, 0], [], []>} : vector<8x8xbf16>, vector<8x8xbf16>, vector<8x8xf32> -> vector<8x8xf32>
    %cst_11 = arith.constant 0.353553385 : f32
    %18 = vector.broadcast %cst_11 : f32 to vector<8x8xf32>
    %19 = arith.mulf %17, %18 : vector<8x8xf32>
    %20 = vector.broadcast %2 : vector<1x8xf32> to vector<8x8xf32>
    %21 = arith.addf %19, %20 : vector<8x8xf32>
    %cst_12 = arith.constant dense<0xFF800000> : vector<8xf32>
    %22 = vector.multi_reduction <maximumf>, %21, %cst_12 [1] : vector<8x8xf32> to vector<8xf32>
    %23 = vector.shape_cast %22 : vector<8xf32> to vector<8x1xf32>
    %24 = vector.broadcast %23 : vector<8x1xf32> to vector<8x8xf32>
    %25 = arith.subf %21, %24 : vector<8x8xf32>
    %26 = math.exp %25 : vector<8x8xf32>
    %cst_13 = arith.constant dense<0.000000e+00> : vector<8xf32>
    %27 = vector.multi_reduction <add>, %26, %cst_13 [1] : vector<8x8xf32> to vector<8xf32>
    %28 = vector.shape_cast %27 : vector<8xf32> to vector<8x1xf32>
    %29 = tpu.reciprocal %28 {approx = true} : vector<8x1xf32> -> vector<8x1xf32>
    %30 = vector.broadcast %29 : vector<8x1xf32> to vector<8x8xf32>
    %31 = arith.mulf %26, %30 : vector<8x8xf32>
    %32 = vector.extract_strided_slice %31 {offsets = [0, 0], sizes = [1, 8], strides = [1, 1]} : vector<8x8xf32> to vector<1x8xf32>
    %33 = arith.addf %11, %32 : vector<1x8xf32>
    %34 = arith.truncf %31 : vector<8x8xf32> to vector<8x8xbf16>
    %35 = arith.truncf %14 : vector<8x8xf32> to vector<8x8xbf16>
    %cst_14 = arith.constant dense<0.000000e+00> : vector<8x8xf32>
    %36 = tpu.matmul %34, %35, %cst_14 {dimension_numbers = #tpu.dot_dimension_numbers<[1], [0], [0], [1], [0, 0, 1, 1], [], []>} : vector<8x8xbf16>, vector<8x8xbf16>, vector<8x8xf32> -> vector<8x8xf32>
    %c0_15 = arith.constant 0 : index
    %c0_16 = arith.constant 0 : index
    %37 = vector.load %arg5[%c0_15, %c0_16] : memref<32x32xf32, #tpu.memory_space<vmem>>, vector<8x32xf32>
    %38 = arith.truncf %36 : vector<8x8xf32> to vector<8x8xbf16>
    %39 = arith.truncf %37 : vector<8x32xf32> to vector<8x32xbf16>
    %cst_17 = arith.constant dense<0.000000e+00> : vector<8x32xf32>
    %40 = tpu.matmul %38, %39, %cst_17 {dimension_numbers = #tpu.dot_dimension_numbers<[1], [0], [0], [1], [0, 0, 1, 1], [], []>} : vector<8x8xbf16>, vector<8x32xbf16>, vector<8x32xf32> -> vector<8x32xf32>
    %41 = arith.addf %10, %40 : vector<8x32xf32>
    %42 = vector.extract_strided_slice %9 {offsets = [0, 8], sizes = [8, 8], strides = [1, 1]} : vector<8x96xf32> to vector<8x8xf32>
    %43 = vector.extract_strided_slice %9 {offsets = [0, 40], sizes = [8, 8], strides = [1, 1]} : vector<8x96xf32> to vector<8x8xf32>
    %44 = vector.extract_strided_slice %9 {offsets = [0, 72], sizes = [8, 8], strides = [1, 1]} : vector<8x96xf32> to vector<8x8xf32>
    %45 = arith.truncf %42 : vector<8x8xf32> to vector<8x8xbf16>
    %46 = arith.truncf %43 : vector<8x8xf32> to vector<8x8xbf16>
    %cst_18 = arith.constant dense<0.000000e+00> : vector<8x8xf32>
    %47 = tpu.matmul %45, %46, %cst_18 {dimension_numbers = #tpu.dot_dimension_numbers<[1], [1], [0], [0], [0, 0, 1, 0], [], []>} : vector<8x8xbf16>, vector<8x8xbf16>, vector<8x8xf32> -> vector<8x8xf32>
    %cst_19 = arith.constant 0.353553385 : f32
    %48 = vector.broadcast %cst_19 : f32 to vector<8x8xf32>
    %49 = arith.mulf %47, %48 : vector<8x8xf32>
    %50 = vector.broadcast %2 : vector<1x8xf32> to vector<8x8xf32>
    %51 = arith.addf %49, %50 : vector<8x8xf32>
    %cst_20 = arith.constant dense<0xFF800000> : vector<8xf32>
    %52 = vector.multi_reduction <maximumf>, %51, %cst_20 [1] : vector<8x8xf32> to vector<8xf32>
    %53 = vector.shape_cast %52 : vector<8xf32> to vector<8x1xf32>
    %54 = vector.broadcast %53 : vector<8x1xf32> to vector<8x8xf32>
    %55 = arith.subf %51, %54 : vector<8x8xf32>
    %56 = math.exp %55 : vector<8x8xf32>
    %cst_21 = arith.constant dense<0.000000e+00> : vector<8xf32>
    %57 = vector.multi_reduction <add>, %56, %cst_21 [1] : vector<8x8xf32> to vector<8xf32>
    %58 = vector.shape_cast %57 : vector<8xf32> to vector<8x1xf32>
    %59 = tpu.reciprocal %58 {approx = true} : vector<8x1xf32> -> vector<8x1xf32>
    %60 = vector.broadcast %59 : vector<8x1xf32> to vector<8x8xf32>
    %61 = arith.mulf %56, %60 : vector<8x8xf32>
    %62 = vector.extract_strided_slice %61 {offsets = [0, 0], sizes = [1, 8], strides = [1, 1]} : vector<8x8xf32> to vector<1x8xf32>
    %63 = arith.addf %33, %62 : vector<1x8xf32>
    %64 = arith.truncf %61 : vector<8x8xf32> to vector<8x8xbf16>
    %65 = arith.truncf %44 : vector<8x8xf32> to vector<8x8xbf16>
    %cst_22 = arith.constant dense<0.000000e+00> : vector<8x8xf32>
    %66 = tpu.matmul %64, %65, %cst_22 {dimension_numbers = #tpu.dot_dimension_numbers<[1], [0], [0], [1], [0, 0, 1, 1], [], []>} : vector<8x8xbf16>, vector<8x8xbf16>, vector<8x8xf32> -> vector<8x8xf32>
    %c8 = arith.constant 8 : index
    %c0_23 = arith.constant 0 : index
    %67 = vector.load %arg5[%c8, %c0_23] : memref<32x32xf32, #tpu.memory_space<vmem>>, vector<8x32xf32>
    %68 = arith.truncf %66 : vector<8x8xf32> to vector<8x8xbf16>
    %69 = arith.truncf %67 : vector<8x32xf32> to vector<8x32xbf16>
    %cst_24 = arith.constant dense<0.000000e+00> : vector<8x32xf32>
    %70 = tpu.matmul %68, %69, %cst_24 {dimension_numbers = #tpu.dot_dimension_numbers<[1], [0], [0], [1], [0, 0, 1, 1], [], []>} : vector<8x8xbf16>, vector<8x32xbf16>, vector<8x32xf32> -> vector<8x32xf32>
    %71 = arith.addf %41, %70 : vector<8x32xf32>
    %72 = vector.extract_strided_slice %9 {offsets = [0, 16], sizes = [8, 8], strides = [1, 1]} : vector<8x96xf32> to vector<8x8xf32>
    %73 = vector.extract_strided_slice %9 {offsets = [0, 48], sizes = [8, 8], strides = [1, 1]} : vector<8x96xf32> to vector<8x8xf32>
    %74 = vector.extract_strided_slice %9 {offsets = [0, 80], sizes = [8, 8], strides = [1, 1]} : vector<8x96xf32> to vector<8x8xf32>
    %75 = arith.truncf %72 : vector<8x8xf32> to vector<8x8xbf16>
    %76 = arith.truncf %73 : vector<8x8xf32> to vector<8x8xbf16>
    %cst_25 = arith.constant dense<0.000000e+00> : vector<8x8xf32>
    %77 = tpu.matmul %75, %76, %cst_25 {dimension_numbers = #tpu.dot_dimension_numbers<[1], [1], [0], [0], [0, 0, 1, 0], [], []>} : vector<8x8xbf16>, vector<8x8xbf16>, vector<8x8xf32> -> vector<8x8xf32>
    %cst_26 = arith.constant 0.353553385 : f32
    %78 = vector.broadcast %cst_26 : f32 to vector<8x8xf32>
    %79 = arith.mulf %77, %78 : vector<8x8xf32>
    %80 = vector.broadcast %2 : vector<1x8xf32> to vector<8x8xf32>
    %81 = arith.addf %79, %80 : vector<8x8xf32>
    %cst_27 = arith.constant dense<0xFF800000> : vector<8xf32>
    %82 = vector.multi_reduction <maximumf>, %81, %cst_27 [1] : vector<8x8xf32> to vector<8xf32>
    %83 = vector.shape_cast %82 : vector<8xf32> to vector<8x1xf32>
    %84 = vector.broadcast %83 : vector<8x1xf32> to vector<8x8xf32>
    %85 = arith.subf %81, %84 : vector<8x8xf32>
    %86 = math.exp %85 : vector<8x8xf32>
    %cst_28 = arith.constant dense<0.000000e+00> : vector<8xf32>
    %87 = vector.multi_reduction <add>, %86, %cst_28 [1] : vector<8x8xf32> to vector<8xf32>
    %88 = vector.shape_cast %87 : vector<8xf32> to vector<8x1xf32>
    %89 = tpu.reciprocal %88 {approx = true} : vector<8x1xf32> -> vector<8x1xf32>
    %90 = vector.broadcast %89 : vector<8x1xf32> to vector<8x8xf32>
    %91 = arith.mulf %86, %90 : vector<8x8xf32>
    %92 = vector.extract_strided_slice %91 {offsets = [0, 0], sizes = [1, 8], strides = [1, 1]} : vector<8x8xf32> to vector<1x8xf32>
    %93 = arith.addf %63, %92 : vector<1x8xf32>
    %94 = arith.truncf %91 : vector<8x8xf32> to vector<8x8xbf16>
    %95 = arith.truncf %74 : vector<8x8xf32> to vector<8x8xbf16>
    %cst_29 = arith.constant dense<0.000000e+00> : vector<8x8xf32>
    %96 = tpu.matmul %94, %95, %cst_29 {dimension_numbers = #tpu.dot_dimension_numbers<[1], [0], [0], [1], [0, 0, 1, 1], [], []>} : vector<8x8xbf16>, vector<8x8xbf16>, vector<8x8xf32> -> vector<8x8xf32>
    %c16 = arith.constant 16 : index
    %c0_30 = arith.constant 0 : index
    %97 = vector.load %arg5[%c16, %c0_30] : memref<32x32xf32, #tpu.memory_space<vmem>>, vector<8x32xf32>
    %98 = arith.truncf %96 : vector<8x8xf32> to vector<8x8xbf16>
    %99 = arith.truncf %97 : vector<8x32xf32> to vector<8x32xbf16>
    %cst_31 = arith.constant dense<0.000000e+00> : vector<8x32xf32>
    %100 = tpu.matmul %98, %99, %cst_31 {dimension_numbers = #tpu.dot_dimension_numbers<[1], [0], [0], [1], [0, 0, 1, 1], [], []>} : vector<8x8xbf16>, vector<8x32xbf16>, vector<8x32xf32> -> vector<8x32xf32>
    %101 = arith.addf %71, %100 : vector<8x32xf32>
    %102 = vector.extract_strided_slice %9 {offsets = [0, 24], sizes = [8, 8], strides = [1, 1]} : vector<8x96xf32> to vector<8x8xf32>
    %103 = vector.extract_strided_slice %9 {offsets = [0, 56], sizes = [8, 8], strides = [1, 1]} : vector<8x96xf32> to vector<8x8xf32>
    %104 = vector.extract_strided_slice %9 {offsets = [0, 88], sizes = [8, 8], strides = [1, 1]} : vector<8x96xf32> to vector<8x8xf32>
    %105 = arith.truncf %102 : vector<8x8xf32> to vector<8x8xbf16>
    %106 = arith.truncf %103 : vector<8x8xf32> to vector<8x8xbf16>
    %cst_32 = arith.constant dense<0.000000e+00> : vector<8x8xf32>
    %107 = tpu.matmul %105, %106, %cst_32 {dimension_numbers = #tpu.dot_dimension_numbers<[1], [1], [0], [0], [0, 0, 1, 0], [], []>} : vector<8x8xbf16>, vector<8x8xbf16>, vector<8x8xf32> -> vector<8x8xf32>
    %cst_33 = arith.constant 0.353553385 : f32
    %108 = vector.broadcast %cst_33 : f32 to vector<8x8xf32>
    %109 = arith.mulf %107, %108 : vector<8x8xf32>
    %110 = vector.broadcast %2 : vector<1x8xf32> to vector<8x8xf32>
    %111 = arith.addf %109, %110 : vector<8x8xf32>
    %cst_34 = arith.constant dense<0xFF800000> : vector<8xf32>
    %112 = vector.multi_reduction <maximumf>, %111, %cst_34 [1] : vector<8x8xf32> to vector<8xf32>
    %113 = vector.shape_cast %112 : vector<8xf32> to vector<8x1xf32>
    %114 = vector.broadcast %113 : vector<8x1xf32> to vector<8x8xf32>
    %115 = arith.subf %111, %114 : vector<8x8xf32>
    %116 = math.exp %115 : vector<8x8xf32>
    %cst_35 = arith.constant dense<0.000000e+00> : vector<8xf32>
    %117 = vector.multi_reduction <add>, %116, %cst_35 [1] : vector<8x8xf32> to vector<8xf32>
    %118 = vector.shape_cast %117 : vector<8xf32> to vector<8x1xf32>
    %119 = tpu.reciprocal %118 {approx = true} : vector<8x1xf32> -> vector<8x1xf32>
    %120 = vector.broadcast %119 : vector<8x1xf32> to vector<8x8xf32>
    %121 = arith.mulf %116, %120 : vector<8x8xf32>
    %122 = vector.extract_strided_slice %121 {offsets = [0, 0], sizes = [1, 8], strides = [1, 1]} : vector<8x8xf32> to vector<1x8xf32>
    %123 = arith.addf %93, %122 : vector<1x8xf32>
    %124 = arith.truncf %121 : vector<8x8xf32> to vector<8x8xbf16>
    %125 = arith.truncf %104 : vector<8x8xf32> to vector<8x8xbf16>
    %cst_36 = arith.constant dense<0.000000e+00> : vector<8x8xf32>
    %126 = tpu.matmul %124, %125, %cst_36 {dimension_numbers = #tpu.dot_dimension_numbers<[1], [0], [0], [1], [0, 0, 1, 1], [], []>} : vector<8x8xbf16>, vector<8x8xbf16>, vector<8x8xf32> -> vector<8x8xf32>
    %c24 = arith.constant 24 : index
    %c0_37 = arith.constant 0 : index
    %127 = vector.load %arg5[%c24, %c0_37] : memref<32x32xf32, #tpu.memory_space<vmem>>, vector<8x32xf32>
    %128 = arith.truncf %126 : vector<8x8xf32> to vector<8x8xbf16>
    %129 = arith.truncf %127 : vector<8x32xf32> to vector<8x32xbf16>
    %cst_38 = arith.constant dense<0.000000e+00> : vector<8x32xf32>
    %130 = tpu.matmul %128, %129, %cst_38 {dimension_numbers = #tpu.dot_dimension_numbers<[1], [0], [0], [1], [0, 0, 1, 1], [], []>} : vector<8x8xbf16>, vector<8x32xbf16>, vector<8x32xf32> -> vector<8x32xf32>
    %131 = arith.addf %101, %130 : vector<8x32xf32>
    %cst_39 = arith.constant 2.500000e-01 : f32
    %132 = vector.broadcast %cst_39 : f32 to vector<1x8xf32>
    %133 = arith.mulf %123, %132 : vector<1x8xf32>
    %c0_40 = arith.constant 0 : index
    %c0_41 = arith.constant 0 : index
    %c0_42 = arith.constant 0 : index
    %134 = vector.load %arg16[%c0_40, %c0_41, %c0_42] : memref<1x1x8xf32, #tpu.memory_space<vmem>>, vector<1x1x8xf32>
    %135 = vector.shape_cast %134 : vector<1x1x8xf32> to vector<1x8xf32>
    %136 = vector.shape_cast %133 : vector<1x8xf32> to vector<1x1x8xf32>
    tpu.vector_store %arg16[%c0_40, %c0_41, %c0_42], %136 {strides = array<i32>} : memref<1x1x8xf32, #tpu.memory_space<vmem>>, vector<1x1x8xf32>,
    %c0_43 = arith.constant 0 : index
    %c0_44 = arith.constant 0 : index
    %137 = vector.load %arg6[%c0_43, %c0_44] : memref<1x32xf32, #tpu.memory_space<vmem>>, vector<1x32xf32>
    %138 = vector.broadcast %137 : vector<1x32xf32> to vector<8x32xf32>
    %139 = arith.addf %131, %138 : vector<8x32xf32>
    %140 = arith.addf %139, %0 : vector<8x32xf32>
    %c0_45 = arith.constant 0 : index
    %c0_46 = arith.constant 0 : index
    %141 = vector.load %arg7[%c0_45, %c0_46] : memref<1x32xf32, #tpu.memory_space<vmem>>, vector<1x32xf32>
    %c0_47 = arith.constant 0 : index
    %c0_48 = arith.constant 0 : index
    %142 = vector.load %arg8[%c0_47, %c0_48] : memref<1x32xf32, #tpu.memory_space<vmem>>, vector<1x32xf32>
    %cst_49 = arith.constant dense<0.000000e+00> : vector<8xf32>
    %143 = vector.multi_reduction <add>, %140, %cst_49 [1] : vector<8x32xf32> to vector<8xf32>
    %144 = vector.shape_cast %143 : vector<8xf32> to vector<8x1xf32>
    %cst_50 = arith.constant 3.200000e+01 : f32
    %145 = vector.broadcast %cst_50 : f32 to vector<8x1xf32>
    %146 = arith.divf %144, %145 : vector<8x1xf32>
    %147 = vector.broadcast %146 : vector<8x1xf32> to vector<8x32xf32>
    %148 = arith.subf %140, %147 : vector<8x32xf32>
    %149 = arith.mulf %148, %148 : vector<8x32xf32>
    %cst_51 = arith.constant dense<0.000000e+00> : vector<8xf32>
    %150 = vector.multi_reduction <add>, %149, %cst_51 [1] : vector<8x32xf32> to vector<8xf32>
    %151 = vector.shape_cast %150 : vector<8xf32> to vector<8x1xf32>
    %cst_52 = arith.constant 3.200000e+01 : f32
    %152 = vector.broadcast %cst_52 : f32 to vector<8x1xf32>
    %153 = arith.divf %151, %152 : vector<8x1xf32>
    %154 = vector.broadcast %146 : vector<8x1xf32> to vector<8x32xf32>
    %155 = arith.subf %140, %154 : vector<8x32xf32>
    %cst_53 = arith.constant 9.99999996E-13 : f32
    %156 = vector.broadcast %cst_53 : f32 to vector<8x1xf32>
    %157 = arith.addf %153, %156 : vector<8x1xf32>
    %158 = math.rsqrt %157 : vector<8x1xf32>
    %159 = vector.broadcast %158 : vector<8x1xf32> to vector<8x32xf32>
    %160 = arith.mulf %155, %159 : vector<8x32xf32>
    %161 = vector.broadcast %141 : vector<1x32xf32> to vector<8x32xf32>
    %162 = arith.mulf %160, %161 : vector<8x32xf32>
    %163 = vector.broadcast %142 : vector<1x32xf32> to vector<8x32xf32>
    %164 = arith.addf %162, %163 : vector<8x32xf32>
    %c0_54 = arith.constant 0 : index
    %c0_55 = arith.constant 0 : index
    %165 = vector.load %arg9[%c0_54, %c0_55] : memref<32x64xf32, #tpu.memory_space<vmem>>, vector<32x64xf32>
    %166 = arith.truncf %164 : vector<8x32xf32> to vector<8x32xbf16>
    %167 = arith.truncf %165 : vector<32x64xf32> to vector<32x64xbf16>
    %cst_56 = arith.constant dense<0.000000e+00> : vector<8x64xf32>
    %168 = tpu.matmul %166, %167, %cst_56 {dimension_numbers = #tpu.dot_dimension_numbers<[1], [0], [0], [1], [0, 0, 1, 1], [], []>} : vector<8x32xbf16>, vector<32x64xbf16>, vector<8x64xf32> -> vector<8x64xf32>
    %c0_57 = arith.constant 0 : index
    %c0_58 = arith.constant 0 : index
    %169 = vector.load %arg10[%c0_57, %c0_58] : memref<1x64xf32, #tpu.memory_space<vmem>>, vector<1x64xf32>
    %170 = vector.broadcast %169 : vector<1x64xf32> to vector<8x64xf32>
    %171 = arith.addf %168, %170 : vector<8x64xf32>
    %172 = arith.mulf %171, %171 : vector<8x64xf32>
    %173 = arith.mulf %171, %172 : vector<8x64xf32>
    %cst_59 = arith.constant 4.471500e-02 : f32
    %174 = vector.broadcast %cst_59 : f32 to vector<8x64xf32>
    %175 = arith.mulf %174, %173 : vector<8x64xf32>
    %176 = arith.addf %171, %175 : vector<8x64xf32>
    %cst_60 = arith.constant 0.797884583 : f32
    %177 = vector.broadcast %cst_60 : f32 to vector<8x64xf32>
    %178 = arith.mulf %177, %176 : vector<8x64xf32>
    %179 = math.tanh %178 : vector<8x64xf32>
    %cst_61 = arith.constant 1.000000e+00 : f32
    %180 = vector.broadcast %cst_61 : f32 to vector<8x64xf32>
    %181 = arith.addf %180, %179 : vector<8x64xf32>
    %cst_62 = arith.constant 5.000000e-01 : f32
    %182 = vector.broadcast %cst_62 : f32 to vector<8x64xf32>
    %183 = arith.mulf %182, %181 : vector<8x64xf32>
    %184 = arith.mulf %171, %183 : vector<8x64xf32>
    %c0_63 = arith.constant 0 : index
    %c0_64 = arith.constant 0 : index
    %185 = vector.load %arg11[%c0_63, %c0_64] : memref<64x32xf32, #tpu.memory_space<vmem>>, vector<64x32xf32>
    %186 = arith.truncf %184 : vector<8x64xf32> to vector<8x64xbf16>
    %187 = arith.truncf %185 : vector<64x32xf32> to vector<64x32xbf16>
    %cst_65 = arith.constant dense<0.000000e+00> : vector<8x32xf32>
    %188 = tpu.matmul %186, %187, %cst_65 {dimension_numbers = #tpu.dot_dimension_numbers<[1], [0], [0], [1], [0, 0, 1, 1], [], []>} : vector<8x64xbf16>, vector<64x32xbf16>, vector<8x32xf32> -> vector<8x32xf32>
    %c0_66 = arith.constant 0 : index
    %c0_67 = arith.constant 0 : index
    %189 = vector.load %arg12[%c0_66, %c0_67] : memref<1x32xf32, #tpu.memory_space<vmem>>, vector<1x32xf32>
    %190 = vector.broadcast %189 : vector<1x32xf32> to vector<8x32xf32>
    %191 = arith.addf %188, %190 : vector<8x32xf32>
    %192 = arith.addf %191, %164 : vector<8x32xf32>
    %c0_68 = arith.constant 0 : index
    %c0_69 = arith.constant 0 : index
    %193 = vector.load %arg13[%c0_68, %c0_69] : memref<1x32xf32, #tpu.memory_space<vmem>>, vector<1x32xf32>
    %c0_70 = arith.constant 0 : index
    %c0_71 = arith.constant 0 : index
    %194 = vector.load %arg14[%c0_70, %c0_71] : memref<1x32xf32, #tpu.memory_space<vmem>>, vector<1x32xf32>
    %cst_72 = arith.constant dense<0.000000e+00> : vector<8xf32>
    %195 = vector.multi_reduction <add>, %192, %cst_72 [1] : vector<8x32xf32> to vector<8xf32>
    %196 = vector.shape_cast %195 : vector<8xf32> to vector<8x1xf32>
    %cst_73 = arith.constant 3.200000e+01 : f32
    %197 = vector.broadcast %cst_73 : f32 to vector<8x1xf32>
    %198 = arith.divf %196, %197 : vector<8x1xf32>
    %199 = vector.broadcast %198 : vector<8x1xf32> to vector<8x32xf32>
    %200 = arith.subf %192, %199 : vector<8x32xf32>
    %201 = arith.mulf %200, %200 : vector<8x32xf32>
    %cst_74 = arith.constant dense<0.000000e+00> : vector<8xf32>
    %202 = vector.multi_reduction <add>, %201, %cst_74 [1] : vector<8x32xf32> to vector<8xf32>
    %203 = vector.shape_cast %202 : vector<8xf32> to vector<8x1xf32>
    %cst_75 = arith.constant 3.200000e+01 : f32
    %204 = vector.broadcast %cst_75 : f32 to vector<8x1xf32>
    %205 = arith.divf %203, %204 : vector<8x1xf32>
    %206 = vector.broadcast %198 : vector<8x1xf32> to vector<8x32xf32>
    %207 = arith.subf %192, %206 : vector<8x32xf32>
    %cst_76 = arith.constant 9.99999996E-13 : f32
    %208 = vector.broadcast %cst_76 : f32 to vector<8x1xf32>
    %209 = arith.addf %205, %208 : vector<8x1xf32>
    %210 = math.rsqrt %209 : vector<8x1xf32>
    %211 = vector.broadcast %210 : vector<8x1xf32> to vector<8x32xf32>
    %212 = arith.mulf %207, %211 : vector<8x32xf32>
    %213 = vector.broadcast %193 : vector<1x32xf32> to vector<8x32xf32>
    %214 = arith.mulf %212, %213 : vector<8x32xf32>
    %215 = vector.broadcast %194 : vector<1x32xf32> to vector<8x32xf32>
    %216 = arith.addf %214, %215 : vector<8x32xf32>
    %c0_77 = arith.constant 0 : index
    %c0_78 = arith.constant 0 : index
    %217 = vector.load %arg15[%c0_77, %c0_78] : memref<8x32xf32, #tpu.memory_space<vmem>>, vector<8x32xf32>
    tpu.vector_store %arg15[%c0_77, %c0_78], %216 {strides = array<i32>} : memref<8x32xf32, #tpu.memory_space<vmem>>, vector<8x32xf32>,
    return
  }
  func.func @transform_0(%arg0: i32) -> (i32, i32) {
    %c0_i32 = arith.constant 0 : i32
    %c0_i32_0 = arith.constant 0 : i32
    return %arg0, %c0_i32 : i32, i32
  }
  func.func @transform_1(%arg0: i32) -> (i32, i32, i32) {
    %c0_i32 = arith.constant 0 : i32
    %c0_i32_0 = arith.constant 0 : i32
    %c0_i32_1 = arith.constant 0 : i32
    return %arg0, %c0_i32, %c0_i32_0 : i32, i32, i32
  }
  func.func @transform_2(%arg0: i32) -> (i32, i32) {
    %c0_i32 = arith.constant 0 : i32
    %c0_i32_0 = arith.constant 0 : i32
    %c0_i32_1 = arith.constant 0 : i32
    return %c0_i32, %c0_i32_0 : i32, i32
  }
  func.func @transform_3(%arg0: i32) -> (i32, i32) {
    %c0_i32 = arith.constant 0 : i32
    %c0_i32_0 = arith.constant 0 : i32
    %c0_i32_1 = arith.constant 0 : i32
    return %c0_i32, %c0_i32_0 : i32, i32
  }
  func.func @transform_4(%arg0: i32) -> (i32, i32) {
    %c0_i32 = arith.constant 0 : i32
    %c0_i32_0 = arith.constant 0 : i32
    %c0_i32_1 = arith.constant 0 : i32
    return %c0_i32, %c0_i32_0 : i32, i32
  }
  func.func @transform_5(%arg0: i32) -> (i32, i32) {
    %c0_i32 = arith.constant 0 : i32
    %c0_i32_0 = arith.constant 0 : i32
    %c0_i32_1 = arith.constant 0 : i32
    return %c0_i32, %c0_i32_0 : i32, i32
  }
  func.func @transform_6(%arg0: i32) -> (i32, i32) {
    %c0_i32 = arith.constant 0 : i32
    %c0_i32_0 = arith.constant 0 : i32
    %c0_i32_1 = arith.constant 0 : i32
    return %c0_i32, %c0_i32_0 : i32, i32
  }
  func.func @transform_7(%arg0: i32) -> (i32, i32) {
    %c0_i32 = arith.constant 0 : i32
    %c0_i32_0 = arith.constant 0 : i32
    %c0_i32_1 = arith.constant 0 : i32
    return %c0_i32, %c0_i32_0 : i32, i32
  }
  func.func @transform_8(%arg0: i32) -> (i32, i32) {
    %c0_i32 = arith.constant 0 : i32
    %c0_i32_0 = arith.constant 0 : i32
    %c0_i32_1 = arith.constant 0 : i32
    return %c0_i32, %c0_i32_0 : i32, i32
  }
  func.func @transform_9(%arg0: i32) -> (i32, i32) {
    %c0_i32 = arith.constant 0 : i32
    %c0_i32_0 = arith.constant 0 : i32
    %c0_i32_1 = arith.constant 0 : i32
    return %c0_i32, %c0_i32_0 : i32, i32
  }
  func.func @transform_10(%arg0: i32) -> (i32, i32) {
    %c0_i32 = arith.constant 0 : i32
    %c0_i32_0 = arith.constant 0 : i32
    %c0_i32_1 = arith.constant 0 : i32
    return %c0_i32, %c0_i32_0 : i32, i32
  }
  func.func @transform_11(%arg0: i32) -> (i32, i32) {
    %c0_i32 = arith.constant 0 : i32
    %c0_i32_0 = arith.constant 0 : i32
    %c0_i32_1 = arith.constant 0 : i32
    return %c0_i32, %c0_i32_0 : i32, i32
  }
  func.func @transform_12(%arg0: i32) -> (i32, i32) {
    %c0_i32 = arith.constant 0 : i32
    %c0_i32_0 = arith.constant 0 : i32
    %c0_i32_1 = arith.constant 0 : i32
    return %c0_i32, %c0_i32_0 : i32, i32
  }
  func.func @transform_13(%arg0: i32) -> (i32, i32) {
    %c0_i32 = arith.constant 0 : i32
    %c0_i32_0 = arith.constant 0 : i32
    %c0_i32_1 = arith.constant 0 : i32
    return %c0_i32, %c0_i32_0 : i32, i32
  }
  func.func @transform_14(%arg0: i32) -> (i32, i32) {
    %c0_i32 = arith.constant 0 : i32
    %c0_i32_0 = arith.constant 0 : i32
    return %arg0, %c0_i32 : i32, i32
  }
  func.func @transform_15(%arg0: i32) -> (i32, i32, i32) {
    %c0_i32 = arith.constant 0 : i32
    %c0_i32_0 = arith.constant 0 : i32
    %c0_i32_1 = arith.constant 0 : i32
    return %arg0, %c0_i32, %c0_i32_0 : i32, i32, i32
  }
}

module attributes {stable_mosaic.version = 11 : i64} {
  func.func @_encoder_layer_kernel(%arg0: i32, %arg1: memref<8x32xf32, #tpu.memory_space<vmem>>, %arg2: memref<1x1x8xf32, #tpu.memory_space<vmem>>, %arg3: memref<32x96xf32, #tpu.memory_space<vmem>>, %arg4: memref<1x96xf32, #tpu.memory_space<vmem>>, %arg5: memref<32x32xf32, #tpu.memory_space<vmem>>, %arg6: memref<1x32xf32, #tpu.memory_space<vmem>>, %arg7: memref<1x32xf32, #tpu.memory_space<vmem>>, %arg8: memref<1x32xf32, #tpu.memory_space<vmem>>, %arg9: memref<32x64xf32, #tpu.memory_space<vmem>>, %arg10: memref<1x64xf32, #tpu.memory_space<vmem>>, %arg11: memref<64x32xf32, #tpu.memory_space<vmem>>, %arg12: memref<1x32xf32, #tpu.memory_space<vmem>>, %arg13: memref<1x32xf32, #tpu.memory_space<vmem>>, %arg14: memref<1x32xf32, #tpu.memory_space<vmem>>, %arg15: memref<8x32xf32, #tpu.memory_space<vmem>>, %arg16: memref<1x1x8xf32, #tpu.memory_space<vmem>>) attributes {dimension_semantics = [#tpu.dimension_semantics<parallel>], iteration_bounds = array<i64: 2>, scalar_prefetch = 0 : i64, scratch_operands = 0 : i64, tpu.core_type = #tpu.core_type<tc>, window_params = [{transform_indices = @transform_0, window_bounds = array<i64: 8, 32>}, {transform_indices = @transform_1, window_bounds = array<i64: 1, 1, 8>}, {pipeline_mode = #tpu.pipeline_mode<synchronous>, transform_indices = @transform_2, window_bounds = array<i64: 32, 96>}, {pipeline_mode = #tpu.pipeline_mode<synchronous>, transform_indices = @transform_3, window_bounds = array<i64: 1, 96>}, {pipeline_mode = #tpu.pipeline_mode<synchronous>, transform_indices = @transform_4, window_bounds = array<i64: 32, 32>}, {pipeline_mode = #tpu.pipeline_mode<synchronous>, transform_indices = @transform_5, window_bounds = array<i64: 1, 32>}, {pipeline_mode = #tpu.pipeline_mode<synchronous>, transform_indices = @transform_6, window_bounds = array<i64: 1, 32>}, {pipeline_mode = #tpu.pipeline_mode<synchronous>, transform_indices = @transform_7, window_bounds = array<i64: 1, 32>}, {pipeline_mode = #tpu.pipeline_mode<synchronous>, transform_indices = @transform_8, window_bounds = array<i64: 32, 64>}, {pipeline_mode = #tpu.pipeline_mode<synchronous>, transform_indices = @transform_9, window_bounds = array<i64: 1, 64>}, {pipeline_mode = #tpu.pipeline_mode<synchronous>, transform_indices = @transform_10, window_bounds = array<i64: 64, 32>}, {pipeline_mode = #tpu.pipeline_mode<synchronous>, transform_indices = @transform_11, window_bounds = array<i64: 1, 32>}, {pipeline_mode = #tpu.pipeline_mode<synchronous>, transform_indices = @transform_12, window_bounds = array<i64: 1, 32>}, {pipeline_mode = #tpu.pipeline_mode<synchronous>, transform_indices = @transform_13, window_bounds = array<i64: 1, 32>}, {transform_indices = @transform_14, window_bounds = array<i64: 8, 32>}, {transform_indices = @transform_15, window_bounds = array<i64: 1, 1, 8>}]} {
    %c0 = arith.constant 0 : index
    %c0_0 = arith.constant 0 : index
    %0 = vector.load %arg1[%c0, %c0_0] : memref<8x32xf32, #tpu.memory_space<vmem>>, vector<8x32xf32>
    %c0_1 = arith.constant 0 : index
    %c0_2 = arith.constant 0 : index
    %c0_3 = arith.constant 0 : index
    %1 = vector.load %arg2[%c0_1, %c0_2, %c0_3] : memref<1x1x8xf32, #tpu.memory_space<vmem>>, vector<1x1x8xf32>
    %2 = vector.shape_cast %1 : vector<1x1x8xf32> to vector<1x8xf32>
    %c0_4 = arith.constant 0 : index
    %c0_5 = arith.constant 0 : index
    %3 = vector.load %arg3[%c0_4, %c0_5] : memref<32x96xf32, #tpu.memory_space<vmem>>, vector<32x96xf32>
    %4 = arith.truncf %0 : vector<8x32xf32> to vector<8x32xbf16>
    %5 = arith.truncf %3 : vector<32x96xf32> to vector<32x96xbf16>
    %cst = arith.constant dense<0.000000e+00> : vector<8x96xf32>
    %6 = tpu.matmul %4, %5, %cst {dimension_numbers = #tpu.dot_dimension_numbers<[1], [0], [0], [1], [0, 0, 1, 1], [], []>} : vector<8x32xbf16>, vector<32x96xbf16>, vector<8x96xf32> -> vector<8x96xf32>
    %c0_6 = arith.constant 0 : index
    %c0_7 = arith.constant 0 : index
    %7 = vector.load %arg4[%c0_6, %c0_7] : memref<1x96xf32, #tpu.memory_space<vmem>>, vector<1x96xf32>
    %8 = vector.broadcast %7 : vector<1x96xf32> to vector<8x96xf32>
    %9 = arith.addf %6, %8 : vector<8x96xf32>
    %cst_8 = arith.constant 0.000000e+00 : f32
    %10 = vector.broadcast %cst_8 : f32 to vector<8x32xf32>
    %cst_9 = arith.constant 0.000000e+00 : f32
    %11 = vector.broadcast %cst_9 : f32 to vector<1x8xf32>
    %12 = vector.extract_strided_slice %9 {offsets = [0, 0], sizes = [8, 8], strides = [1, 1]} : vector<8x96xf32> to vector<8x8xf32>
    %13 = vector.extract_strided_slice %9 {offsets = [0, 32], sizes = [8, 8], strides = [1, 1]} : vector<8x96xf32> to vector<8x8xf32>
    %14 = vector.extract_strided_slice %9 {offsets = [0, 64], sizes = [8, 8], strides = [1, 1]} : vector<8x96xf32> to vector<8x8xf32>
    %15 = arith.truncf %12 : vector<8x8xf32> to vector<8x8xbf16>
    %16 = arith.truncf %13 : vector<8x8xf32> to vector<8x8xbf16>
    %cst_10 = arith.constant dense<0.000000e+00> : vector<8x8xf32>
    %17 = tpu.matmul %15, %16, %cst_10 {dimension_numbers = #tpu.dot_dimension_numbers<[1], [1], [0], [0], [0, 0, 1, 0], [], []>} : vector<8x8xbf16>, vector<8x8xbf16>, vector<8x8xf32> -> vector<8x8xf32>
    %cst_11 = arith.constant 0.353553385 : f32
    %18 = vector.broadcast %cst_11 : f32 to vector<8x8xf32>
    %19 = arith.mulf %17, %18 : vector<8x8xf32>
    %20 = vector.broadcast %2 : vector<1x8xf32> to vector<8x8xf32>
    %21 = arith.addf %19, %20 : vector<8x8xf32>
    %cst_12 = arith.constant dense<0xFF800000> : vector<8xf32>
    %22 = vector.multi_reduction <maximumf>, %21, %cst_12 [1] : vector<8x8xf32> to vector<8xf32>
    %23 = vector.shape_cast %22 : vector<8xf32> to vector<8x1xf32>
    %24 = vector.broadcast %23 : vector<8x1xf32> to vector<8x8xf32>
    %25 = arith.subf %21, %24 : vector<8x8xf32>
    %26 = math.exp %25 : vector<8x8xf32>
    %cst_13 = arith.constant dense<0.000000e+00> : vector<8xf32>
    %27 = vector.multi_reduction <add>, %26, %cst_13 [1] : vector<8x8xf32> to vector<8xf32>
    %28 = vector.shape_cast %27 : vector<8xf32> to vector<8x1xf32>
    %29 = tpu.reciprocal %28 {approx = true} : vector<8x1xf32> -> vector<8x1xf32>
    %30 = vector.broadcast %29 : vector<8x1xf32> to vector<8x8xf32>
    %31 = arith.mulf %26, %30 : vector<8x8xf32>
    %32 = vector.extract_strided_slice %31 {offsets = [0, 0], sizes = [1, 8], strides = [1, 1]} : vector<8x8xf32> to vector<1x8xf32>
    %33 = arith.addf %11, %32 : vector<1x8xf32>
    %34 = arith.truncf %31 : vector<8x8xf32> to vector<8x8xbf16>
    %35 = arith.truncf %14 : vector<8x8xf32> to vector<8x8xbf16>
    %cst_14 = arith.constant dense<0.000000e+00> : vector<8x8xf32>
    %36 = tpu.matmul %34, %35, %cst_14 {dimension_numbers = #tpu.dot_dimension_numbers<[1], [0], [0], [1], [0, 0, 1, 1], [], []>} : vector<8x8xbf16>, vector<8x8xbf16>, vector<8x8xf32> -> vector<8x8xf32>
    %c0_15 = arith.constant 0 : index
    %c0_16 = arith.constant 0 : index
    %37 = vector.load %arg5[%c0_15, %c0_16] : memref<32x32xf32, #tpu.memory_space<vmem>>, vector<8x32xf32>
    %38 = arith.truncf %36 : vector<8x8xf32> to vector<8x8xbf16>
    %39 = arith.truncf %37 : vector<8x32xf32> to vector<8x32xbf16>
    %cst_17 = arith.constant dense<0.000000e+00> : vector<8x32xf32>
    %40 = tpu.matmul %38, %39, %cst_17 {dimension_numbers = #tpu.dot_dimension_numbers<[1], [0], [0], [1], [0, 0, 1, 1], [], []>} : vector<8x8xbf16>, vector<8x32xbf16>, vector<8x32xf32> -> vector<8x32xf32>
    %41 = arith.addf %10, %40 : vector<8x32xf32>
    %42 = vector.extract_strided_slice %9 {offsets = [0, 8], sizes = [8, 8], strides = [1, 1]} : vector<8x96xf32> to vector<8x8xf32>
    %43 = vector.extract_strided_slice %9 {offsets = [0, 40], sizes = [8, 8], strides = [1, 1]} : vector<8x96xf32> to vector<8x8xf32>
    %44 = vector.extract_strided_slice %9 {offsets = [0, 72], sizes = [8, 8], strides = [1, 1]} : vector<8x96xf32> to vector<8x8xf32>
    %45 = arith.truncf %42 : vector<8x8xf32> to vector<8x8xbf16>
    %46 = arith.truncf %43 : vector<8x8xf32> to vector<8x8xbf16>
    %cst_18 = arith.constant dense<0.000000e+00> : vector<8x8xf32>
    %47 = tpu.matmul %45, %46, %cst_18 {dimension_numbers = #tpu.dot_dimension_numbers<[1], [1], [0], [0], [0, 0, 1, 0], [], []>} : vector<8x8xbf16>, vector<8x8xbf16>, vector<8x8xf32> -> vector<8x8xf32>
    %cst_19 = arith.constant 0.353553385 : f32
    %48 = vector.broadcast %cst_19 : f32 to vector<8x8xf32>
    %49 = arith.mulf %47, %48 : vector<8x8xf32>
    %50 = vector.broadcast %2 : vector<1x8xf32> to vector<8x8xf32>
    %51 = arith.addf %49, %50 : vector<8x8xf32>
    %cst_20 = arith.constant dense<0xFF800000> : vector<8xf32>
    %52 = vector.multi_reduction <maximumf>, %51, %cst_20 [1] : vector<8x8xf32> to vector<8xf32>
    %53 = vector.shape_cast %52 : vector<8xf32> to vector<8x1xf32>
    %54 = vector.broadcast %53 : vector<8x1xf32> to vector<8x8xf32>
    %55 = arith.subf %51, %54 : vector<8x8xf32>
    %56 = math.exp %55 : vector<8x8xf32>
    %cst_21 = arith.constant dense<0.000000e+00> : vector<8xf32>
    %57 = vector.multi_reduction <add>, %56, %cst_21 [1] : vector<8x8xf32> to vector<8xf32>
    %58 = vector.shape_cast %57 : vector<8xf32> to vector<8x1xf32>
    %59 = tpu.reciprocal %58 {approx = true} : vector<8x1xf32> -> vector<8x1xf32>
    %60 = vector.broadcast %59 : vector<8x1xf32> to vector<8x8xf32>
    %61 = arith.mulf %56, %60 : vector<8x8xf32>
    %62 = vector.extract_strided_slice %61 {offsets = [0, 0], sizes = [1, 8], strides = [1, 1]} : vector<8x8xf32> to vector<1x8xf32>
    %63 = arith.addf %33, %62 : vector<1x8xf32>
    %64 = arith.truncf %61 : vector<8x8xf32> to vector<8x8xbf16>
    %65 = arith.truncf %44 : vector<8x8xf32> to vector<8x8xbf16>
    %cst_22 = arith.constant dense<0.000000e+00> : vector<8x8xf32>
    %66 = tpu.matmul %64, %65, %cst_22 {dimension_numbers = #tpu.dot_dimension_numbers<[1], [0], [0], [1], [0, 0, 1, 1], [], []>} : vector<8x8xbf16>, vector<8x8xbf16>, vector<8x8xf32> -> vector<8x8xf32>
    %c8 = arith.constant 8 : index
    %c0_23 = arith.constant 0 : index
    %67 = vector.load %arg5[%c8, %c0_23] : memref<32x32xf32, #tpu.memory_space<vmem>>, vector<8x32xf32>
    %68 = arith.truncf %66 : vector<8x8xf32> to vector<8x8xbf16>
    %69 = arith.truncf %67 : vector<8x32xf32> to vector<8x32xbf16>
    %cst_24 = arith.constant dense<0.000000e+00> : vector<8x32xf32>
    %70 = tpu.matmul %68, %69, %cst_24 {dimension_numbers = #tpu.dot_dimension_numbers<[1], [0], [0], [1], [0, 0, 1, 1], [], []>} : vector<8x8xbf16>, vector<8x32xbf16>, vector<8x32xf32> -> vector<8x32xf32>
    %71 = arith.addf %41, %70 : vector<8x32xf32>
    %72 = vector.extract_strided_slice %9 {offsets = [0, 16], sizes = [8, 8], strides = [1, 1]} : vector<8x96xf32> to vector<8x8xf32>
    %73 = vector.extract_strided_slice %9 {offsets = [0, 48], sizes = [8, 8], strides = [1, 1]} : vector<8x96xf32> to vector<8x8xf32>
    %74 = vector.extract_strided_slice %9 {offsets = [0, 80], sizes = [8, 8], strides = [1, 1]} : vector<8x96xf32> to vector<8x8xf32>
    %75 = arith.truncf %72 : vector<8x8xf32> to vector<8x8xbf16>
    %76 = arith.truncf %73 : vector<8x8xf32> to vector<8x8xbf16>
    %cst_25 = arith.constant dense<0.000000e+00> : vector<8x8xf32>
    %77 = tpu.matmul %75, %76, %cst_25 {dimension_numbers = #tpu.dot_dimension_numbers<[1], [1], [0], [0], [0, 0, 1, 0], [], []>} : vector<8x8xbf16>, vector<8x8xbf16>, vector<8x8xf32> -> vector<8x8xf32>
    %cst_26 = arith.constant 0.353553385 : f32
    %78 = vector.broadcast %cst_26 : f32 to vector<8x8xf32>
    %79 = arith.mulf %77, %78 : vector<8x8xf32>
    %80 = vector.broadcast %2 : vector<1x8xf32> to vector<8x8xf32>
    %81 = arith.addf %79, %80 : vector<8x8xf32>
    %cst_27 = arith.constant dense<0xFF800000> : vector<8xf32>
    %82 = vector.multi_reduction <maximumf>, %81, %cst_27 [1] : vector<8x8xf32> to vector<8xf32>
    %83 = vector.shape_cast %82 : vector<8xf32> to vector<8x1xf32>
    %84 = vector.broadcast %83 : vector<8x1xf32> to vector<8x8xf32>
    %85 = arith.subf %81, %84 : vector<8x8xf32>
    %86 = math.exp %85 : vector<8x8xf32>
    %cst_28 = arith.constant dense<0.000000e+00> : vector<8xf32>
    %87 = vector.multi_reduction <add>, %86, %cst_28 [1] : vector<8x8xf32> to vector<8xf32>
    %88 = vector.shape_cast %87 : vector<8xf32> to vector<8x1xf32>
    %89 = tpu.reciprocal %88 {approx = true} : vector<8x1xf32> -> vector<8x1xf32>
    %90 = vector.broadcast %89 : vector<8x1xf32> to vector<8x8xf32>
    %91 = arith.mulf %86, %90 : vector<8x8xf32>
    %92 = vector.extract_strided_slice %91 {offsets = [0, 0], sizes = [1, 8], strides = [1, 1]} : vector<8x8xf32> to vector<1x8xf32>
    %93 = arith.addf %63, %92 : vector<1x8xf32>
    %94 = arith.truncf %91 : vector<8x8xf32> to vector<8x8xbf16>
    %95 = arith.truncf %74 : vector<8x8xf32> to vector<8x8xbf16>
    %cst_29 = arith.constant dense<0.000000e+00> : vector<8x8xf32>
    %96 = tpu.matmul %94, %95, %cst_29 {dimension_numbers = #tpu.dot_dimension_numbers<[1], [0], [0], [1], [0, 0, 1, 1], [], []>} : vector<8x8xbf16>, vector<8x8xbf16>, vector<8x8xf32> -> vector<8x8xf32>
    %c16 = arith.constant 16 : index
    %c0_30 = arith.constant 0 : index
    %97 = vector.load %arg5[%c16, %c0_30] : memref<32x32xf32, #tpu.memory_space<vmem>>, vector<8x32xf32>
    %98 = arith.truncf %96 : vector<8x8xf32> to vector<8x8xbf16>
    %99 = arith.truncf %97 : vector<8x32xf32> to vector<8x32xbf16>
    %cst_31 = arith.constant dense<0.000000e+00> : vector<8x32xf32>
    %100 = tpu.matmul %98, %99, %cst_31 {dimension_numbers = #tpu.dot_dimension_numbers<[1], [0], [0], [1], [0, 0, 1, 1], [], []>} : vector<8x8xbf16>, vector<8x32xbf16>, vector<8x32xf32> -> vector<8x32xf32>
    %101 = arith.addf %71, %100 : vector<8x32xf32>
    %102 = vector.extract_strided_slice %9 {offsets = [0, 24], sizes = [8, 8], strides = [1, 1]} : vector<8x96xf32> to vector<8x8xf32>
    %103 = vector.extract_strided_slice %9 {offsets = [0, 56], sizes = [8, 8], strides = [1, 1]} : vector<8x96xf32> to vector<8x8xf32>
    %104 = vector.extract_strided_slice %9 {offsets = [0, 88], sizes = [8, 8], strides = [1, 1]} : vector<8x96xf32> to vector<8x8xf32>
    %105 = arith.truncf %102 : vector<8x8xf32> to vector<8x8xbf16>
    %106 = arith.truncf %103 : vector<8x8xf32> to vector<8x8xbf16>
    %cst_32 = arith.constant dense<0.000000e+00> : vector<8x8xf32>
    %107 = tpu.matmul %105, %106, %cst_32 {dimension_numbers = #tpu.dot_dimension_numbers<[1], [1], [0], [0], [0, 0, 1, 0], [], []>} : vector<8x8xbf16>, vector<8x8xbf16>, vector<8x8xf32> -> vector<8x8xf32>
    %cst_33 = arith.constant 0.353553385 : f32
    %108 = vector.broadcast %cst_33 : f32 to vector<8x8xf32>
    %109 = arith.mulf %107, %108 : vector<8x8xf32>
    %110 = vector.broadcast %2 : vector<1x8xf32> to vector<8x8xf32>
    %111 = arith.addf %109, %110 : vector<8x8xf32>
    %cst_34 = arith.constant dense<0xFF800000> : vector<8xf32>
    %112 = vector.multi_reduction <maximumf>, %111, %cst_34 [1] : vector<8x8xf32> to vector<8xf32>
    %113 = vector.shape_cast %112 : vector<8xf32> to vector<8x1xf32>
    %114 = vector.broadcast %113 : vector<8x1xf32> to vector<8x8xf32>
    %115 = arith.subf %111, %114 : vector<8x8xf32>
    %116 = math.exp %115 : vector<8x8xf32>
    %cst_35 = arith.constant dense<0.000000e+00> : vector<8xf32>
    %117 = vector.multi_reduction <add>, %116, %cst_35 [1] : vector<8x8xf32> to vector<8xf32>
    %118 = vector.shape_cast %117 : vector<8xf32> to vector<8x1xf32>
    %119 = tpu.reciprocal %118 {approx = true} : vector<8x1xf32> -> vector<8x1xf32>
    %120 = vector.broadcast %119 : vector<8x1xf32> to vector<8x8xf32>
    %121 = arith.mulf %116, %120 : vector<8x8xf32>
    %122 = vector.extract_strided_slice %121 {offsets = [0, 0], sizes = [1, 8], strides = [1, 1]} : vector<8x8xf32> to vector<1x8xf32>
    %123 = arith.addf %93, %122 : vector<1x8xf32>
    %124 = arith.truncf %121 : vector<8x8xf32> to vector<8x8xbf16>
    %125 = arith.truncf %104 : vector<8x8xf32> to vector<8x8xbf16>
    %cst_36 = arith.constant dense<0.000000e+00> : vector<8x8xf32>
    %126 = tpu.matmul %124, %125, %cst_36 {dimension_numbers = #tpu.dot_dimension_numbers<[1], [0], [0], [1], [0, 0, 1, 1], [], []>} : vector<8x8xbf16>, vector<8x8xbf16>, vector<8x8xf32> -> vector<8x8xf32>
    %c24 = arith.constant 24 : index
    %c0_37 = arith.constant 0 : index
    %127 = vector.load %arg5[%c24, %c0_37] : memref<32x32xf32, #tpu.memory_space<vmem>>, vector<8x32xf32>
    %128 = arith.truncf %126 : vector<8x8xf32> to vector<8x8xbf16>
    %129 = arith.truncf %127 : vector<8x32xf32> to vector<8x32xbf16>
    %cst_38 = arith.constant dense<0.000000e+00> : vector<8x32xf32>
    %130 = tpu.matmul %128, %129, %cst_38 {dimension_numbers = #tpu.dot_dimension_numbers<[1], [0], [0], [1], [0, 0, 1, 1], [], []>} : vector<8x8xbf16>, vector<8x32xbf16>, vector<8x32xf32> -> vector<8x32xf32>
    %131 = arith.addf %101, %130 : vector<8x32xf32>
    %cst_39 = arith.constant 2.500000e-01 : f32
    %132 = vector.broadcast %cst_39 : f32 to vector<1x8xf32>
    %133 = arith.mulf %123, %132 : vector<1x8xf32>
    %c0_40 = arith.constant 0 : index
    %c0_41 = arith.constant 0 : index
    %c0_42 = arith.constant 0 : index
    %134 = vector.load %arg16[%c0_40, %c0_41, %c0_42] : memref<1x1x8xf32, #tpu.memory_space<vmem>>, vector<1x1x8xf32>
    %135 = vector.shape_cast %134 : vector<1x1x8xf32> to vector<1x8xf32>
    %136 = vector.shape_cast %133 : vector<1x8xf32> to vector<1x1x8xf32>
    tpu.vector_store %arg16[%c0_40, %c0_41, %c0_42], %136 {strides = array<i32>} : memref<1x1x8xf32, #tpu.memory_space<vmem>>, vector<1x1x8xf32>,
    %c0_43 = arith.constant 0 : index
    %c0_44 = arith.constant 0 : index
    %137 = vector.load %arg6[%c0_43, %c0_44] : memref<1x32xf32, #tpu.memory_space<vmem>>, vector<1x32xf32>
    %138 = vector.broadcast %137 : vector<1x32xf32> to vector<8x32xf32>
    %139 = arith.addf %131, %138 : vector<8x32xf32>
    %140 = arith.addf %139, %0 : vector<8x32xf32>
    %c0_45 = arith.constant 0 : index
    %c0_46 = arith.constant 0 : index
    %141 = vector.load %arg7[%c0_45, %c0_46] : memref<1x32xf32, #tpu.memory_space<vmem>>, vector<1x32xf32>
    %c0_47 = arith.constant 0 : index
    %c0_48 = arith.constant 0 : index
    %142 = vector.load %arg8[%c0_47, %c0_48] : memref<1x32xf32, #tpu.memory_space<vmem>>, vector<1x32xf32>
    %cst_49 = arith.constant dense<0.000000e+00> : vector<8xf32>
    %143 = vector.multi_reduction <add>, %140, %cst_49 [1] : vector<8x32xf32> to vector<8xf32>
    %144 = vector.shape_cast %143 : vector<8xf32> to vector<8x1xf32>
    %cst_50 = arith.constant 3.200000e+01 : f32
    %145 = vector.broadcast %cst_50 : f32 to vector<8x1xf32>
    %146 = arith.divf %144, %145 : vector<8x1xf32>
    %147 = vector.broadcast %146 : vector<8x1xf32> to vector<8x32xf32>
    %148 = arith.subf %140, %147 : vector<8x32xf32>
    %149 = arith.mulf %148, %148 : vector<8x32xf32>
    %cst_51 = arith.constant dense<0.000000e+00> : vector<8xf32>
    %150 = vector.multi_reduction <add>, %149, %cst_51 [1] : vector<8x32xf32> to vector<8xf32>
    %151 = vector.shape_cast %150 : vector<8xf32> to vector<8x1xf32>
    %cst_52 = arith.constant 3.200000e+01 : f32
    %152 = vector.broadcast %cst_52 : f32 to vector<8x1xf32>
    %153 = arith.divf %151, %152 : vector<8x1xf32>
    %154 = vector.broadcast %146 : vector<8x1xf32> to vector<8x32xf32>
    %155 = arith.subf %140, %154 : vector<8x32xf32>
    %cst_53 = arith.constant 9.99999996E-13 : f32
    %156 = vector.broadcast %cst_53 : f32 to vector<8x1xf32>
    %157 = arith.addf %153, %156 : vector<8x1xf32>
    %158 = math.rsqrt %157 : vector<8x1xf32>
    %159 = vector.broadcast %158 : vector<8x1xf32> to vector<8x32xf32>
    %160 = arith.mulf %155, %159 : vector<8x32xf32>
    %161 = vector.broadcast %141 : vector<1x32xf32> to vector<8x32xf32>
    %162 = arith.mulf %160, %161 : vector<8x32xf32>
    %163 = vector.broadcast %142 : vector<1x32xf32> to vector<8x32xf32>
    %164 = arith.addf %162, %163 : vector<8x32xf32>
    %c0_54 = arith.constant 0 : index
    %c0_55 = arith.constant 0 : index
    %165 = vector.load %arg9[%c0_54, %c0_55] : memref<32x64xf32, #tpu.memory_space<vmem>>, vector<32x64xf32>
    %166 = arith.truncf %164 : vector<8x32xf32> to vector<8x32xbf16>
    %167 = arith.truncf %165 : vector<32x64xf32> to vector<32x64xbf16>
    %cst_56 = arith.constant dense<0.000000e+00> : vector<8x64xf32>
    %168 = tpu.matmul %166, %167, %cst_56 {dimension_numbers = #tpu.dot_dimension_numbers<[1], [0], [0], [1], [0, 0, 1, 1], [], []>} : vector<8x32xbf16>, vector<32x64xbf16>, vector<8x64xf32> -> vector<8x64xf32>
    %c0_57 = arith.constant 0 : index
    %c0_58 = arith.constant 0 : index
    %169 = vector.load %arg10[%c0_57, %c0_58] : memref<1x64xf32, #tpu.memory_space<vmem>>, vector<1x64xf32>
    %170 = vector.broadcast %169 : vector<1x64xf32> to vector<8x64xf32>
    %171 = arith.addf %168, %170 : vector<8x64xf32>
    %172 = arith.mulf %171, %171 : vector<8x64xf32>
    %173 = arith.mulf %171, %172 : vector<8x64xf32>
    %cst_59 = arith.constant 4.471500e-02 : f32
    %174 = vector.broadcast %cst_59 : f32 to vector<8x64xf32>
    %175 = arith.mulf %174, %173 : vector<8x64xf32>
    %176 = arith.addf %171, %175 : vector<8x64xf32>
    %cst_60 = arith.constant 0.797884583 : f32
    %177 = vector.broadcast %cst_60 : f32 to vector<8x64xf32>
    %178 = arith.mulf %177, %176 : vector<8x64xf32>
    %179 = math.tanh %178 : vector<8x64xf32>
    %cst_61 = arith.constant 1.000000e+00 : f32
    %180 = vector.broadcast %cst_61 : f32 to vector<8x64xf32>
    %181 = arith.addf %180, %179 : vector<8x64xf32>
    %cst_62 = arith.constant 5.000000e-01 : f32
    %182 = vector.broadcast %cst_62 : f32 to vector<8x64xf32>
    %183 = arith.mulf %182, %181 : vector<8x64xf32>
    %184 = arith.mulf %171, %183 : vector<8x64xf32>
    %c0_63 = arith.constant 0 : index
    %c0_64 = arith.constant 0 : index
    %185 = vector.load %arg11[%c0_63, %c0_64] : memref<64x32xf32, #tpu.memory_space<vmem>>, vector<64x32xf32>
    %186 = arith.truncf %184 : vector<8x64xf32> to vector<8x64xbf16>
    %187 = arith.truncf %185 : vector<64x32xf32> to vector<64x32xbf16>
    %cst_65 = arith.constant dense<0.000000e+00> : vector<8x32xf32>
    %188 = tpu.matmul %186, %187, %cst_65 {dimension_numbers = #tpu.dot_dimension_numbers<[1], [0], [0], [1], [0, 0, 1, 1], [], []>} : vector<8x64xbf16>, vector<64x32xbf16>, vector<8x32xf32> -> vector<8x32xf32>
    %c0_66 = arith.constant 0 : index
    %c0_67 = arith.constant 0 : index
    %189 = vector.load %arg12[%c0_66, %c0_67] : memref<1x32xf32, #tpu.memory_space<vmem>>, vector<1x32xf32>
    %190 = vector.broadcast %189 : vector<1x32xf32> to vector<8x32xf32>
    %191 = arith.addf %188, %190 : vector<8x32xf32>
    %192 = arith.addf %191, %164 : vector<8x32xf32>
    %c0_68 = arith.constant 0 : index
    %c0_69 = arith.constant 0 : index
    %193 = vector.load %arg13[%c0_68, %c0_69] : memref<1x32xf32, #tpu.memory_space<vmem>>, vector<1x32xf32>
    %c0_70 = arith.constant 0 : index
    %c0_71 = arith.constant 0 : index
    %194 = vector.load %arg14[%c0_70, %c0_71] : memref<1x32xf32, #tpu.memory_space<vmem>>, vector<1x32xf32>
    %cst_72 = arith.constant dense<0.000000e+00> : vector<8xf32>
    %195 = vector.multi_reduction <add>, %192, %cst_72 [1] : vector<8x32xf32> to vector<8xf32>
    %196 = vector.shape_cast %195 : vector<8xf32> to vector<8x1xf32>
    %cst_73 = arith.constant 3.200000e+01 : f32
    %197 = vector.broadcast %cst_73 : f32 to vector<8x1xf32>
    %198 = arith.divf %196, %197 : vector<8x1xf32>
    %199 = vector.broadcast %198 : vector<8x1xf32> to vector<8x32xf32>
    %200 = arith.subf %192, %199 : vector<8x32xf32>
    %201 = arith.mulf %200, %200 : vector<8x32xf32>
    %cst_74 = arith.constant dense<0.000000e+00> : vector<8xf32>
    %202 = vector.multi_reduction <add>, %201, %cst_74 [1] : vector<8x32xf32> to vector<8xf32>
    %203 = vector.shape_cast %202 : vector<8xf32> to vector<8x1xf32>
    %cst_75 = arith.constant 3.200000e+01 : f32
    %204 = vector.broadcast %cst_75 : f32 to vector<8x1xf32>
    %205 = arith.divf %203, %204 : vector<8x1xf32>
    %206 = vector.broadcast %198 : vector<8x1xf32> to vector<8x32xf32>
    %207 = arith.subf %192, %206 : vector<8x32xf32>
    %cst_76 = arith.constant 9.99999996E-13 : f32
    %208 = vector.broadcast %cst_76 : f32 to vector<8x1xf32>
    %209 = arith.addf %205, %208 : vector<8x1xf32>
    %210 = math.rsqrt %209 : vector<8x1xf32>
    %211 = vector.broadcast %210 : vector<8x1xf32> to vector<8x32xf32>
    %212 = arith.mulf %207, %211 : vector<8x32xf32>
    %213 = vector.broadcast %193 : vector<1x32xf32> to vector<8x32xf32>
    %214 = arith.mulf %212, %213 : vector<8x32xf32>
    %215 = vector.broadcast %194 : vector<1x32xf32> to vector<8x32xf32>
    %216 = arith.addf %214, %215 : vector<8x32xf32>
    %c0_77 = arith.constant 0 : index
    %c0_78 = arith.constant 0 : index
    %217 = vector.load %arg15[%c0_77, %c0_78] : memref<8x32xf32, #tpu.memory_space<vmem>>, vector<8x32xf32>
    tpu.vector_store %arg15[%c0_77, %c0_78], %216 {strides = array<i32>} : memref<8x32xf32, #tpu.memory_space<vmem>>, vector<8x32xf32>,
    return
  }
  func.func @transform_0(%arg0: i32) -> (i32, i32) {
    %c0_i32 = arith.constant 0 : i32
    %c0_i32_0 = arith.constant 0 : i32
    return %arg0, %c0_i32 : i32, i32
  }
  func.func @transform_1(%arg0: i32) -> (i32, i32, i32) {
    %c0_i32 = arith.constant 0 : i32
    %c0_i32_0 = arith.constant 0 : i32
    %c0_i32_1 = arith.constant 0 : i32
    return %arg0, %c0_i32, %c0_i32_0 : i32, i32, i32
  }
  func.func @transform_2(%arg0: i32) -> (i32, i32) {
    %c0_i32 = arith.constant 0 : i32
    %c0_i32_0 = arith.constant 0 : i32
    %c0_i32_1 = arith.constant 0 : i32
    return %c0_i32, %c0_i32_0 : i32, i32
  }
  func.func @transform_3(%arg0: i32) -> (i32, i32) {
    %c0_i32 = arith.constant 0 : i32
    %c0_i32_0 = arith.constant 0 : i32
    %c0_i32_1 = arith.constant 0 : i32
    return %c0_i32, %c0_i32_0 : i32, i32
  }
  func.func @transform_4(%arg0: i32) -> (i32, i32) {
    %c0_i32 = arith.constant 0 : i32
    %c0_i32_0 = arith.constant 0 : i32
    %c0_i32_1 = arith.constant 0 : i32
    return %c0_i32, %c0_i32_0 : i32, i32
  }
  func.func @transform_5(%arg0: i32) -> (i32, i32) {
    %c0_i32 = arith.constant 0 : i32
    %c0_i32_0 = arith.constant 0 : i32
    %c0_i32_1 = arith.constant 0 : i32
    return %c0_i32, %c0_i32_0 : i32, i32
  }
  func.func @transform_6(%arg0: i32) -> (i32, i32) {
    %c0_i32 = arith.constant 0 : i32
    %c0_i32_0 = arith.constant 0 : i32
    %c0_i32_1 = arith.constant 0 : i32
    return %c0_i32, %c0_i32_0 : i32, i32
  }
  func.func @transform_7(%arg0: i32) -> (i32, i32) {
    %c0_i32 = arith.constant 0 : i32
    %c0_i32_0 = arith.constant 0 : i32
    %c0_i32_1 = arith.constant 0 : i32
    return %c0_i32, %c0_i32_0 : i32, i32
  }
  func.func @transform_8(%arg0: i32) -> (i32, i32) {
    %c0_i32 = arith.constant 0 : i32
    %c0_i32_0 = arith.constant 0 : i32
    %c0_i32_1 = arith.constant 0 : i32
    return %c0_i32, %c0_i32_0 : i32, i32
  }
  func.func @transform_9(%arg0: i32) -> (i32, i32) {
    %c0_i32 = arith.constant 0 : i32
    %c0_i32_0 = arith.constant 0 : i32
    %c0_i32_1 = arith.constant 0 : i32
    return %c0_i32, %c0_i32_0 : i32, i32
  }
  func.func @transform_10(%arg0: i32) -> (i32, i32) {
    %c0_i32 = arith.constant 0 : i32
    %c0_i32_0 = arith.constant 0 : i32
    %c0_i32_1 = arith.constant 0 : i32
    return %c0_i32, %c0_i32_0 : i32, i32
  }
  func.func @transform_11(%arg0: i32) -> (i32, i32) {
    %c0_i32 = arith.constant 0 : i32
    %c0_i32_0 = arith.constant 0 : i32
    %c0_i32_1 = arith.constant 0 : i32
    return %c0_i32, %c0_i32_0 : i32, i32
  }
  func.func @transform_12(%arg0: i32) -> (i32, i32) {
    %c0_i32 = arith.constant 0 : i32
    %c0_i32_0 = arith.constant 0 : i32
    %c0_i32_1 = arith.constant 0 : i32
    return %c0_i32, %c0_i32_0 : i32, i32
  }
  func.func @transform_13(%arg0: i32) -> (i32, i32) {
    %c0_i32 = arith.constant 0 : i32
    %c0_i32_0 = arith.constant 0 : i32
    %c0_i32_1 = arith.constant 0 : i32
    return %c0_i32, %c0_i32_0 : i32, i32
  }
  func.func @transform_14(%arg0: i32) -> (i32, i32) {
    %c0_i32 = arith.constant 0 : i32
    %c0_i32_0 = arith.constant 0 : i32
    return %arg0, %c0_i32 : i32, i32
  }
  func.func @transform_15(%arg0: i32) -> (i32, i32, i32) {
    %c0_i32 = arith.constant 0 : i32
    %c0_i32_0 = arith.constant 0 : i32
    %c0_i32_1 = arith.constant 0 : i32
    return %arg0, %c0_i32, %c0_i32_0 : i32, i32, i32
  }
}

module attributes {stable_mosaic.version = 11 : i64} {
  func.func @_classifier_loss_kernel(%arg0: memref<16x32xf32, #tpu.memory_space<vmem>>, %arg1: memref<32x3xf32, #tpu.memory_space<vmem>>, %arg2: memref<1x3xf32, #tpu.memory_space<vmem>>, %arg3: memref<16x1xi32, #tpu.memory_space<vmem>>, %arg4: memref<2x8xi32, #tpu.memory_space<vmem>>, %arg5: memref<2x8xf32, #tpu.memory_space<vmem>>, %arg6: memref<16x3xf32, #tpu.memory_space<vmem>>, %arg7: memref<1x1xf32, #tpu.memory_space<vmem>>, %arg8: memref<1x1xf32, #tpu.memory_space<vmem>>, %arg9: memref<1x1xf32, #tpu.memory_space<vmem>>) attributes {dimension_semantics = [], scalar_prefetch = 0 : i64, scratch_operands = 0 : i64, tpu.core_type = #tpu.core_type<tc>} {
    %c0 = arith.constant 0 : index
    %c0_0 = arith.constant 0 : index
    %0 = vector.load %arg0[%c0, %c0_0] : memref<16x32xf32, #tpu.memory_space<vmem>>, vector<16x32xf32>
    %c0_1 = arith.constant 0 : index
    %c0_2 = arith.constant 0 : index
    %1 = vector.load %arg1[%c0_1, %c0_2] : memref<32x3xf32, #tpu.memory_space<vmem>>, vector<32x3xf32>
    %2 = arith.truncf %0 : vector<16x32xf32> to vector<16x32xbf16>
    %3 = arith.truncf %1 : vector<32x3xf32> to vector<32x3xbf16>
    %cst = arith.constant dense<0.000000e+00> : vector<16x3xf32>
    %4 = tpu.matmul %2, %3, %cst {dimension_numbers = #tpu.dot_dimension_numbers<[1], [0], [0], [1], [0, 0, 1, 1], [], []>} : vector<16x32xbf16>, vector<32x3xbf16>, vector<16x3xf32> -> vector<16x3xf32>
    %c0_3 = arith.constant 0 : index
    %c0_4 = arith.constant 0 : index
    %5 = vector.load %arg2[%c0_3, %c0_4] : memref<1x3xf32, #tpu.memory_space<vmem>>, vector<1x3xf32>
    %6 = vector.broadcast %5 : vector<1x3xf32> to vector<16x3xf32>
    %7 = arith.addf %4, %6 : vector<16x3xf32>
    %c0_5 = arith.constant 0 : index
    %c0_6 = arith.constant 0 : index
    %8 = vector.load %arg6[%c0_5, %c0_6] : memref<16x3xf32, #tpu.memory_space<vmem>>, vector<16x3xf32>
    tpu.vector_store %arg6[%c0_5, %c0_6], %7 {strides = array<i32>} : memref<16x3xf32, #tpu.memory_space<vmem>>, vector<16x3xf32>,
    %c0_7 = arith.constant 0 : index
    %c0_8 = arith.constant 0 : index
    %9 = vector.load %arg3[%c0_7, %c0_8] : memref<16x1xi32, #tpu.memory_space<vmem>>, vector<16x1xi32>
    %cst_9 = arith.constant dense<0xFF800000> : vector<16xf32>
    %10 = vector.multi_reduction <maximumf>, %7, %cst_9 [1] : vector<16x3xf32> to vector<16xf32>
    %11 = vector.shape_cast %10 : vector<16xf32> to vector<16x1xf32>
    %12 = vector.broadcast %11 : vector<16x1xf32> to vector<16x3xf32>
    %13 = arith.subf %7, %12 : vector<16x3xf32>
    %14 = math.exp %13 : vector<16x3xf32>
    %cst_10 = arith.constant dense<0.000000e+00> : vector<16xf32>
    %15 = vector.multi_reduction <add>, %14, %cst_10 [1] : vector<16x3xf32> to vector<16xf32>
    %16 = vector.shape_cast %15 : vector<16xf32> to vector<16x1xf32>
    %17 = math.log %16 : vector<16x1xf32>
    %18 = arith.addf %17, %11 : vector<16x1xf32>
    %19 = vector.broadcast %18 : vector<16x1xf32> to vector<16x3xf32>
    %20 = arith.subf %7, %19 : vector<16x3xf32>
    %21 = tpu.iota {dimensions = array<i32: 1>} : vector<16x3xi32>
    %22 = vector.broadcast %9 : vector<16x1xi32> to vector<16x3xi32>
    %23 = arith.cmpi eq, %21, %22 : vector<16x3xi32>
    %24 = arith.extui %23 : vector<16x3xi1> to vector<16x3xi32>
    %25 = arith.sitofp %24 : vector<16x3xi32> to vector<16x3xf32>
    %26 = arith.mulf %25, %20 : vector<16x3xf32>
    %cst_11 = arith.constant dense<0.000000e+00> : vector<16xf32>
    %27 = vector.multi_reduction <add>, %26, %cst_11 [1] : vector<16x3xf32> to vector<16xf32>
    %28 = vector.shape_cast %27 : vector<16xf32> to vector<16x1xf32>
    %c-100_i32 = arith.constant -100 : i32
    %29 = vector.broadcast %c-100_i32 : i32 to vector<16x1xi32>
    %30 = arith.cmpi ne, %9, %29 : vector<16x1xi32>
    %31 = arith.extui %30 : vector<16x1xi1> to vector<16x1xi32>
    %32 = arith.sitofp %31 : vector<16x1xi32> to vector<16x1xf32>
    %cst_12 = arith.constant 0.000000e+00 : f32
    %33 = vector.broadcast %cst_12 : f32 to vector<16x1xf32>
    %34 = arith.subf %33, %28 : vector<16x1xf32>
    %35 = arith.mulf %34, %32 : vector<16x1xf32>
    %cst_13 = arith.constant dense<0.000000e+00> : vector<1xf32>
    %36 = vector.multi_reduction <add>, %35, %cst_13 [0] : vector<16x1xf32> to vector<1xf32>
    %37 = vector.shape_cast %36 : vector<1xf32> to vector<1x1xf32>
    %cst_14 = arith.constant dense<0.000000e+00> : vector<1xf32>
    %38 = vector.multi_reduction <add>, %32, %cst_14 [0] : vector<16x1xf32> to vector<1xf32>
    %39 = vector.shape_cast %38 : vector<1xf32> to vector<1x1xf32>
    %40 = arith.divf %37, %39 : vector<1x1xf32>
    %c0_15 = arith.constant 0 : index
    %c0_16 = arith.constant 0 : index
    %41 = vector.load %arg5[%c0_15, %c0_16] : memref<2x8xf32, #tpu.memory_space<vmem>>, vector<2x8xf32>
    %c0_17 = arith.constant 0 : index
    %c0_18 = arith.constant 0 : index
    %42 = vector.load %arg4[%c0_17, %c0_18] : memref<2x8xi32, #tpu.memory_space<vmem>>, vector<2x8xi32>
    %c1_i32 = arith.constant 1 : i32
    %43 = vector.broadcast %c1_i32 : i32 to vector<2x8xi32>
    %44 = arith.cmpi eq, %42, %43 : vector<2x8xi32>
    %c2_i32 = arith.constant 2 : i32
    %45 = vector.broadcast %c2_i32 : i32 to vector<2x8xi32>
    %46 = arith.cmpi eq, %42, %45 : vector<2x8xi32>
    %47 = arith.ori %44, %46 : vector<2x8xi1>
    %48 = arith.extui %47 : vector<2x8xi1> to vector<2x8xi32>
    %49 = arith.sitofp %48 : vector<2x8xi32> to vector<2x8xf32>
    %cst_19 = arith.constant dense<0.000000e+00> : vector<2xf32>
    %50 = vector.multi_reduction <add>, %41, %cst_19 [1] : vector<2x8xf32> to vector<2xf32>
    %51 = vector.shape_cast %50 : vector<2xf32> to vector<2x1xf32>
    %cst_20 = arith.constant 9.99999993E-9 : f32
    %52 = vector.broadcast %cst_20 : f32 to vector<2x1xf32>
    %53 = arith.addf %51, %52 : vector<2x1xf32>
    %54 = vector.broadcast %53 : vector<2x1xf32> to vector<2x8xf32>
    %55 = arith.divf %41, %54 : vector<2x8xf32>
    %cst_21 = arith.constant dense<0.000000e+00> : vector<2xf32>
    %56 = vector.multi_reduction <add>, %49, %cst_21 [1] : vector<2x8xf32> to vector<2xf32>
    %57 = vector.shape_cast %56 : vector<2xf32> to vector<2x1xf32>
    %cst_22 = arith.constant 9.99999993E-9 : f32
    %58 = vector.broadcast %cst_22 : f32 to vector<2x1xf32>
    %59 = arith.addf %57, %58 : vector<2x1xf32>
    %60 = vector.broadcast %59 : vector<2x1xf32> to vector<2x8xf32>
    %61 = arith.divf %49, %60 : vector<2x8xf32>
    %62 = math.log %55 : vector<2x8xf32>
    %cst_23 = arith.constant 0.000000e+00 : f32
    %63 = vector.broadcast %cst_23 : f32 to vector<2x8xf32>
    %64 = arith.cmpf ogt, %61, %63 : vector<2x8xf32>
    %cst_24 = arith.constant 1.000000e+00 : f32
    %65 = vector.broadcast %cst_24 : f32 to vector<2x8xf32>
    %66 = arith.select %64, %61, %65 : vector<2x8xi1>, vector<2x8xf32>
    %cst_25 = arith.constant 0.000000e+00 : f32
    %67 = vector.broadcast %cst_25 : f32 to vector<2x8xf32>
    %68 = arith.cmpf ogt, %61, %67 : vector<2x8xf32>
    %69 = math.log %66 : vector<2x8xf32>
    %70 = arith.subf %69, %62 : vector<2x8xf32>
    %71 = arith.mulf %61, %70 : vector<2x8xf32>
    %cst_26 = arith.constant 0.000000e+00 : f32
    %72 = vector.broadcast %cst_26 : f32 to vector<2x8xf32>
    %73 = arith.select %68, %71, %72 : vector<2x8xi1>, vector<2x8xf32>
    %cst_27 = arith.constant dense<0.000000e+00> : vector<2xf32>
    %74 = vector.multi_reduction <add>, %73, %cst_27 [1] : vector<2x8xf32> to vector<2xf32>
    %75 = vector.shape_cast %74 : vector<2xf32> to vector<2x1xf32>
    %cst_28 = arith.constant dense<0.000000e+00> : vector<1xf32>
    %76 = vector.multi_reduction <add>, %75, %cst_28 [0] : vector<2x1xf32> to vector<1xf32>
    %77 = vector.shape_cast %76 : vector<1xf32> to vector<1x1xf32>
    %cst_29 = arith.constant 2.000000e+00 : f32
    %78 = vector.broadcast %cst_29 : f32 to vector<1x1xf32>
    %79 = arith.divf %77, %78 : vector<1x1xf32>
    %cst_30 = arith.constant 1.000000e+00 : f32
    %80 = vector.broadcast %cst_30 : f32 to vector<1x1xf32>
    %81 = arith.mulf %80, %79 : vector<1x1xf32>
    %82 = arith.addf %40, %81 : vector<1x1xf32>
    %c0_31 = arith.constant 0 : index
    %c0_32 = arith.constant 0 : index
    %83 = vector.load %arg7[%c0_31, %c0_32] : memref<1x1xf32, #tpu.memory_space<vmem>>, vector<1x1xf32>
    tpu.vector_store %arg7[%c0_31, %c0_32], %82 {strides = array<i32>} : memref<1x1xf32, #tpu.memory_space<vmem>>, vector<1x1xf32>,
    %c0_33 = arith.constant 0 : index
    %c0_34 = arith.constant 0 : index
    %84 = vector.load %arg8[%c0_33, %c0_34] : memref<1x1xf32, #tpu.memory_space<vmem>>, vector<1x1xf32>
    tpu.vector_store %arg8[%c0_33, %c0_34], %40 {strides = array<i32>} : memref<1x1xf32, #tpu.memory_space<vmem>>, vector<1x1xf32>,
    %c0_35 = arith.constant 0 : index
    %c0_36 = arith.constant 0 : index
    %85 = vector.load %arg9[%c0_35, %c0_36] : memref<1x1xf32, #tpu.memory_space<vmem>>, vector<1x1xf32>
    tpu.vector_store %arg9[%c0_35, %c0_36], %79 {strides = array<i32>} : memref<1x1xf32, #tpu.memory_space<vmem>>, vector<1x1xf32>,
    return
  }
}

</mosaic_0001>

<llo_original>
// kernel: forward.4
$region0: #{forward.4}
  #allocation0 [shape = 'u32[]', space=smem, size = 0x4, offset = 0x4, fixed_abs, tag = 'smem constant byte address 0x4 - core index']
  #allocation1 [shape = 'u32[72,128]{1,0:T(1,128)}', space=vmem, size = 0x9000, scoped, tag = 'internal scratch']
  %s0 = inlined_call_operand.vmem [shape: f32[16,32], index: 0, kind: input, shape index: {}]
  %s1 = inlined_call_operand.vmem [shape: f32[1,32], index: 1, kind: input, shape index: {}]
  %s2 = inlined_call_operand.vmem [shape: f32[1,32], index: 2, kind: input, shape index: {}]
  %s3 = inlined_call_operand.vmem [shape: f32[16,32], index: 3, kind: output, shape index: {}]
  %s4 = sld [smem:[#allocation0]]
  $region45: #{forward.4} parent=0
    _
  %s6 = ssub.s32 1, %s4
  %s7 = scalar_select 0, %s6, %s4
  loop: start=0, step=1, limit=4
  $region2: #{forward.4} parent=0 // loop_pre_header
    _
  $region3: #{forward.4} parent=0 // loop_header
    %s9 = sphi 0, %s13
    %p10 = scmp.ge.s32.totalorder %s9, 4
    %s19 = sphi 0, %s21
    %s22 = sphi 0, %s19
    %s23 = sphi 0, %s22
    %s39 = sphi 0, %s23
    %s43 = sphi 0, %s43
    %s45 = sphi 0, %s43
    %s46 = sphi 0, %s45
    %s60 = sphi 0, %s46
    %s64 = sphi 0, %s64
    %s66 = sphi 0, %s64
    %s67 = sphi 0, %s66
    %s81 = sphi 0, %s67
    %s87 = sphi 0, %s89
    %s90 = sphi 0, %s87
    %s91 = sphi 0, %s90
    %s107 = sphi 0, %s91
  $region4: #{forward.4} parent=0 // loop_header_branch
    %12 = sbr.rel (%p10) target = $region8
  $region5: #{forward.4} parent=0 // loop_body
    %s14 = ssub.s32 %s9, 1
    %s15 = ssub.s32 %s9, 2
    %s16 = sadd.s32 %s9, 1
    %s17 = ssub.s32 %s9, %s16
    %p18 = scmp.eq.s32.totalorder %s17, 0
    %s20 = sadd.s32 %s19, 1
    %s21 = scalar_select %p18, %s19, %s20
    %p24 = pneg %p18
    %p25 = scmp.eq.s32.totalorder %s9, 1
    %p26 = por %p24, %p25
    %p27 = scmp.ne.s32.totalorder %s19, %s22
    %p28 = scmp.eq.s32.totalorder %s9, 0
    %p29 = por %p27, %p28
    %p30 = scmp.ne.s32.totalorder %s19, %s22
    %p31 = scmp.eq.s32.totalorder %s14, 1
    %p32 = por %p30, %p31
    %p33 = scmp.ne.s32.totalorder %s22, %s23
    %p34 = scmp.eq.s32.totalorder %s14, 0
    %p35 = por %p33, %p34
    %p36 = scmp.ne.s32.totalorder %s22, %s23
    %p37 = scmp.eq.s32.totalorder %s15, 1
    %p38 = por %p36, %p37
    %p40 = scmp.ne.s32.totalorder %s23, %s39
    %p41 = scmp.eq.s32.totalorder %s15, 0
    %p42 = por %p40, %p41
    %s44 = sadd.s32 %s43, 1
    %p47 = scmp.eq.s32.totalorder %s9, 1
    %p48 = scmp.ne.s32.totalorder %s43, %s45
    %p49 = scmp.eq.s32.totalorder %s9, 0
    %p50 = por %p48, %p49
    %p51 = scmp.ne.s32.totalorder %s43, %s45
    %p52 = scmp.eq.s32.totalorder %s14, 1
    %p53 = por %p51, %p52
    %p54 = scmp.ne.s32.totalorder %s45, %s46
    %p55 = scmp.eq.s32.totalorder %s14, 0
    %p56 = por %p54, %p55
    %p57 = scmp.ne.s32.totalorder %s45, %s46
    %p58 = scmp.eq.s32.totalorder %s15, 1
    %p59 = por %p57, %p58
    %p61 = scmp.ne.s32.totalorder %s46, %s60
    %p62 = scmp.eq.s32.totalorder %s15, 0
    %p63 = por %p61, %p62
    %s65 = sadd.s32 %s64, 1
    %p68 = scmp.eq.s32.totalorder %s9, 1
    %p69 = scmp.ne.s32.totalorder %s64, %s66
    %p70 = scmp.eq.s32.totalorder %s9, 0
    %p71 = por %p69, %p70
    %p72 = scmp.ne.s32.totalorder %s64, %s66
    %p73 = scmp.eq.s32.totalorder %s14, 1
    %p74 = por %p72, %p73
    %p75 = scmp.ne.s32.totalorder %s66, %s67
    %p76 = scmp.eq.s32.totalorder %s14, 0
    %p77 = por %p75, %p76
    %p78 = scmp.ne.s32.totalorder %s66, %s67
    %p79 = scmp.eq.s32.totalorder %s15, 1
    %p80 = por %p78, %p79
    %p82 = scmp.ne.s32.totalorder %s67, %s81
    %p83 = scmp.eq.s32.totalorder %s15, 0
    %p84 = por %p82, %p83
    %s85 = ssub.s32 %s9, %s16
    %p86 = scmp.eq.s32.totalorder %s85, 0
    %s88 = sadd.s32 %s87, 1
    %s89 = scalar_select %p86, %s87, %s88
    %p92 = pneg %p86
    %p93 = scmp.eq.s32.totalorder %s9, 1
    %p94 = por %p92, %p93
    %p95 = scmp.ne.s32.totalorder %s87, %s90
    %p96 = scmp.eq.s32.totalorder %s9, 0
    %p97 = por %p95, %p96
    %p98 = scmp.ne.s32.totalorder %s87, %s90
    %p99 = scmp.eq.s32.totalorder %s14, 1
    %p100 = por %p98, %p99
    %p101 = scmp.ne.s32.totalorder %s90, %s91
    %p102 = scmp.eq.s32.totalorder %s14, 0
    %p103 = por %p101, %p102
    %p104 = scmp.ne.s32.totalorder %s90, %s91
    %p105 = scmp.eq.s32.totalorder %s15, 1
    %p106 = por %p104, %p105
    %p108 = scmp.ne.s32.totalorder %s91, %s107
    %p109 = scmp.eq.s32.totalorder %s15, 0
    %p110 = por %p108, %p109
    %p111 = scmp.le.s32.totalorder 1, %s9
    %p112 = scmp.lt.s32.totalorder %s9, 3
    %p113 = pnand %p111, %p112
    %p114 = pneg %p113
    // Predicated region
    $region9: #{forward.4} parent=5 // pred_check
      _
    $region10: #{forward.4} parent=5 // pred_check_branch
      %116 = sbr.rel (%p113) target = $region12
    $region11: #{forward.4} parent=5 // pred_region
      %s117 = ssub.s32 %s9, 1
      // Predicated region
      $region13: #{forward.4} parent=11 // pred_check
        %p118 = pneg %p56
      $region14: #{forward.4} parent=11 // pred_check_branch
        %120 = sbr.rel (%p118) target = $region16
      $region15: #{forward.4} parent=11 // pred_region
        _
      $region16: #{forward.4} parent=11 // pred_fallthru
        _
      // Predicated region
      $region17: #{forward.4} parent=11 // pred_check
        %p121 = pneg %p77
      $region18: #{forward.4} parent=11 // pred_check_branch
        %123 = sbr.rel (%p121) target = $region20
      $region19: #{forward.4} parent=11 // pred_region
        _
      $region20: #{forward.4} parent=11 // pred_fallthru
        _
    $region12: #{forward.4} parent=5 // pred_fallthru
      _
    %p124 = scmp.lt.s32.totalorder %s9, 2
    // Predicated region
    $region21: #{forward.4} parent=5 // pred_check
      %p125 = pneg %p124
    $region22: #{forward.4} parent=5 // pred_check_branch
      %127 = sbr.rel (%p125) target = $region24
    $region23: #{forward.4} parent=5 // pred_region
      // Predicated region
      $region25: #{forward.4} parent=23 // pred_check
        %p128 = pneg %p29
      $region26: #{forward.4} parent=23 // pred_check_branch
        %130 = sbr.rel (%p128) target = $region28
      $region27: #{forward.4} parent=23 // pred_region
        %p131 = scmp.lt.s32.totalorder %s9, 1
        %s132 = scalar_select %p131, %s9, 1
        %s133 = smul.addr %s132, 8
        %s134 = scalar_lea.vmem %s0, %s133
      $region28: #{forward.4} parent=23 // pred_fallthru
        _
    $region24: #{forward.4} parent=5 // pred_fallthru
      _
    %p135 = scmp.le.s32.totalorder 1, %s9
    %p136 = scmp.lt.s32.totalorder %s9, 3
    %p137 = pnand %p135, %p136
    %p138 = pneg %p137
    // Predicated region
    $region29: #{forward.4} parent=5 // pred_check
      _
    $region30: #{forward.4} parent=5 // pred_check_branch
      %140 = sbr.rel (%p137) target = $region32
    $region31: #{forward.4} parent=5 // pred_region
      %s141 = ssub.s32 %s9, 1
      %p142 = scmp.lt.s32.totalorder %s14, 1
      %s143 = scalar_select %p142, %s14, 1
      %s144 = smul.addr %s143, 8
      %s145 = scalar_lea.vmem %s0, %s144
      %p146 = pneg %p35
      %p147 = pneg %p32
      %p148 = pneg %p56
      %p149 = pneg %p53
      %p150 = pneg %p77
      %p151 = pneg %p74
      %p152 = pneg %p103
      %p153 = pneg %p100
      %p154 = scmp.lt.s32.totalorder %s14, 1
      %s155 = scalar_select %p154, %s14, 1
      %s156 = smul.addr %s155, 8
      %s157 = scalar_lea.vmem %s3, %s156
      %p158 = scmp.lt.s32.totalorder %s14, 1
      %s159 = scalar_select %p158, %s14, 1
      %s160 = smul.addr %s159, 8
      %s161 = scalar_lea.vmem %s0, %s160
      %p162 = scmp.lt.s32.totalorder %s14, 1
      %s163 = scalar_select %p162, %s14, 1
      %s164 = smul.addr %s163, 8
      %s165 = scalar_lea.vmem %s3, %s164
      %v166 = vld [vmem:[%s161] sm:$0xff]
      %v167 = vld [vmem:[%s1] sm:$0x1]
      %v168 = vld [vmem:[%s2] sm:$0x1]
      %vm169 = vcmask 261120
      %v170 = vsel %vm169, %v166, 0.0
      %171 = vadd.xlane.f32.xlu0 %v170
      %v172 = vpop.xlane.xlu0 %171
      %v173 = vrcp.pop 32.0
      %v174 = vmul.f32 32.0, %v173
      %v175 = vsub.f32 1.0, %v174
      %v176 = vmul.f32 %v173, %v175
      %v177 = vadd.f32 %v173, %v176
      %vm178 = vweird.f32 %v173
      %v179 = vsel %vm178, %v173, %v177
      %v180 = vmul.f32 %v172, %v179
      %v181 = vsub.f32 %v166, %v180
      %v182 = vmul.f32 %v181, %v181
      %v183 = vsel %vm169, %v182, 0.0
      %184 = vadd.xlane.f32.xlu0 %v183
      %v185 = vpop.xlane.xlu0 %184
      %v186 = vmul.f32 %v185, %v179
      %v187 = vadd.f32 %v186, 1e-12
      %v188 = vrsqrt.pop %v187
      %v189 = vmul.f32 %v188, %v187
      %v190 = vmul.f32 %v189, %v188
      %v191 = vmul.f32 0.5, %v190
      %v192 = vsub.f32 1.5, %v191
      %v193 = vmul.f32 %v188, %v192
      %vm194 = vweird.f32 %v187
      %vm195 = vweird.f32 %v188
      %vm196 = vmor %vm194, %vm195
      %v197 = vsel %vm196, %v188, %v193
      %v198 = vmul.f32 %v181, %v197
      %v200 = vperm.slane %v167, 0
      %v202 = vmul.f32 %v198, %v200
      %v204 = vperm.slane %v168, 0
      %v206 = vadd.f32 %v202, %v204
      %207 = vst.msk [vmem:[%s165] sm:$0xff] %vm169, %v206
      %p208 = scmp.lt.s32.totalorder %s14, 1
      %s209 = scalar_select %p208, %s14, 1
      %s210 = smul.addr %s209, 8
      %s211 = scalar_lea.vmem %s3, %s210
      // Predicated region
      $region33: #{forward.4} parent=31 // pred_check
        %p212 = pneg %p100
      $region34: #{forward.4} parent=31 // pred_check_branch
        %214 = sbr.rel (%p212) target = $region36
      $region35: #{forward.4} parent=31 // pred_region
        _
      $region36: #{forward.4} parent=31 // pred_fallthru
        _
    $region32: #{forward.4} parent=5 // pred_fallthru
      _
    %p215 = scmp.le.s32.totalorder 2, %s9
    // Predicated region
    $region37: #{forward.4} parent=5 // pred_check
      %p216 = pneg %p215
    $region38: #{forward.4} parent=5 // pred_check_branch
      %218 = sbr.rel (%p216) target = $region40
    $region39: #{forward.4} parent=5 // pred_region
      %s219 = ssub.s32 %s9, 2
      // Predicated region
      $region41: #{forward.4} parent=39 // pred_check
        %p220 = pneg %p106
      $region42: #{forward.4} parent=39 // pred_check_branch
        %222 = sbr.rel (%p220) target = $region44
      $region43: #{forward.4} parent=39 // pred_region
        %p223 = scmp.lt.s32.totalorder %s15, 1
        %s224 = scalar_select %p223, %s15, 1
        %s225 = smul.addr %s224, 8
        %s226 = scalar_lea.vmem %s3, %s225
      $region44: #{forward.4} parent=39 // pred_fallthru
        _
    $region40: #{forward.4} parent=5 // pred_fallthru
      _
  $region6: #{forward.4} parent=0 // loop_footer
    %s13 = sadd.s32 1, %s9
  $region7: #{forward.4} parent=0 // loop_footer_branch
    %8 = sbr.rel target = $region3
  $region8: #{forward.4} parent=0 // loop_exit
    _

// kernel: forward.7
$region0: #{forward.7}
  #allocation0 [shape = 'u32[]', space=smem, size = 0x4, offset = 0x4, fixed_abs, tag = 'smem constant byte address 0x4 - core index']
  #allocation1 [shape = 'u32[72,128]{1,0:T(1,128)}', space=vmem, size = 0x9000, scoped, tag = 'internal scratch']
  %s0 = inlined_call_operand.vmem [shape: f32[16,32], index: 0, kind: input, shape index: {}]
  %s1 = inlined_call_operand.vmem [shape: f32[32,3], index: 1, kind: input, shape index: {}]
  %s2 = inlined_call_operand.vmem [shape: f32[1,3], index: 2, kind: input, shape index: {}]
  %s3 = inlined_call_operand.vmem [shape: s32[16,1], index: 3, kind: input, shape index: {}]
  %s4 = inlined_call_operand.vmem [shape: s32[2,8], index: 4, kind: input, shape index: {}]
  %s5 = inlined_call_operand.vmem [shape: f32[2,8], index: 5, kind: input, shape index: {}]
  %s6 = inlined_call_operand.vmem [shape: f32[16,3], index: 6, kind: output, shape index: {0}]
  %s7 = inlined_call_operand.hbm [shape: f32[1,1], index: 7, kind: output, shape index: {1}]
  %s8 = inlined_call_operand.hbm [shape: f32[1,1], index: 8, kind: output, shape index: {2}]
  %s9 = inlined_call_operand.hbm [shape: f32[1,1], index: 9, kind: output, shape index: {3}]
  %10 = xla_tuple %s6, %s7, %s8, %s9
  %s11 = sld [smem:[#allocation0]]
  $region58: #{forward.7} parent=0
    _
  %s13 = ssub.s32 1, %s11
  %s14 = scalar_select 0, %s13, %s11
  $region1: #{forward.7} parent=0
    #allocation2 [shape = 'u8[512]{0}', space=vmem, size = 0x400, scoped, tag = 'output window, operand 1, single buffered']
    #allocation3 [shape = 's32[1]{0}', space=sflag, size = 0x4, scoped, tag = 'scoped memory for forward.7']
    #allocation4 [shape = 'u8[512]{0}', space=vmem, size = 0x400, scoped, tag = 'output window, operand 2, single buffered']
    #allocation5 [shape = 's32[1]{0}', space=sflag, size = 0x4, scoped, tag = 'scoped memory for forward.7']
    #allocation6 [shape = 'u8[512]{0}', space=vmem, size = 0x400, scoped, tag = 'output window, operand 3, single buffered']
    %15 = vsyncpa [#allocation3], 0
    %16 = vsyncpa [#allocation5], 0
    // Predicated region
    $region2: #{forward.7} parent=1 // pred_check
      _
    $region3: #{forward.7} parent=1 // pred_check_branch
      %18 = sbr.rel (0) target = $region5
    $region4: #{forward.7} parent=1 // pred_region
      _
    $region5: #{forward.7} parent=1 // pred_fallthru
      _
    // Predicated region
    $region6: #{forward.7} parent=1 // pred_check
      _
    $region7: #{forward.7} parent=1 // pred_check_branch
      %20 = sbr.rel (0) target = $region9
    $region8: #{forward.7} parent=1 // pred_region
      _
    $region9: #{forward.7} parent=1 // pred_fallthru
      _
    // Predicated region
    $region10: #{forward.7} parent=1 // pred_check
      _
    $region11: #{forward.7} parent=1 // pred_check_branch
      %22 = sbr.rel (0) target = $region13
    $region12: #{forward.7} parent=1 // pred_region
      _
    $region13: #{forward.7} parent=1 // pred_fallthru
      _
    // Predicated region
    $region14: #{forward.7} parent=1 // pred_check
      _
    $region15: #{forward.7} parent=1 // pred_check_branch
      %24 = sbr.rel (0) target = $region17
    $region16: #{forward.7} parent=1 // pred_region
      _
    $region17: #{forward.7} parent=1 // pred_fallthru
      _
    // Predicated region
    $region18: #{forward.7} parent=1 // pred_check
      _
    $region19: #{forward.7} parent=1 // pred_check_branch
      %26 = sbr.rel (0) target = $region21
    $region20: #{forward.7} parent=1 // pred_region
      _
    $region21: #{forward.7} parent=1 // pred_fallthru
      _
    // Predicated region
    $region22: #{forward.7} parent=1 // pred_check
      _
    $region23: #{forward.7} parent=1 // pred_check_branch
      %28 = sbr.rel (0) target = $region25
    $region24: #{forward.7} parent=1 // pred_region
      _
    $region25: #{forward.7} parent=1 // pred_fallthru
      _
    %v30 = vld [vmem:[%s0] sm:$0xff]
    %v31 = vld [vmem:[%s0 + $0x8] sm:$0xff]
    %v32 = vld [vmem:[%s1] sm:$0xff]
    %v33 = vld [vmem:[%s1 + $0x8] sm:$0xff]
    %v34 = vld [vmem:[%s1 + $0x10] sm:$0xff]
    %v35 = vld [vmem:[%s1 + $0x18] sm:$0xff]
    %v36 = vpack.c.bf16 %v31, %v30
    %v37 = vpack.c.bf16 %v33, %v32
    %v38 = vpack.c.bf16 %v35, %v34
    %v39 = vld [vmem:[%s2] sm:$0x1]
    %v41 = vperm.slane %v39, 0
    %vm43 = vcmask 261120
    %v45 = vsel %vm43, %v36, 0
    %47 = vmatpush.bf16.msra.mxu0 0
    %48 = vmatpush.bf16.msra.mxu0 0
    %49 = vmatpush.bf16.msra.mxu0 0
    %50 = vmatpush.bf16.msra.mxu0 0
    %51 = vmatpush.bf16.msra.mxu0 0
    %52 = vmatpush.bf16.msra.mxu0 0
    %53 = vmatpush.bf16.msra.mxu0 %v38
    %54 = vmatpush.bf16.msra.mxu0 %v37
    %55 = vmatmul.bf16.gmra.mxu0 %v45
    %v56 = vpop.f32.mrf.mxu0
    %v57 = vadd.f32 %v41, %v56
    %v58 = vpop.f32.mrf.mxu0
    %v59 = vadd.f32 %v41, %v58
    %60 = vdwg.mxu0
    %vm61 = vcmask 23552
    %62 = vst.msk [vmem:[%s6] sm:$0xff] %vm61, %v57
    %63 = vst.msk [vmem:[%s6 + $0x8] sm:$0xff] %vm61, %v59
    %v64 = vld [vmem:[%s3] sm:$0xff]
    %v65 = vld [vmem:[%s3 + $0x8] sm:$0xff]
    %v66 = vsel %vm61, %v57, -inf
    %67 = vmax.xlane.f32.xlu0 %v66
    %v68 = vpop.xlane.xlu0 %67
    %v69 = vsel %vm61, %v59, -inf
    %70 = vmax.xlane.f32.xlu0 %v69
    %v71 = vpop.xlane.xlu0 %70
    %v72 = vsub.f32 %v57, %v68
    %v73 = vsub.f32 %v59, %v71
    %v74 = vmul.f32 %v72, 1.442695
    %v75 = vpow.pop %v74
    %v76 = vmul.f32 %v73, 1.442695
    %v77 = vpow.pop %v76
    %v78 = vsel %vm61, %v75, 0.0
    %79 = vadd.xlane.f32.xlu0 %v78
    %v80 = vpop.xlane.xlu0 %79
    %v81 = vsel %vm61, %v77, 0.0
    %82 = vadd.xlane.f32.xlu0 %v81
    %v83 = vpop.xlane.xlu0 %82
    %v84 = vlog2.pop %v80
    %v85 = vmul.f32 %v84, 0.6931472
    %v86 = vlog2.pop %v83
    %v87 = vmul.f32 %v86, 0.6931472
    %v88 = vadd.f32 %v85, %v68
    %v89 = vadd.f32 %v87, %v71
    %v90 = vsub.f32 %v57, %v88
    %v91 = vsub.f32 %v59, %v89
    %v92 = vlaneseq
    %v93 = vand.u32 %v92, 127
    %94 = vset.pattern.permute.xlu0 0
    %95 = vperm.xlu0 %94, %v64
    %v96 = vpop.permute.xlu0 %95
    %97 = vset.pattern.permute.xlu0 0
    %98 = vperm.xlu0 %97, %v65
    %v99 = vpop.permute.xlu0 %98
    %vm100 = vcmp.eq.s32.totalorder %v93, %v96
    %vm101 = vcmp.eq.s32.totalorder %v93, %v99
    %v102 = vsel %vm100, 1, 0
    %v103 = vsel %vm101, 1, 0
    %v104 = vcvt.s32.f32 %v102
    %v105 = vcvt.s32.f32 %v103
    %v106 = vmul.f32 %v104, %v90
    %v107 = vmul.f32 %v105, %v91
    %v108 = vsel %vm61, %v106, 0.0
    %109 = vadd.xlane.f32.xlu0 %v108
    %v110 = vpop.xlane.xlu0 %109
    %v111 = vsel %vm61, %v107, 0.0
    %112 = vadd.xlane.f32.xlu0 %v111
    %v113 = vpop.xlane.xlu0 %112
    %vm114 = vcmp.ne.s32.totalorder %v64, 4294967196
    %vm115 = vcmp.ne.s32.totalorder %v65, 4294967196
    %v116 = vsel %vm114, 1, 0
    %v117 = vsel %vm115, 1, 0
    %v118 = vcvt.s32.f32 %v116
    %v119 = vcvt.s32.f32 %v117
    %v120 = vsub.f32 0.0, %v110
    %v121 = vsub.f32 0.0, %v113
    %v122 = vmul.f32 %v120, %v118
    %v123 = vmul.f32 %v121, %v119
    %vm124 = vcmask 7168
    %v125 = vsel %vm124, %v122, 0.0
    %v126 = vsel %vm124, %v123, 0.0
    %v127 = vadd.f32 %v125, %v126
    %v128 = vrot.slane %v127, 4
    %v129 = vadd.f32 %v127, %v128
    %v130 = vrot.slane %v129, 2
    %v131 = vadd.f32 %v129, %v130
    %v132 = vrot.slane %v131, 1
    %v133 = vadd.f32 %v131, %v132
    %v134 = vsel %vm124, %v118, 0.0
    %v135 = vsel %vm124, %v119, 0.0
    %v136 = vadd.f32 %v134, %v135
    %v137 = vrot.slane %v136, 4
    %v138 = vadd.f32 %v136, %v137
    %v139 = vrot.slane %v138, 2
    %v140 = vadd.f32 %v138, %v139
    %v141 = vrot.slane %v140, 1
    %v142 = vadd.f32 %v140, %v141
    %v143 = vrcp.pop %v142
    %v144 = vmul.f32 %v142, %v143
    %v145 = vsub.f32 1.0, %v144
    %v146 = vmul.f32 %v143, %v145
    %v147 = vadd.f32 %v143, %v146
    %vm148 = vweird.f32 %v142
    %vm149 = vweird.f32 %v143
    %vm150 = vmor %vm148, %vm149
    %v151 = vsel %vm150, %v143, %v147
    %v152 = vand.u32 2147483647, %v142
    %vm153 = vcmp.eq.f32.partialorder %v152, 8.507059e+37
    %v154 = vand.u32 %v142, 2147483648
    %v155 = vor.u32 1.1754944e-38, %v154
    %v156 = vsel %vm153, %v155, %v151
    %v157 = vmul.f32 %v133, %v156
    %v158 = vld [vmem:[%s5] sm:$0x3]
    %v159 = vld [vmem:[%s4] sm:$0x3]
    %vm160 = vcmp.eq.s32.totalorder %v159, 1
    %vm161 = vcmp.eq.s32.totalorder %v159, 2
    %vm162 = vmor %vm160, %vm161
    %v163 = vsel %vm162, 1, 0
    %v164 = vcvt.s32.f32 %v163
    %vm165 = vcmask 58368
    %v166 = vsel %vm165, %v158, 0.0
    %167 = vadd.xlane.f32.xlu0 %v166
    %v168 = vpop.xlane.xlu0 %167
    %v169 = vadd.f32 %v168, 1e-08
    %v170 = vrcp.pop %v169
    %v171 = vmul.f32 %v169, %v170
    %v172 = vsub.f32 1.0, %v171
    %v173 = vmul.f32 %v170, %v172
    %v174 = vadd.f32 %v170, %v173
    %vm175 = vweird.f32 %v169
    %vm176 = vweird.f32 %v170
    %vm177 = vmor %vm175, %vm176
    %v178 = vsel %vm177, %v170, %v174
    %v179 = vand.u32 2147483647, %v169
    %vm180 = vcmp.eq.f32.partialorder %v179, 8.507059e+37
    %v181 = vand.u32 %v169, 2147483648
    %v182 = vor.u32 1.1754944e-38, %v181
    %v183 = vsel %vm180, %v182, %v178
    %v184 = vmul.f32 %v158, %v183
    %v185 = vsel %vm165, %v164, 0.0
    %186 = vadd.xlane.f32.xlu0 %v185
    %v187 = vpop.xlane.xlu0 %186
    %v188 = vadd.f32 %v187, 1e-08
    %v189 = vrcp.pop %v188
    %v190 = vmul.f32 %v188, %v189
    %v191 = vsub.f32 1.0, %v190
    %v192 = vmul.f32 %v189, %v191
    %v193 = vadd.f32 %v189, %v192
    %vm194 = vweird.f32 %v188
    %vm195 = vweird.f32 %v189
    %vm196 = vmor %vm194, %vm195
    %v197 = vsel %vm196, %v189, %v193
    %v198 = vand.u32 2147483647, %v188
    %vm199 = vcmp.eq.f32.partialorder %v198, 8.507059e+37
    %v200 = vand.u32 %v188, 2147483648
    %v201 = vor.u32 1.1754944e-38, %v200
    %v202 = vsel %vm199, %v201, %v197
    %v203 = vmul.f32 %v164, %v202
    %v204 = vlog2.pop %v184
    %v205 = vmul.f32 %v204, 0.6931472
    %vm206 = vcmp.gt.f32.partialorder %v203, 0.0
    %v207 = vsel %vm206, %v203, 1.0
    %v208 = vlog2.pop %v207
    %v209 = vmul.f32 %v208, 0.6931472
    %v210 = vsub.f32 %v209, %v205
    %v211 = vmul.f32 %v203, %v210
    %v212 = vsel %vm206, %v211, 0.0
    %v213 = vsel %vm165, %v212, 0.0
    %214 = vadd.xlane.f32.xlu0 %v213
    %v215 = vpop.xlane.xlu0 %214
    %vm216 = vcmask 1041408
    %v217 = vsel %vm216, %v215, 0.0
    %v218 = vrot.slane %v217, 4
    %v219 = vadd.f32 %v217, %v218
    %v220 = vrot.slane %v219, 2
    %v221 = vadd.f32 %v219, %v220
    %v222 = vrot.slane %v221, 1
    %v223 = vadd.f32 %v221, %v222
    %v224 = vrcp.pop 2.0
    %v225 = vmul.f32 2.0, %v224
    %v226 = vsub.f32 1.0, %v225
    %v227 = vmul.f32 %v224, %v226
    %v228 = vadd.f32 %v224, %v227
    %vm229 = vweird.f32 %v224
    %v230 = vsel %vm229, %v224, %v228
    %v231 = vmul.f32 %v223, %v230
    %v232 = vadd.f32 %v157, %v231
    %vm233 = vcmask 0
    %234 = vst.msk [vmem:[#allocation2] sm:$0x1] %vm233, %v232
    %235 = vst.msk [vmem:[#allocation4] sm:$0x1] %vm233, %v157
    %236 = vst.msk [vmem:[#allocation6] sm:$0x1] %vm233, %v231
    // Predicated region
    $region26: #{forward.7} parent=1 // pred_check
      _
    $region27: #{forward.7} parent=1 // pred_check_branch
      %238 = sbr.rel (0) target = $region29
    $region28: #{forward.7} parent=1 // pred_region
      _
    $region29: #{forward.7} parent=1 // pred_fallthru
      _
    // Predicated region
    $region30: #{forward.7} parent=1 // pred_check
      _
    $region31: #{forward.7} parent=1 // pred_check_branch
      %240 = sbr.rel (0) target = $region33
    $region32: #{forward.7} parent=1 // pred_region
      %242 = vsyncadd [#allocation3], 0
      %s244 = sshll.u32 [#allocation2], 4
      %s245 = int_to_ptr.vmem [resolvable:$true] %s244
      %s246 = sshll.u32 %s7, 4
      %s247 = int_to_ptr.hbm [resolvable:$true] %s246
      %249 = dma.vmem_to_hbm [thread:$0]  %s245, 16, %s247, [#allocation3]
    $region33: #{forward.7} parent=1 // pred_fallthru
      _
    // Predicated region
    $region34: #{forward.7} parent=1 // pred_check
      _
    $region35: #{forward.7} parent=1 // pred_check_branch
      %251 = sbr.rel (0) target = $region37
    $region36: #{forward.7} parent=1 // pred_region
      %253 = vsyncadd [#allocation5], 0
      %s255 = sshll.u32 [#allocation4], 4
      %s256 = int_to_ptr.vmem [resolvable:$true] %s255
      %s257 = sshll.u32 %s8, 4
      %s258 = int_to_ptr.hbm [resolvable:$true] %s257
      %260 = dma.vmem_to_hbm [thread:$0]  %s256, 16, %s258, [#allocation5]
    $region37: #{forward.7} parent=1 // pred_fallthru
      _
    // Predicated region
    $region38: #{forward.7} parent=1 // pred_check
      _
    $region39: #{forward.7} parent=1 // pred_check_branch
      %262 = sbr.rel (0) target = $region41
    $region40: #{forward.7} parent=1 // pred_region
      %264 = vsyncadd [#allocation5], 0
      %s266 = sshll.u32 [#allocation6], 4
      %s267 = int_to_ptr.vmem [resolvable:$true] %s266
      %s268 = sshll.u32 %s9, 4
      %s269 = int_to_ptr.hbm [resolvable:$true] %s268
      %271 = dma.vmem_to_hbm [thread:$0]  %s267, 16, %s269, [#allocation5]
    $region41: #{forward.7} parent=1 // pred_fallthru
      _
    // Predicated region
    $region42: #{forward.7} parent=1 // pred_check
      _
    $region43: #{forward.7} parent=1 // pred_check_branch
      %273 = sbr.rel (0) target = $region45
    $region44: #{forward.7} parent=1 // pred_region
      _
    $region45: #{forward.7} parent=1 // pred_fallthru
      _
    // Predicated region
    $region46: #{forward.7} parent=1 // pred_check
      _
    $region47: #{forward.7} parent=1 // pred_check_branch
      %275 = sbr.rel (0) target = $region49
    $region48: #{forward.7} parent=1 // pred_region
      %277 = dma.done [#allocation3], 16
    $region49: #{forward.7} parent=1 // pred_fallthru
      _
    // Predicated region
    $region50: #{forward.7} parent=1 // pred_check
      _
    $region51: #{forward.7} parent=1 // pred_check_branch
      %279 = sbr.rel (0) target = $region53
    $region52: #{forward.7} parent=1 // pred_region
      %281 = dma.done [#allocation5], 16
    $region53: #{forward.7} parent=1 // pred_fallthru
      _
    // Predicated region
    $region54: #{forward.7} parent=1 // pred_check
      _
    $region55: #{forward.7} parent=1 // pred_check_branch
      %283 = sbr.rel (0) target = $region57
    $region56: #{forward.7} parent=1 // pred_region
      %285 = dma.done [#allocation5], 16
    $region57: #{forward.7} parent=1 // pred_fallthru
      _
    %286 = vsyncpa [#allocation3], 1
    %287 = vsyncpa [#allocation5], 1

// kernel: forward.5
$region0: #{forward.5}
  #allocation0 [shape = 'u32[]', space=smem, size = 0x4, offset = 0x4, fixed_abs, tag = 'smem constant byte address 0x4 - core index']
  #allocation1 [shape = 'u32[72,128]{1,0:T(1,128)}', space=vmem, size = 0x9000, scoped, tag = 'internal scratch']
  %s0 = inlined_call_operand.vmem [shape: f32[16,32], index: 0, kind: input, shape index: {}]
  %s1 = inlined_call_operand.vmem [shape: f32[2,1,8], index: 1, kind: input, shape index: {}]
  %s2 = inlined_call_operand.vmem [shape: f32[32,96], index: 2, kind: input, shape index: {}]
  %s3 = inlined_call_operand.vmem [shape: f32[1,96], index: 3, kind: input, shape index: {}]
  %s4 = inlined_call_operand.vmem [shape: f32[32,32], index: 4, kind: input, shape index: {}]
  %s5 = inlined_call_operand.vmem [shape: f32[1,32], index: 5, kind: input, shape index: {}]
  %s6 = inlined_call_operand.vmem [shape: f32[1,32], index: 6, kind: input, shape index: {}]
  %s7 = inlined_call_operand.vmem [shape: f32[1,32], index: 7, kind: input, shape index: {}]
  %s8 = inlined_call_operand.vmem [shape: f32[32,64], index: 8, kind: input, shape index: {}]
  %s9 = inlined_call_operand.vmem [shape: f32[1,64], index: 9, kind: input, shape index: {}]
  %s10 = inlined_call_operand.vmem [shape: f32[64,32], index: 10, kind: input, shape index: {}]
  %s11 = inlined_call_operand.vmem [shape: f32[1,32], index: 11, kind: input, shape index: {}]
  %s12 = inlined_call_operand.vmem [shape: f32[1,32], index: 12, kind: input, shape index: {}]
  %s13 = inlined_call_operand.vmem [shape: f32[1,32], index: 13, kind: input, shape index: {}]
  %s14 = inlined_call_operand.vmem [shape: f32[16,32], index: 14, kind: output, shape index: {0}]
  %s15 = inlined_call_operand.hbm [shape: f32[2,1,8], index: 15, kind: output, shape index: {1}]
  %16 = xla_tuple %s14, %s15
  %s17 = sld [smem:[#allocation0]]
  $region97: #{forward.5} parent=0
    _
  %s19 = ssub.s32 1, %s17
  %s20 = scalar_select 0, %s19, %s17
  $region1: #{forward.5} parent=0
    #allocation2 [shape = 'u8[1024]{0}', space=vmem, size = 0x400, scoped, tag = 'output window, operand 1']
    #allocation3 [shape = 's32[2]{0}', space=sflag, size = 0x8, scoped, tag = 'scoped memory for forward.5']
    %21 = vsyncpa [#allocation3], 0
    %s22 = scalar_lea.sflag [#allocation3], 1
    %23 = vsyncpa %s22, 0
    loop: start=0, step=1, limit=4
    $region2: #{forward.5} parent=1 // loop_pre_header
      _
    $region3: #{forward.5} parent=1 // loop_header
      %s25 = sphi 0, %s29
      %p26 = scmp.ge.s32.totalorder %s25, 4
      %s35 = sphi 0, %s37
      %s38 = sphi 0, %s35
      %s39 = sphi 0, %s38
      %s55 = sphi 0, %s39
      %s61 = sphi 0, %s63
      %s64 = sphi 0, %s61
      %s65 = sphi 0, %s64
      %s81 = sphi 0, %s65
      %s85 = sphi 0, %s85
      %s87 = sphi 0, %s85
      %s88 = sphi 0, %s87
      %s102 = sphi 0, %s88
      %s106 = sphi 0, %s106
      %s108 = sphi 0, %s106
      %s109 = sphi 0, %s108
      %s123 = sphi 0, %s109
      %s127 = sphi 0, %s127
      %s129 = sphi 0, %s127
      %s130 = sphi 0, %s129
      %s144 = sphi 0, %s130
      %s148 = sphi 0, %s148
      %s150 = sphi 0, %s148
      %s151 = sphi 0, %s150
      %s165 = sphi 0, %s151
      %s169 = sphi 0, %s169
      %s171 = sphi 0, %s169
      %s172 = sphi 0, %s171
      %s186 = sphi 0, %s172
      %s190 = sphi 0, %s190
      %s192 = sphi 0, %s190
      %s193 = sphi 0, %s192
      %s207 = sphi 0, %s193
      %s211 = sphi 0, %s211
      %s213 = sphi 0, %s211
      %s214 = sphi 0, %s213
      %s228 = sphi 0, %s214
      %s232 = sphi 0, %s232
      %s234 = sphi 0, %s232
      %s235 = sphi 0, %s234
      %s249 = sphi 0, %s235
      %s253 = sphi 0, %s253
      %s255 = sphi 0, %s253
      %s256 = sphi 0, %s255
      %s270 = sphi 0, %s256
      %s274 = sphi 0, %s274
      %s276 = sphi 0, %s274
      %s277 = sphi 0, %s276
      %s291 = sphi 0, %s277
      %s295 = sphi 0, %s295
      %s297 = sphi 0, %s295
      %s298 = sphi 0, %s297
      %s312 = sphi 0, %s298
      %s316 = sphi 0, %s316
      %s318 = sphi 0, %s316
      %s319 = sphi 0, %s318
      %s333 = sphi 0, %s319
      %s339 = sphi 0, %s341
      %s342 = sphi 0, %s339
      %s343 = sphi 0, %s342
      %s359 = sphi 0, %s343
      %s365 = sphi 0, %s367
      %s368 = sphi 0, %s365
      %s369 = sphi 0, %s368
      %s385 = sphi 0, %s369
    $region4: #{forward.5} parent=1 // loop_header_branch
      %28 = sbr.rel (%p26) target = $region8
    $region5: #{forward.5} parent=1 // loop_body
      %s30 = ssub.s32 %s25, 1
      %s31 = ssub.s32 %s25, 2
      %s32 = sadd.s32 %s25, 1
      %s33 = ssub.s32 %s25, %s32
      %p34 = scmp.eq.s32.totalorder %s33, 0
      %s36 = sadd.s32 %s35, 1
      %s37 = scalar_select %p34, %s35, %s36
      %p40 = pneg %p34
      %p41 = scmp.eq.s32.totalorder %s25, 1
      %p42 = por %p40, %p41
      %p43 = scmp.ne.s32.totalorder %s35, %s38
      %p44 = scmp.eq.s32.totalorder %s25, 0
      %p45 = por %p43, %p44
      %p46 = scmp.ne.s32.totalorder %s35, %s38
      %p47 = scmp.eq.s32.totalorder %s30, 1
      %p48 = por %p46, %p47
      %p49 = scmp.ne.s32.totalorder %s38, %s39
      %p50 = scmp.eq.s32.totalorder %s30, 0
      %p51 = por %p49, %p50
      %p52 = scmp.ne.s32.totalorder %s38, %s39
      %p53 = scmp.eq.s32.totalorder %s31, 1
      %p54 = por %p52, %p53
      %p56 = scmp.ne.s32.totalorder %s39, %s55
      %p57 = scmp.eq.s32.totalorder %s31, 0
      %p58 = por %p56, %p57
      %s59 = ssub.s32 %s25, %s32
      %p60 = scmp.eq.s32.totalorder %s59, 0
      %s62 = sadd.s32 %s61, 1
      %s63 = scalar_select %p60, %s61, %s62
      %p66 = pneg %p60
      %p67 = scmp.eq.s32.totalorder %s25, 1
      %p68 = por %p66, %p67
      %p69 = scmp.ne.s32.totalorder %s61, %s64
      %p70 = scmp.eq.s32.totalorder %s25, 0
      %p71 = por %p69, %p70
      %p72 = scmp.ne.s32.totalorder %s61, %s64
      %p73 = scmp.eq.s32.totalorder %s30, 1
      %p74 = por %p72, %p73
      %p75 = scmp.ne.s32.totalorder %s64, %s65
      %p76 = scmp.eq.s32.totalorder %s30, 0
      %p77 = por %p75, %p76
      %p78 = scmp.ne.s32.totalorder %s64, %s65
      %p79 = scmp.eq.s32.totalorder %s31, 1
      %p80 = por %p78, %p79
      %p82 = scmp.ne.s32.totalorder %s65, %s81
      %p83 = scmp.eq.s32.totalorder %s31, 0
      %p84 = por %p82, %p83
      %s86 = sadd.s32 %s85, 1
      %p89 = scmp.eq.s32.totalorder %s25, 1
      %p90 = scmp.ne.s32.totalorder %s85, %s87
      %p91 = scmp.eq.s32.totalorder %s25, 0
      %p92 = por %p90, %p91
      %p93 = scmp.ne.s32.totalorder %s85, %s87
      %p94 = scmp.eq.s32.totalorder %s30, 1
      %p95 = por %p93, %p94
      %p96 = scmp.ne.s32.totalorder %s87, %s88
      %p97 = scmp.eq.s32.totalorder %s30, 0
      %p98 = por %p96, %p97
      %p99 = scmp.ne.s32.totalorder %s87, %s88
      %p100 = scmp.eq.s32.totalorder %s31, 1
      %p101 = por %p99, %p100
      %p103 = scmp.ne.s32.totalorder %s88, %s102
      %p104 = scmp.eq.s32.totalorder %s31, 0
      %p105 = por %p103, %p104
      %s107 = sadd.s32 %s106, 1
      %p110 = scmp.eq.s32.totalorder %s25, 1
      %p111 = scmp.ne.s32.totalorder %s106, %s108
      %p112 = scmp.eq.s32.totalorder %s25, 0
      %p113 = por %p111, %p112
      %p114 = scmp.ne.s32.totalorder %s106, %s108
      %p115 = scmp.eq.s32.totalorder %s30, 1
      %p116 = por %p114, %p115
      %p117 = scmp.ne.s32.totalorder %s108, %s109
      %p118 = scmp.eq.s32.totalorder %s30, 0
      %p119 = por %p117, %p118
      %p120 = scmp.ne.s32.totalorder %s108, %s109
      %p121 = scmp.eq.s32.totalorder %s31, 1
      %p122 = por %p120, %p121
      %p124 = scmp.ne.s32.totalorder %s109, %s123
      %p125 = scmp.eq.s32.totalorder %s31, 0
      %p126 = por %p124, %p125
      %s128 = sadd.s32 %s127, 1
      %p131 = scmp.eq.s32.totalorder %s25, 1
      %p132 = scmp.ne.s32.totalorder %s127, %s129
      %p133 = scmp.eq.s32.totalorder %s25, 0
      %p134 = por %p132, %p133
      %p135 = scmp.ne.s32.totalorder %s127, %s129
      %p136 = scmp.eq.s32.totalorder %s30, 1
      %p137 = por %p135, %p136
      %p138 = scmp.ne.s32.totalorder %s129, %s130
      %p139 = scmp.eq.s32.totalorder %s30, 0
      %p140 = por %p138, %p139
      %p141 = scmp.ne.s32.totalorder %s129, %s130
      %p142 = scmp.eq.s32.totalorder %s31, 1
      %p143 = por %p141, %p142
      %p145 = scmp.ne.s32.totalorder %s130, %s144
      %p146 = scmp.eq.s32.totalorder %s31, 0
      %p147 = por %p145, %p146
      %s149 = sadd.s32 %s148, 1
      %p152 = scmp.eq.s32.totalorder %s25, 1
      %p153 = scmp.ne.s32.totalorder %s148, %s150
      %p154 = scmp.eq.s32.totalorder %s25, 0
      %p155 = por %p153, %p154
      %p156 = scmp.ne.s32.totalorder %s148, %s150
      %p157 = scmp.eq.s32.totalorder %s30, 1
      %p158 = por %p156, %p157
      %p159 = scmp.ne.s32.totalorder %s150, %s151
      %p160 = scmp.eq.s32.totalorder %s30, 0
      %p161 = por %p159, %p160
      %p162 = scmp.ne.s32.totalorder %s150, %s151
      %p163 = scmp.eq.s32.totalorder %s31, 1
      %p164 = por %p162, %p163
      %p166 = scmp.ne.s32.totalorder %s151, %s165
      %p167 = scmp.eq.s32.totalorder %s31, 0
      %p168 = por %p166, %p167
      %s170 = sadd.s32 %s169, 1
      %p173 = scmp.eq.s32.totalorder %s25, 1
      %p174 = scmp.ne.s32.totalorder %s169, %s171
      %p175 = scmp.eq.s32.totalorder %s25, 0
      %p176 = por %p174, %p175
      %p177 = scmp.ne.s32.totalorder %s169, %s171
      %p178 = scmp.eq.s32.totalorder %s30, 1
      %p179 = por %p177, %p178
      %p180 = scmp.ne.s32.totalorder %s171, %s172
      %p181 = scmp.eq.s32.totalorder %s30, 0
      %p182 = por %p180, %p181
      %p183 = scmp.ne.s32.totalorder %s171, %s172
      %p184 = scmp.eq.s32.totalorder %s31, 1
      %p185 = por %p183, %p184
      %p187 = scmp.ne.s32.totalorder %s172, %s186
      %p188 = scmp.eq.s32.totalorder %s31, 0
      %p189 = por %p187, %p188
      %s191 = sadd.s32 %s190, 1
      %p194 = scmp.eq.s32.totalorder %s25, 1
      %p195 = scmp.ne.s32.totalorder %s190, %s192
      %p196 = scmp.eq.s32.totalorder %s25, 0
      %p197 = por %p195, %p196
      %p198 = scmp.ne.s32.totalorder %s190, %s192
      %p199 = scmp.eq.s32.totalorder %s30, 1
      %p200 = por %p198, %p199
      %p201 = scmp.ne.s32.totalorder %s192, %s193
      %p202 = scmp.eq.s32.totalorder %s30, 0
      %p203 = por %p201, %p202
      %p204 = scmp.ne.s32.totalorder %s192, %s193
      %p205 = scmp.eq.s32.totalorder %s31, 1
      %p206 = por %p204, %p205
      %p208 = scmp.ne.s32.totalorder %s193, %s207
      %p209 = scmp.eq.s32.totalorder %s31, 0
      %p210 = por %p208, %p209
      %s212 = sadd.s32 %s211, 1
      %p215 = scmp.eq.s32.totalorder %s25, 1
      %p216 = scmp.ne.s32.totalorder %s211, %s213
      %p217 = scmp.eq.s32.totalorder %s25, 0
      %p218 = por %p216, %p217
      %p219 = scmp.ne.s32.totalorder %s211, %s213
      %p220 = scmp.eq.s32.totalorder %s30, 1
      %p221 = por %p219, %p220
      %p222 = scmp.ne.s32.totalorder %s213, %s214
      %p223 = scmp.eq.s32.totalorder %s30, 0
      %p224 = por %p222, %p223
      %p225 = scmp.ne.s32.totalorder %s213, %s214
      %p226 = scmp.eq.s32.totalorder %s31, 1
      %p227 = por %p225, %p226
      %p229 = scmp.ne.s32.totalorder %s214, %s228
      %p230 = scmp.eq.s32.totalorder %s31, 0
      %p231 = por %p229, %p230
      %s233 = sadd.s32 %s232, 1
      %p236 = scmp.eq.s32.totalorder %s25, 1
      %p237 = scmp.ne.s32.totalorder %s232, %s234
      %p238 = scmp.eq.s32.totalorder %s25, 0
      %p239 = por %p237, %p238
      %p240 = scmp.ne.s32.totalorder %s232, %s234
      %p241 = scmp.eq.s32.totalorder %s30, 1
      %p242 = por %p240, %p241
      %p243 = scmp.ne.s32.totalorder %s234, %s235
      %p244 = scmp.eq.s32.totalorder %s30, 0
      %p245 = por %p243, %p244
      %p246 = scmp.ne.s32.totalorder %s234, %s235
      %p247 = scmp.eq.s32.totalorder %s31, 1
      %p248 = por %p246, %p247
      %p250 = scmp.ne.s32.totalorder %s235, %s249
      %p251 = scmp.eq.s32.totalorder %s31, 0
      %p252 = por %p250, %p251
      %s254 = sadd.s32 %s253, 1
      %p257 = scmp.eq.s32.totalorder %s25, 1
      %p258 = scmp.ne.s32.totalorder %s253, %s255
      %p259 = scmp.eq.s32.totalorder %s25, 0
      %p260 = por %p258, %p259
      %p261 = scmp.ne.s32.totalorder %s253, %s255
      %p262 = scmp.eq.s32.totalorder %s30, 1
      %p263 = por %p261, %p262
      %p264 = scmp.ne.s32.totalorder %s255, %s256
      %p265 = scmp.eq.s32.totalorder %s30, 0
      %p266 = por %p264, %p265
      %p267 = scmp.ne.s32.totalorder %s255, %s256
      %p268 = scmp.eq.s32.totalorder %s31, 1
      %p269 = por %p267, %p268
      %p271 = scmp.ne.s32.totalorder %s256, %s270
      %p272 = scmp.eq.s32.totalorder %s31, 0
      %p273 = por %p271, %p272
      %s275 = sadd.s32 %s274, 1
      %p278 = scmp.eq.s32.totalorder %s25, 1
      %p279 = scmp.ne.s32.totalorder %s274, %s276
      %p280 = scmp.eq.s32.totalorder %s25, 0
      %p281 = por %p279, %p280
      %p282 = scmp.ne.s32.totalorder %s274, %s276
      %p283 = scmp.eq.s32.totalorder %s30, 1
      %p284 = por %p282, %p283
      %p285 = scmp.ne.s32.totalorder %s276, %s277
      %p286 = scmp.eq.s32.totalorder %s30, 0
      %p287 = por %p285, %p286
      %p288 = scmp.ne.s32.totalorder %s276, %s277
      %p289 = scmp.eq.s32.totalorder %s31, 1
      %p290 = por %p288, %p289
      %p292 = scmp.ne.s32.totalorder %s277, %s291
      %p293 = scmp.eq.s32.totalorder %s31, 0
      %p294 = por %p292, %p293
      %s296 = sadd.s32 %s295, 1
      %p299 = scmp.eq.s32.totalorder %s25, 1
      %p300 = scmp.ne.s32.totalorder %s295, %s297
      %p301 = scmp.eq.s32.totalorder %s25, 0
      %p302 = por %p300, %p301
      %p303 = scmp.ne.s32.totalorder %s295, %s297
      %p304 = scmp.eq.s32.totalorder %s30, 1
      %p305 = por %p303, %p304
      %p306 = scmp.ne.s32.totalorder %s297, %s298
      %p307 = scmp.eq.s32.totalorder %s30, 0
      %p308 = por %p306, %p307
      %p309 = scmp.ne.s32.totalorder %s297, %s298
      %p310 = scmp.eq.s32.totalorder %s31, 1
      %p311 = por %p309, %p310
      %p313 = scmp.ne.s32.totalorder %s298, %s312
      %p314 = scmp.eq.s32.totalorder %s31, 0
      %p315 = por %p313, %p314
      %s317 = sadd.s32 %s316, 1
      %p320 = scmp.eq.s32.totalorder %s25, 1
      %p321 = scmp.ne.s32.totalorder %s316, %s318
      %p322 = scmp.eq.s32.totalorder %s25, 0
      %p323 = por %p321, %p322
      %p324 = scmp.ne.s32.totalorder %s316, %s318
      %p325 = scmp.eq.s32.totalorder %s30, 1
      %p326 = por %p324, %p325
      %p327 = scmp.ne.s32.totalorder %s318, %s319
      %p328 = scmp.eq.s32.totalorder %s30, 0
      %p329 = por %p327, %p328
      %p330 = scmp.ne.s32.totalorder %s318, %s319
      %p331 = scmp.eq.s32.totalorder %s31, 1
      %p332 = por %p330, %p331
      %p334 = scmp.ne.s32.totalorder %s319, %s333
      %p335 = scmp.eq.s32.totalorder %s31, 0
      %p336 = por %p334, %p335
      %s337 = ssub.s32 %s25, %s32
      %p338 = scmp.eq.s32.totalorder %s337, 0
      %s340 = sadd.s32 %s339, 1
      %s341 = scalar_select %p338, %s339, %s340
      %p344 = pneg %p338
      %p345 = scmp.eq.s32.totalorder %s25, 1
      %p346 = por %p344, %p345
      %p347 = scmp.ne.s32.totalorder %s339, %s342
      %p348 = scmp.eq.s32.totalorder %s25, 0
      %p349 = por %p347, %p348
      %p350 = scmp.ne.s32.totalorder %s339, %s342
      %p351 = scmp.eq.s32.totalorder %s30, 1
      %p352 = por %p350, %p351
      %p353 = scmp.ne.s32.totalorder %s342, %s343
      %p354 = scmp.eq.s32.totalorder %s30, 0
      %p355 = por %p353, %p354
      %p356 = scmp.ne.s32.totalorder %s342, %s343
      %p357 = scmp.eq.s32.totalorder %s31, 1
      %p358 = por %p356, %p357
      %p360 = scmp.ne.s32.totalorder %s343, %s359
      %p361 = scmp.eq.s32.totalorder %s31, 0
      %p362 = por %p360, %p361
      %s363 = ssub.s32 %s25, %s32
      %p364 = scmp.eq.s32.totalorder %s363, 0
      %s366 = sadd.s32 %s365, 1
      %s367 = scalar_select %p364, %s365, %s366
      %p370 = pneg %p364
      %p371 = scmp.eq.s32.totalorder %s25, 1
      %p372 = por %p370, %p371
      %p373 = scmp.ne.s32.totalorder %s365, %s368
      %p374 = scmp.eq.s32.totalorder %s25, 0
      %p375 = por %p373, %p374
      %p376 = scmp.ne.s32.totalorder %s365, %s368
      %p377 = scmp.eq.s32.totalorder %s30, 1
      %p378 = por %p376, %p377
      %p379 = scmp.ne.s32.totalorder %s368, %s369
      %p380 = scmp.eq.s32.totalorder %s30, 0
      %p381 = por %p379, %p380
      %p382 = scmp.ne.s32.totalorder %s368, %s369
      %p383 = scmp.eq.s32.totalorder %s31, 1
      %p384 = por %p382, %p383
      %p386 = scmp.ne.s32.totalorder %s369, %s385
      %p387 = scmp.eq.s32.totalorder %s31, 0
      %p388 = por %p386, %p387
      %p389 = scmp.le.s32.totalorder 1, %s25
      %p390 = scmp.lt.s32.totalorder %s25, 3
      %p391 = pnand %p389, %p390
      %p392 = pneg %p391
      // Predicated region
      $region9: #{forward.5} parent=5 // pred_check
        _
      $region10: #{forward.5} parent=5 // pred_check_branch
        %394 = sbr.rel (%p391) target = $region12
      $region11: #{forward.5} parent=5 // pred_region
        %s395 = ssub.s32 %s25, 1
        // Predicated region
        $region13: #{forward.5} parent=11 // pred_check
          %p396 = pneg %p98
        $region14: #{forward.5} parent=11 // pred_check_branch
          %398 = sbr.rel (%p396) target = $region16
        $region15: #{forward.5} parent=11 // pred_region
          _
        $region16: #{forward.5} parent=11 // pred_fallthru
          _
        // Predicated region
        $region17: #{forward.5} parent=11 // pred_check
          %p399 = pneg %p119
        $region18: #{forward.5} parent=11 // pred_check_branch
          %401 = sbr.rel (%p399) target = $region20
        $region19: #{forward.5} parent=11 // pred_region
          _
        $region20: #{forward.5} parent=11 // pred_fallthru
          _
        // Predicated region
        $region21: #{forward.5} parent=11 // pred_check
          %p402 = pneg %p140
        $region22: #{forward.5} parent=11 // pred_check_branch
          %404 = sbr.rel (%p402) target = $region24
        $region23: #{forward.5} parent=11 // pred_region
          _
        $region24: #{forward.5} parent=11 // pred_fallthru
          _
        // Predicated region
        $region25: #{forward.5} parent=11 // pred_check
          %p405 = pneg %p161
        $region26: #{forward.5} parent=11 // pred_check_branch
          %407 = sbr.rel (%p405) target = $region28
        $region27: #{forward.5} parent=11 // pred_region
          _
        $region28: #{forward.5} parent=11 // pred_fallthru
          _
        // Predicated region
        $region29: #{forward.5} parent=11 // pred_check
          %p408 = pneg %p182
        $region30: #{forward.5} parent=11 // pred_check_branch
          %410 = sbr.rel (%p408) target = $region32
        $region31: #{forward.5} parent=11 // pred_region
          _
        $region32: #{forward.5} parent=11 // pred_fallthru
          _
        // Predicated region
        $region33: #{forward.5} parent=11 // pred_check
          %p411 = pneg %p203
        $region34: #{forward.5} parent=11 // pred_check_branch
          %413 = sbr.rel (%p411) target = $region36
        $region35: #{forward.5} parent=11 // pred_region
          _
        $region36: #{forward.5} parent=11 // pred_fallthru
          _
        // Predicated region
        $region37: #{forward.5} parent=11 // pred_check
          %p414 = pneg %p224
        $region38: #{forward.5} parent=11 // pred_check_branch
          %416 = sbr.rel (%p414) target = $region40
        $region39: #{forward.5} parent=11 // pred_region
          _
        $region40: #{forward.5} parent=11 // pred_fallthru
          _
        // Predicated region
        $region41: #{forward.5} parent=11 // pred_check
          %p417 = pneg %p245
        $region42: #{forward.5} parent=11 // pred_check_branch
          %419 = sbr.rel (%p417) target = $region44
        $region43: #{forward.5} parent=11 // pred_region
          _
        $region44: #{forward.5} parent=11 // pred_fallthru
          _
        // Predicated region
        $region45: #{forward.5} parent=11 // pred_check
          %p420 = pneg %p266
        $region46: #{forward.5} parent=11 // pred_check_branch
          %422 = sbr.rel (%p420) target = $region48
        $region47: #{forward.5} parent=11 // pred_region
          _
        $region48: #{forward.5} parent=11 // pred_fallthru
          _
        // Predicated region
        $region49: #{forward.5} parent=11 // pred_check
          %p423 = pneg %p287
        $region50: #{forward.5} parent=11 // pred_check_branch
          %425 = sbr.rel (%p423) target = $region52
        $region51: #{forward.5} parent=11 // pred_region
          _
        $region52: #{forward.5} parent=11 // pred_fallthru
          _
        // Predicated region
        $region53: #{forward.5} parent=11 // pred_check
          %p426 = pneg %p308
        $region54: #{forward.5} parent=11 // pred_check_branch
          %428 = sbr.rel (%p426) target = $region56
        $region55: #{forward.5} parent=11 // pred_region
          _
        $region56: #{forward.5} parent=11 // pred_fallthru
          _
        // Predicated region
        $region57: #{forward.5} parent=11 // pred_check
          %p429 = pneg %p329
        $region58: #{forward.5} parent=11 // pred_check_branch
          %431 = sbr.rel (%p429) target = $region60
        $region59: #{forward.5} parent=11 // pred_region
          _
        $region60: #{forward.5} parent=11 // pred_fallthru
          _
      $region12: #{forward.5} parent=5 // pred_fallthru
        _
      %p432 = scmp.lt.s32.totalorder %s25, 2
      // Predicated region
      $region61: #{forward.5} parent=5 // pred_check
        %p433 = pneg %p432
      $region62: #{forward.5} parent=5 // pred_check_branch
        %435 = sbr.rel (%p433) target = $region64
      $region63: #{forward.5} parent=5 // pred_region
        // Predicated region
        $region65: #{forward.5} parent=63 // pred_check
          %p436 = pneg %p45
        $region66: #{forward.5} parent=63 // pred_check_branch
          %438 = sbr.rel (%p436) target = $region68
        $region67: #{forward.5} parent=63 // pred_region
          %p439 = scmp.lt.s32.totalorder %s25, 1
          %s440 = scalar_select %p439, %s25, 1
          %s441 = smul.addr %s440, 8
          %s442 = scalar_lea.vmem %s0, %s441
        $region68: #{forward.5} parent=63 // pred_fallthru
          _
        // Predicated region
        $region69: #{forward.5} parent=63 // pred_check
          %p443 = pneg %p71
        $region70: #{forward.5} parent=63 // pred_check_branch
          %445 = sbr.rel (%p443) target = $region72
        $region71: #{forward.5} parent=63 // pred_region
          %p446 = scmp.lt.s32.totalorder %s25, 1
          %s447 = scalar_select %p446, %s25, 1
          %s448 = scalar_lea.vmem %s1, %s447
        $region72: #{forward.5} parent=63 // pred_fallthru
          _
      $region64: #{forward.5} parent=5 // pred_fallthru
        _
      %p449 = scmp.le.s32.totalorder 1, %s25
      %p450 = scmp.lt.s32.totalorder %s25, 3
      %p451 = pnand %p449, %p450
      %p452 = pneg %p451
      // Predicated region
      $region73: #{forward.5} parent=5 // pred_check
        _
      $region74: #{forward.5} parent=5 // pred_check_branch
        %454 = sbr.rel (%p451) target = $region76
      $region75: #{forward.5} parent=5 // pred_region
        %s455 = ssub.s32 %s25, 1
        %p456 = scmp.lt.s32.totalorder %s30, 1
        %s457 = scalar_select %p456, %s30, 1
        %s458 = smul.addr %s457, 8
        %s459 = scalar_lea.vmem %s0, %s458
        %p460 = pneg %p51
        %p461 = pneg %p48
        %p462 = scmp.lt.s32.totalorder %s30, 1
        %s463 = scalar_select %p462, %s30, 1
        %s464 = scalar_lea.vmem %s1, %s463
        %p465 = pneg %p77
        %p466 = pneg %p74
        %p467 = pneg %p98
        %p468 = pneg %p95
        %p469 = pneg %p119
        %p470 = pneg %p116
        %p471 = pneg %p140
        %p472 = pneg %p137
        %p473 = pneg %p161
        %p474 = pneg %p158
        %p475 = pneg %p182
        %p476 = pneg %p179
        %p477 = pneg %p203
        %p478 = pneg %p200
        %p479 = pneg %p224
        %p480 = pneg %p221
        %p481 = pneg %p245
        %p482 = pneg %p242
        %p483 = pneg %p266
        %p484 = pneg %p263
        %p485 = pneg %p287
        %p486 = pneg %p284
        %p487 = pneg %p308
        %p488 = pneg %p305
        %p489 = pneg %p329
        %p490 = pneg %p326
        %p491 = pneg %p355
        %p492 = pneg %p352
        %p493 = scmp.lt.s32.totalorder %s30, 1
        %s494 = scalar_select %p493, %s30, 1
        %s495 = smul.addr %s494, 8
        %s496 = scalar_lea.vmem %s14, %s495
        %p497 = pneg %p381
        %p498 = pneg %p378
        %s499 = sand.u32 %s368, 1
        %s500 = scalar_lea.sflag [#allocation3], %s499
        %s501 = sand.u32 %s368, 1
        %s502 = scalar_lea.vmem [#allocation2], %s501
        %p503 = scmp.lt.s32.totalorder %s30, 1
        %s504 = scalar_select %p503, %s30, 1
        %s505 = smul.addr %s504, 8
        %s506 = scalar_lea.vmem %s0, %s505
        %p507 = scmp.lt.s32.totalorder %s30, 1
        %s508 = scalar_select %p507, %s30, 1
        %s509 = scalar_lea.vmem %s1, %s508
        %p510 = scmp.lt.s32.totalorder %s30, 1
        %s511 = scalar_select %p510, %s30, 1
        %s512 = smul.addr %s511, 8
        %s513 = scalar_lea.vmem %s14, %s512
        %v515 = vld [vmem:[%s506] sm:$0xff]
        %v516 = vld [vmem:[%s509] sm:$0x1]
        %v517 = vld [vmem:[%s2] sm:$0xff]
        %v518 = vld [vmem:[%s2 + $0x8] sm:$0xff]
        %v519 = vld [vmem:[%s2 + $0x10] sm:$0xff]
        %v520 = vld [vmem:[%s2 + $0x18] sm:$0xff]
        %v521 = vpack.c.bf16 %v515, %v515
        %v522 = vpack.c.bf16 %v518, %v517
        %v523 = vpack.c.bf16 %v520, %v519
        %v524 = vld [vmem:[%s3] sm:$0x1]
        %v526 = vperm.slane %v524, 0
        %vm528 = vcmask 261120
        %v530 = vsel %vm528, %v521, 0
        %532 = vmatpush.bf16.msra.mxu0 0
        %533 = vmatpush.bf16.msra.mxu0 0
        %534 = vmatpush.bf16.msra.mxu0 0
        %535 = vmatpush.bf16.msra.mxu0 0
        %536 = vmatpush.bf16.msra.mxu0 0
        %537 = vmatpush.bf16.msra.mxu0 0
        %538 = vmatpush.bf16.msra.mxu0 %v523
        %539 = vmatpush.bf16.msra.mxu0 %v522
        %540 = vmatmul.bf16.gmra.mxu0 %v530
        %v541 = vpop.f32.mrf.mxu0
        %v542 = vadd.f32 %v526, %v541
        %v543 = vpop.f32.mrf.mxu0
        %544 = vdwg.mxu0
        %v545 = vpack.c.bf16 %v542, %v542
        %547 = vrot.lane.b32.xlu0 %v545, 96
        %v548 = vpop.permute.xlu0 %547
        %vm549 = vcmask 64512
        %v551 = vsel %vm549, %v545, 0
        %v554 = vsel %vm549, %v548, 0
        %556 = vmatpush.bf16.xpose.msra.mxu0 0
        %557 = vmatpush.bf16.xpose.msra.mxu0 0
        %558 = vmatpush.bf16.xpose.msra.mxu0 0
        %559 = vmatpush.bf16.xpose.msra.mxu0 0
        %560 = vmatpush.bf16.xpose.msra.mxu0 0
        %561 = vmatpush.bf16.xpose.msra.mxu0 0
        %562 = vmatpush.bf16.xpose.msra.mxu0 0
        %563 = vmatpush.bf16.xpose.msra.mxu0 %v554
        %564 = vmatmul.bf16.gmra.mxu0 %v551
        %v565 = vpop.f32.mrf.mxu0
        %v566 = vadd.f32 0.0, %v565
        %v567 = vpop.f32.mrf.mxu0
        %568 = vdwg.mxu0
        %v569 = vmul.f32 %v566, 0.35355338
        %v571 = vperm.slane %v516, 0
        %v573 = vadd.f32 %v569, %v571
        %v574 = vsel %vm549, %v573, -inf
        %575 = vmax.xlane.f32.xlu0 %v574
        %v576 = vpop.xlane.xlu0 %575
        %v577 = vsub.f32 %v573, %v576
        %v578 = vmul.f32 %v577, 1.442695
        %v579 = vpow.pop %v578
        %v580 = vsel %vm549, %v579, 0.0
        %581 = vadd.xlane.f32.xlu0 %v580
        %v582 = vpop.xlane.xlu0 %581
        %v583 = vrcp.pop %v582
        %v584 = vmul.f32 %v579, %v583
        %v585 = vadd.f32 %v584, 0.0
        %v586 = vpack.c.bf16 %v584, %v584
        %587 = vrot.lane.b32.xlu0 %v545, 64
        %v588 = vpop.permute.xlu0 %587
        %v590 = vsel %vm549, %v586, 0
        %vm592 = vcmask 1043456
        %v594 = vsel %vm592, %v588, 0
        %596 = vmatpush.bf16.msra.mxu0 0
        %597 = vmatpush.bf16.msra.mxu0 0
        %598 = vmatpush.bf16.msra.mxu0 0
        %599 = vmatpush.bf16.msra.mxu0 0
        %600 = vmatpush.bf16.msra.mxu0 0
        %601 = vmatpush.bf16.msra.mxu0 0
        %602 = vmatpush.bf16.msra.mxu0 0
        %603 = vmatpush.bf16.msra.mxu0 %v594
        %604 = vmatmul.bf16.gmra.mxu0 %v590
        %v605 = vpop.f32.mrf.mxu0
        %v606 = vadd.f32 0.0, %v605
        %v607 = vpop.f32.mrf.mxu0
        %608 = vdwg.mxu0
        %v609 = vld [vmem:[%s4] sm:$0xff]
        %v610 = vpack.c.bf16 %v606, %v606
        %v611 = vpack.c.bf16 %v609, %v609
        %612 = vrot.lane.b32.xlu0 %v545, 120
        %v613 = vpop.permute.xlu0 %612
        %614 = vrot.lane.b32.xlu0 %v545, 88
        %v615 = vpop.permute.xlu0 %614
        %v617 = vsel %vm549, %v613, 0
        %v620 = vsel %vm549, %v615, 0
        %622 = vmatpush.bf16.xpose.msra.mxu0 0
        %623 = vmatpush.bf16.xpose.msra.mxu0 0
        %624 = vmatpush.bf16.xpose.msra.mxu0 0
        %625 = vmatpush.bf16.xpose.msra.mxu0 0
        %626 = vmatpush.bf16.xpose.msra.mxu0 0
        %627 = vmatpush.bf16.xpose.msra.mxu0 0
        %628 = vmatpush.bf16.xpose.msra.mxu0 0
        %629 = vmatpush.bf16.xpose.msra.mxu0 %v620
        %630 = vmatmul.bf16.gmra.mxu0 %v617
        %v631 = vpop.f32.mrf.mxu0
        %v632 = vadd.f32 0.0, %v631
        %v633 = vpop.f32.mrf.mxu0
        %634 = vdwg.mxu0
        %v635 = vmul.f32 %v632, 0.35355338
        %v636 = vadd.f32 %v635, %v571
        %v637 = vsel %vm549, %v636, -inf
        %638 = vmax.xlane.f32.xlu0 %v637
        %v639 = vpop.xlane.xlu0 %638
        %v640 = vsub.f32 %v636, %v639
        %v641 = vmul.f32 %v640, 1.442695
        %v642 = vpow.pop %v641
        %v643 = vsel %vm549, %v642, 0.0
        %644 = vadd.xlane.f32.xlu0 %v643
        %v645 = vpop.xlane.xlu0 %644
        %v646 = vrcp.pop %v645
        %v647 = vmul.f32 %v642, %v646
        %v648 = vadd.f32 %v585, %v647
        %v649 = vpack.c.bf16 %v647, %v647
        %650 = vrot.lane.b32.xlu0 %v545, 56
        %v651 = vpop.permute.xlu0 %650
        %v653 = vsel %vm549, %v649, 0
        %v656 = vsel %vm592, %v651, 0
        %658 = vmatpush.bf16.msra.mxu0 0
        %659 = vmatpush.bf16.msra.mxu0 0
        %660 = vmatpush.bf16.msra.mxu0 0
        %661 = vmatpush.bf16.msra.mxu0 0
        %662 = vmatpush.bf16.msra.mxu0 0
        %663 = vmatpush.bf16.msra.mxu0 0
        %664 = vmatpush.bf16.msra.mxu0 0
        %665 = vmatpush.bf16.msra.mxu0 %v656
        %666 = vmatmul.bf16.gmra.mxu0 %v653
        %v667 = vpop.f32.mrf.mxu0
        %v668 = vadd.f32 0.0, %v667
        %v669 = vpop.f32.mrf.mxu0
        %670 = vdwg.mxu0
        %v671 = vld [vmem:[%s4 + $0x8] sm:$0xff]
        %v672 = vpack.c.bf16 %v668, %v668
        %v673 = vpack.c.bf16 %v671, %v671
        %v675 = vsel %vm549, %v672, 0
        %v678 = vsel %vm592, %v673, 0
        %680 = vmatpush.bf16.msra.mxu0 0
        %681 = vmatpush.bf16.msra.mxu0 0
        %682 = vmatpush.bf16.msra.mxu0 0
        %683 = vmatpush.bf16.msra.mxu0 0
        %684 = vmatpush.bf16.msra.mxu0 0
        %685 = vmatpush.bf16.msra.mxu0 0
        %686 = vmatpush.bf16.msra.mxu0 0
        %687 = vmatpush.bf16.msra.mxu0 %v678
        %688 = vmatmul.bf16.gmra.mxu0 %v675
        %v689 = vpop.f32.mrf.mxu0
        %v690 = vadd.f32 0.0, %v689
        %v691 = vpop.f32.mrf.mxu0
        %692 = vdwg.mxu0
        %v694 = vsel %vm549, %v610, 0
        %v697 = vsel %vm592, %v611, 0
        %699 = vmatpush.bf16.msra.mxu0 0
        %700 = vmatpush.bf16.msra.mxu0 0
        %701 = vmatpush.bf16.msra.mxu0 0
        %702 = vmatpush.bf16.msra.mxu0 0
        %703 = vmatpush.bf16.msra.mxu0 0
        %704 = vmatpush.bf16.msra.mxu0 0
        %705 = vmatpush.bf16.msra.mxu0 0
        %706 = vmatpush.bf16.msra.mxu0 %v697
        %707 = vmatmul.bf16.gmra.mxu0 %v694
        %v708 = vpop.f32.mrf.mxu0
        %v709 = vadd.f32 %v690, %v708
        %v710 = vpop.f32.mrf.mxu0
        %711 = vdwg.mxu0
        %712 = vrot.lane.b32.xlu0 %v545, 112
        %v713 = vpop.permute.xlu0 %712
        %714 = vrot.lane.b32.xlu0 %v545, 80
        %v715 = vpop.permute.xlu0 %714
        %v717 = vsel %vm549, %v713, 0
        %v720 = vsel %vm549, %v715, 0
        %722 = vmatpush.bf16.xpose.msra.mxu0 0
        %723 = vmatpush.bf16.xpose.msra.mxu0 0
        %724 = vmatpush.bf16.xpose.msra.mxu0 0
        %725 = vmatpush.bf16.xpose.msra.mxu0 0
        %726 = vmatpush.bf16.xpose.msra.mxu0 0
        %727 = vmatpush.bf16.xpose.msra.mxu0 0
        %728 = vmatpush.bf16.xpose.msra.mxu0 0
        %729 = vmatpush.bf16.xpose.msra.mxu0 %v720
        %730 = vmatmul.bf16.gmra.mxu0 %v717
        %v731 = vpop.f32.mrf.mxu0
        %v732 = vadd.f32 0.0, %v731
        %v733 = vpop.f32.mrf.mxu0
        %734 = vdwg.mxu0
        %v735 = vmul.f32 %v732, 0.35355338
        %v736 = vadd.f32 %v735, %v571
        %v737 = vsel %vm549, %v736, -inf
        %738 = vmax.xlane.f32.xlu0 %v737
        %v739 = vpop.xlane.xlu0 %738
        %v740 = vsub.f32 %v736, %v739
        %v741 = vmul.f32 %v740, 1.442695
        %v742 = vpow.pop %v741
        %v743 = vsel %vm549, %v742, 0.0
        %744 = vadd.xlane.f32.xlu0 %v743
        %v745 = vpop.xlane.xlu0 %744
        %v746 = vrcp.pop %v745
        %v747 = vmul.f32 %v742, %v746
        %v748 = vadd.f32 %v648, %v747
        %v749 = vpack.c.bf16 %v747, %v747
        %750 = vrot.lane.b32.xlu0 %v545, 48
        %v751 = vpop.permute.xlu0 %750
        %v753 = vsel %vm549, %v749, 0
        %v756 = vsel %vm592, %v751, 0
        %758 = vmatpush.bf16.msra.mxu0 0
        %759 = vmatpush.bf16.msra.mxu0 0
        %760 = vmatpush.bf16.msra.mxu0 0
        %761 = vmatpush.bf16.msra.mxu0 0
        %762 = vmatpush.bf16.msra.mxu0 0
        %763 = vmatpush.bf16.msra.mxu0 0
        %764 = vmatpush.bf16.msra.mxu0 0
        %765 = vmatpush.bf16.msra.mxu0 %v756
        %766 = vmatmul.bf16.gmra.mxu0 %v753
        %v767 = vpop.f32.mrf.mxu0
        %v768 = vadd.f32 0.0, %v767
        %v769 = vpop.f32.mrf.mxu0
        %770 = vdwg.mxu0
        %v771 = vld [vmem:[%s4 + $0x10] sm:$0xff]
        %v772 = vpack.c.bf16 %v768, %v768
        %v773 = vpack.c.bf16 %v771, %v771
        %v775 = vsel %vm549, %v772, 0
        %v778 = vsel %vm592, %v773, 0
        %780 = vmatpush.bf16.msra.mxu0 0
        %781 = vmatpush.bf16.msra.mxu0 0
        %782 = vmatpush.bf16.msra.mxu0 0
        %783 = vmatpush.bf16.msra.mxu0 0
        %784 = vmatpush.bf16.msra.mxu0 0
        %785 = vmatpush.bf16.msra.mxu0 0
        %786 = vmatpush.bf16.msra.mxu0 0
        %787 = vmatpush.bf16.msra.mxu0 %v778
        %788 = vmatmul.bf16.gmra.mxu0 %v775
        %v789 = vpop.f32.mrf.mxu0
        %v790 = vadd.f32 0.0, %v789
        %v791 = vpop.f32.mrf.mxu0
        %792 = vdwg.mxu0
        %v793 = vadd.f32 %v709, %v790
        %794 = vrot.lane.b32.xlu0 %v545, 104
        %v795 = vpop.permute.xlu0 %794
        %796 = vrot.lane.b32.xlu0 %v545, 72
        %v797 = vpop.permute.xlu0 %796
        %v799 = vsel %vm549, %v795, 0
        %v802 = vsel %vm549, %v797, 0
        %804 = vmatpush.bf16.xpose.msra.mxu0 0
        %805 = vmatpush.bf16.xpose.msra.mxu0 0
        %806 = vmatpush.bf16.xpose.msra.mxu0 0
        %807 = vmatpush.bf16.xpose.msra.mxu0 0
        %808 = vmatpush.bf16.xpose.msra.mxu0 0
        %809 = vmatpush.bf16.xpose.msra.mxu0 0
        %810 = vmatpush.bf16.xpose.msra.mxu0 0
        %811 = vmatpush.bf16.xpose.msra.mxu0 %v802
        %812 = vmatmul.bf16.gmra.mxu0 %v799
        %v813 = vpop.f32.mrf.mxu0
        %v814 = vadd.f32 0.0, %v813
        %v815 = vpop.f32.mrf.mxu0
        %816 = vdwg.mxu0
        %v817 = vmul.f32 %v814, 0.35355338
        %v818 = vadd.f32 %v817, %v571
        %v819 = vsel %vm549, %v818, -inf
        %820 = vmax.xlane.f32.xlu0 %v819
        %v821 = vpop.xlane.xlu0 %820
        %v822 = vsub.f32 %v818, %v821
        %v823 = vmul.f32 %v822, 1.442695
        %v824 = vpow.pop %v823
        %v825 = vsel %vm549, %v824, 0.0
        %826 = vadd.xlane.f32.xlu0 %v825
        %v827 = vpop.xlane.xlu0 %826
        %v828 = vrcp.pop %v827
        %v829 = vmul.f32 %v824, %v828
        %v830 = vadd.f32 %v748, %v829
        %v831 = vpack.c.bf16 %v829, %v829
        %832 = vrot.lane.b32.xlu0 %v545, 40
        %v833 = vpop.permute.xlu0 %832
        %v835 = vsel %vm549, %v831, 0
        %v838 = vsel %vm592, %v833, 0
        %840 = vmatpush.bf16.msra.mxu0 0
        %841 = vmatpush.bf16.msra.mxu0 0
        %842 = vmatpush.bf16.msra.mxu0 0
        %843 = vmatpush.bf16.msra.mxu0 0
        %844 = vmatpush.bf16.msra.mxu0 0
        %845 = vmatpush.bf16.msra.mxu0 0
        %846 = vmatpush.bf16.msra.mxu0 0
        %847 = vmatpush.bf16.msra.mxu0 %v838
        %848 = vmatmul.bf16.gmra.mxu0 %v835
        %v849 = vpop.f32.mrf.mxu0
        %v850 = vadd.f32 0.0, %v849
        %v851 = vpop.f32.mrf.mxu0
        %852 = vdwg.mxu0
        %v853 = vld [vmem:[%s4 + $0x18] sm:$0xff]
        %v854 = vpack.c.bf16 %v850, %v850
        %v855 = vpack.c.bf16 %v853, %v853
        %v857 = vsel %vm549, %v854, 0
        %v860 = vsel %vm592, %v855, 0
        %862 = vmatpush.bf16.msra.mxu0 0
        %863 = vmatpush.bf16.msra.mxu0 0
        %864 = vmatpush.bf16.msra.mxu0 0
        %865 = vmatpush.bf16.msra.mxu0 0
        %866 = vmatpush.bf16.msra.mxu0 0
        %867 = vmatpush.bf16.msra.mxu0 0
        %868 = vmatpush.bf16.msra.mxu0 0
        %869 = vmatpush.bf16.msra.mxu0 %v860
        %870 = vmatmul.bf16.gmra.mxu0 %v857
        %v871 = vpop.f32.mrf.mxu0
        %v872 = vadd.f32 0.0, %v871
        %v873 = vpop.f32.mrf.mxu0
        %874 = vdwg.mxu0
        %v875 = vadd.f32 %v793, %v872
        %v876 = vmul.f32 %v830, 0.25
        %vm877 = vcmask 57344
        %878 = vst.msk [vmem:[%s502] sm:$0x1] %vm877, %v876
        %v879 = vld [vmem:[%s5] sm:$0x1]
        %v881 = vperm.slane %v879, 0
        %v883 = vadd.f32 %v875, %v881
        %v884 = vadd.f32 %v883, %v515
        %v885 = vld [vmem:[%s6] sm:$0x1]
        %v886 = vld [vmem:[%s7] sm:$0x1]
        %v887 = vsel %vm528, %v884, 0.0
        %888 = vadd.xlane.f32.xlu0 %v887
        %v889 = vpop.xlane.xlu0 %888
        %v890 = vrcp.pop 32.0
        %v891 = vmul.f32 32.0, %v890
        %v892 = vsub.f32 1.0, %v891
        %v893 = vmul.f32 %v890, %v892
        %v894 = vadd.f32 %v890, %v893
        %vm895 = vweird.f32 %v890
        %v896 = vsel %vm895, %v890, %v894
        %v897 = vmul.f32 %v889, %v896
        %v898 = vsub.f32 %v884, %v897
        %v899 = vmul.f32 %v898, %v898
        %v900 = vsel %vm528, %v899, 0.0
        %901 = vadd.xlane.f32.xlu0 %v900
        %v902 = vpop.xlane.xlu0 %901
        %v903 = vmul.f32 %v902, %v896
        %v904 = vadd.f32 %v903, 1e-12
        %v905 = vrsqrt.pop %v904
        %v906 = vmul.f32 %v905, %v904
        %v907 = vmul.f32 %v906, %v905
        %v908 = vmul.f32 0.5, %v907
        %v909 = vsub.f32 1.5, %v908
        %v910 = vmul.f32 %v905, %v909
        %vm911 = vweird.f32 %v904
        %vm912 = vweird.f32 %v905
        %vm913 = vmor %vm911, %vm912
        %v914 = vsel %vm913, %v905, %v910
        %v915 = vmul.f32 %v898, %v914
        %v917 = vperm.slane %v885, 0
        %v919 = vmul.f32 %v915, %v917
        %v921 = vperm.slane %v886, 0
        %v923 = vadd.f32 %v919, %v921
        %v924 = vld [vmem:[%s8] sm:$0xff]
        %v925 = vld [vmem:[%s8 + $0x8] sm:$0xff]
        %v926 = vld [vmem:[%s8 + $0x10] sm:$0xff]
        %v927 = vld [vmem:[%s8 + $0x18] sm:$0xff]
        %v928 = vpack.c.bf16 %v923, %v923
        %v929 = vpack.c.bf16 %v925, %v924
        %v930 = vpack.c.bf16 %v927, %v926
        %v931 = vld [vmem:[%s9] sm:$0x1]
        %v933 = vperm.slane %v931, 0
        %v936 = vsel %vm528, %v928, 0
        %938 = vmatpush.bf16.msra.mxu0 0
        %939 = vmatpush.bf16.msra.mxu0 0
        %940 = vmatpush.bf16.msra.mxu0 0
        %941 = vmatpush.bf16.msra.mxu0 0
        %942 = vmatpush.bf16.msra.mxu0 0
        %943 = vmatpush.bf16.msra.mxu0 0
        %944 = vmatpush.bf16.msra.mxu0 %v930
        %945 = vmatpush.bf16.msra.mxu0 %v929
        %946 = vmatmul.bf16.gmra.mxu0 %v936
        %v947 = vpop.f32.mrf.mxu0
        %v948 = vadd.f32 %v933, %v947
        %v949 = vpop.f32.mrf.mxu0
        %950 = vdwg.mxu0
        %v951 = vmul.f32 %v948, %v948
        %v952 = vmul.f32 %v948, %v951
        %v953 = vmul.f32 %v952, 0.044715
        %v954 = vadd.f32 %v948, %v953
        %v955 = vmul.f32 %v954, 0.7978846
        %v956 = vtanh.pop %v955
        %v957 = vadd.f32 %v956, 1.0
        %v958 = vmul.f32 %v957, 0.5
        %v959 = vmul.f32 %v948, %v958
        %v960 = vld [vmem:[%s10] sm:$0xff]
        %v961 = vld [vmem:[%s10 + $0x8] sm:$0xff]
        %v962 = vld [vmem:[%s10 + $0x10] sm:$0xff]
        %v963 = vld [vmem:[%s10 + $0x18] sm:$0xff]
        %v964 = vld [vmem:[%s10 + $0x20] sm:$0xff]
        %v965 = vld [vmem:[%s10 + $0x28] sm:$0xff]
        %v966 = vld [vmem:[%s10 + $0x30] sm:$0xff]
        %v967 = vld [vmem:[%s10 + $0x38] sm:$0xff]
        %v968 = vpack.c.bf16 %v959, %v959
        %v969 = vpack.c.bf16 %v961, %v960
        %v970 = vpack.c.bf16 %v963, %v962
        %v971 = vpack.c.bf16 %v965, %v964
        %v972 = vpack.c.bf16 %v967, %v966
        %v973 = vld [vmem:[%s11] sm:$0x1]
        %v975 = vperm.slane %v973, 0
        %vm977 = vcmask 523264
        %v979 = vsel %vm977, %v968, 0
        %981 = vmatpush.bf16.msra.mxu0 0
        %982 = vmatpush.bf16.msra.mxu0 0
        %983 = vmatpush.bf16.msra.mxu0 0
        %984 = vmatpush.bf16.msra.mxu0 0
        %985 = vmatpush.bf16.msra.mxu0 %v972
        %986 = vmatpush.bf16.msra.mxu0 %v971
        %987 = vmatpush.bf16.msra.mxu0 %v970
        %988 = vmatpush.bf16.msra.mxu0 %v969
        %989 = vmatmul.bf16.gmra.mxu0 %v979
        %v990 = vpop.f32.mrf.mxu0
        %v991 = vadd.f32 %v975, %v990
        %v992 = vpop.f32.mrf.mxu0
        %993 = vdwg.mxu0
        %v994 = vadd.f32 %v991, %v923
        %v995 = vld [vmem:[%s12] sm:$0x1]
        %v996 = vld [vmem:[%s13] sm:$0x1]
        %v997 = vsel %vm528, %v994, 0.0
        %998 = vadd.xlane.f32.xlu0 %v997
        %v999 = vpop.xlane.xlu0 %998
        %v1000 = vmul.f32 %v999, %v896
        %v1001 = vsub.f32 %v994, %v1000
        %v1002 = vmul.f32 %v1001, %v1001
        %v1003 = vsel %vm528, %v1002, 0.0
        %1004 = vadd.xlane.f32.xlu0 %v1003
        %v1005 = vpop.xlane.xlu0 %1004
        %v1006 = vmul.f32 %v1005, %v896
        %v1007 = vadd.f32 %v1006, 1e-12
        %v1008 = vrsqrt.pop %v1007
        %v1009 = vmul.f32 %v1008, %v1007
        %v1010 = vmul.f32 %v1009, %v1008
        %v1011 = vmul.f32 0.5, %v1010
        %v1012 = vsub.f32 1.5, %v1011
        %v1013 = vmul.f32 %v1008, %v1012
        %vm1014 = vweird.f32 %v1007
        %vm1015 = vweird.f32 %v1008
        %vm1016 = vmor %vm1014, %vm1015
        %v1017 = vsel %vm1016, %v1008, %v1013
        %v1018 = vmul.f32 %v1001, %v1017
        %v1020 = vperm.slane %v995, 0
        %v1022 = vmul.f32 %v1018, %v1020
        %v1024 = vperm.slane %v996, 0
        %v1026 = vadd.f32 %v1022, %v1024
        %1027 = vst.msk [vmem:[%s513] sm:$0xff] %vm528, %v1026
        %p1028 = scmp.lt.s32.totalorder %s30, 1
        %s1029 = scalar_select %p1028, %s30, 1
        %s1030 = smul.addr %s1029, 8
        %s1031 = scalar_lea.vmem %s14, %s1030
        %s1032 = sand.u32 %s368, 1
        %s1033 = scalar_lea.sflag [#allocation3], %s1032
        %s1034 = sand.u32 %s368, 1
        %s1035 = scalar_lea.vmem [#allocation2], %s1034
        // Predicated region
        $region77: #{forward.5} parent=75 // pred_check
          %p1036 = pneg %p352
        $region78: #{forward.5} parent=75 // pred_check_branch
          %1038 = sbr.rel (%p1036) target = $region80
        $region79: #{forward.5} parent=75 // pred_region
          _
        $region80: #{forward.5} parent=75 // pred_fallthru
          _
        // Predicated region
        $region81: #{forward.5} parent=75 // pred_check
          %p1039 = pneg %p378
        $region82: #{forward.5} parent=75 // pred_check_branch
          %1041 = sbr.rel (%p1039) target = $region84
        $region83: #{forward.5} parent=75 // pred_region
          %1043 = vsyncadd %s1033, 0
          %s1044 = scalar_lea.hbm %s15, %s30
          %s1046 = sshll.u32 %s1035, 4
          %s1047 = int_to_ptr.vmem [resolvable:$true] %s1046
          %s1048 = sshll.u32 %s1044, 4
          %s1049 = int_to_ptr.hbm [resolvable:$true] %s1048
          %1051 = dma.vmem_to_hbm [thread:$0]  %s1047, 16, %s1049, %s1033
        $region84: #{forward.5} parent=75 // pred_fallthru
          _
      $region76: #{forward.5} parent=5 // pred_fallthru
        _
      %p1052 = scmp.le.s32.totalorder 2, %s25
      // Predicated region
      $region85: #{forward.5} parent=5 // pred_check
        %p1053 = pneg %p1052
      $region86: #{forward.5} parent=5 // pred_check_branch
        %1055 = sbr.rel (%p1053) target = $region88
      $region87: #{forward.5} parent=5 // pred_region
        %s1056 = ssub.s32 %s25, 2
        // Predicated region
        $region89: #{forward.5} parent=87 // pred_check
          %p1057 = pneg %p358
        $region90: #{forward.5} parent=87 // pred_check_branch
          %1059 = sbr.rel (%p1057) target = $region92
        $region91: #{forward.5} parent=87 // pred_region
          %p1060 = scmp.lt.s32.totalorder %s31, 1
          %s1061 = scalar_select %p1060, %s31, 1
          %s1062 = smul.addr %s1061, 8
          %s1063 = scalar_lea.vmem %s14, %s1062
        $region92: #{forward.5} parent=87 // pred_fallthru
          _
        // Predicated region
        $region93: #{forward.5} parent=87 // pred_check
          %p1064 = pneg %p384
        $region94: #{forward.5} parent=87 // pred_check_branch
          %1066 = sbr.rel (%p1064) target = $region96
        $region95: #{forward.5} parent=87 // pred_region
          %s1067 = sand.u32 %s369, 1
          %s1068 = scalar_lea.sflag [#allocation3], %s1067
          %s1069 = sand.u32 %s369, 1
          %s1070 = scalar_lea.vmem [#allocation2], %s1069
          %1072 = dma.done %s1068, 16
        $region96: #{forward.5} parent=87 // pred_fallthru
          _
      $region88: #{forward.5} parent=5 // pred_fallthru
        _
    $region6: #{forward.5} parent=1 // loop_footer
      %s29 = sadd.s32 1, %s25
    $region7: #{forward.5} parent=1 // loop_footer_branch
      %24 = sbr.rel target = $region3
    $region8: #{forward.5} parent=1 // loop_exit
      _
    %1073 = vsyncpa [#allocation3], 1
    %s1074 = scalar_lea.sflag [#allocation3], 1
    %1075 = vsyncpa %s1074, 1

// kernel: forward.6
$region0: #{forward.6}
  #allocation0 [shape = 'u32[]', space=smem, size = 0x4, offset = 0x4, fixed_abs, tag = 'smem constant byte address 0x4 - core index']
  #allocation1 [shape = 'u32[72,128]{1,0:T(1,128)}', space=vmem, size = 0x9000, scoped, tag = 'internal scratch']
  %s0 = inlined_call_operand.vmem [shape: f32[16,32], index: 0, kind: input, shape index: {}]
  %s1 = inlined_call_operand.vmem [shape: f32[2,1,8], index: 1, kind: input, shape index: {}]
  %s2 = inlined_call_operand.vmem [shape: f32[32,96], index: 2, kind: input, shape index: {}]
  %s3 = inlined_call_operand.vmem [shape: f32[1,96], index: 3, kind: input, shape index: {}]
  %s4 = inlined_call_operand.vmem [shape: f32[32,32], index: 4, kind: input, shape index: {}]
  %s5 = inlined_call_operand.vmem [shape: f32[1,32], index: 5, kind: input, shape index: {}]
  %s6 = inlined_call_operand.vmem [shape: f32[1,32], index: 6, kind: input, shape index: {}]
  %s7 = inlined_call_operand.vmem [shape: f32[1,32], index: 7, kind: input, shape index: {}]
  %s8 = inlined_call_operand.vmem [shape: f32[32,64], index: 8, kind: input, shape index: {}]
  %s9 = inlined_call_operand.vmem [shape: f32[1,64], index: 9, kind: input, shape index: {}]
  %s10 = inlined_call_operand.vmem [shape: f32[64,32], index: 10, kind: input, shape index: {}]
  %s11 = inlined_call_operand.vmem [shape: f32[1,32], index: 11, kind: input, shape index: {}]
  %s12 = inlined_call_operand.vmem [shape: f32[1,32], index: 12, kind: input, shape index: {}]
  %s13 = inlined_call_operand.vmem [shape: f32[1,32], index: 13, kind: input, shape index: {}]
  %s14 = inlined_call_operand.vmem [shape: f32[16,32], index: 14, kind: output, shape index: {0}]
  %s15 = inlined_call_operand.vmem [shape: f32[2,1,8], index: 15, kind: output, shape index: {1}]
  %16 = xla_tuple %s14, %s15
  %s17 = sld [smem:[#allocation0]]
  $region97: #{forward.6} parent=0
    _
  %s19 = ssub.s32 1, %s17
  %s20 = scalar_select 0, %s19, %s17
  loop: start=0, step=1, limit=4
  $region2: #{forward.6} parent=0 // loop_pre_header
    _
  $region3: #{forward.6} parent=0 // loop_header
    %s22 = sphi 0, %s26
    %p23 = scmp.ge.s32.totalorder %s22, 4
    %s32 = sphi 0, %s34
    %s35 = sphi 0, %s32
    %s36 = sphi 0, %s35
    %s52 = sphi 0, %s36
    %s58 = sphi 0, %s60
    %s61 = sphi 0, %s58
    %s62 = sphi 0, %s61
    %s78 = sphi 0, %s62
    %s82 = sphi 0, %s82
    %s84 = sphi 0, %s82
    %s85 = sphi 0, %s84
    %s99 = sphi 0, %s85
    %s103 = sphi 0, %s103
    %s105 = sphi 0, %s103
    %s106 = sphi 0, %s105
    %s120 = sphi 0, %s106
    %s124 = sphi 0, %s124
    %s126 = sphi 0, %s124
    %s127 = sphi 0, %s126
    %s141 = sphi 0, %s127
    %s145 = sphi 0, %s145
    %s147 = sphi 0, %s145
    %s148 = sphi 0, %s147
    %s162 = sphi 0, %s148
    %s166 = sphi 0, %s166
    %s168 = sphi 0, %s166
    %s169 = sphi 0, %s168
    %s183 = sphi 0, %s169
    %s187 = sphi 0, %s187
    %s189 = sphi 0, %s187
    %s190 = sphi 0, %s189
    %s204 = sphi 0, %s190
    %s208 = sphi 0, %s208
    %s210 = sphi 0, %s208
    %s211 = sphi 0, %s210
    %s225 = sphi 0, %s211
    %s229 = sphi 0, %s229
    %s231 = sphi 0, %s229
    %s232 = sphi 0, %s231
    %s246 = sphi 0, %s232
    %s250 = sphi 0, %s250
    %s252 = sphi 0, %s250
    %s253 = sphi 0, %s252
    %s267 = sphi 0, %s253
    %s271 = sphi 0, %s271
    %s273 = sphi 0, %s271
    %s274 = sphi 0, %s273
    %s288 = sphi 0, %s274
    %s292 = sphi 0, %s292
    %s294 = sphi 0, %s292
    %s295 = sphi 0, %s294
    %s309 = sphi 0, %s295
    %s313 = sphi 0, %s313
    %s315 = sphi 0, %s313
    %s316 = sphi 0, %s315
    %s330 = sphi 0, %s316
    %s336 = sphi 0, %s338
    %s339 = sphi 0, %s336
    %s340 = sphi 0, %s339
    %s356 = sphi 0, %s340
    %s362 = sphi 0, %s364
    %s365 = sphi 0, %s362
    %s366 = sphi 0, %s365
    %s382 = sphi 0, %s366
  $region4: #{forward.6} parent=0 // loop_header_branch
    %25 = sbr.rel (%p23) target = $region8
  $region5: #{forward.6} parent=0 // loop_body
    %s27 = ssub.s32 %s22, 1
    %s28 = ssub.s32 %s22, 2
    %s29 = sadd.s32 %s22, 1
    %s30 = ssub.s32 %s22, %s29
    %p31 = scmp.eq.s32.totalorder %s30, 0
    %s33 = sadd.s32 %s32, 1
    %s34 = scalar_select %p31, %s32, %s33
    %p37 = pneg %p31
    %p38 = scmp.eq.s32.totalorder %s22, 1
    %p39 = por %p37, %p38
    %p40 = scmp.ne.s32.totalorder %s32, %s35
    %p41 = scmp.eq.s32.totalorder %s22, 0
    %p42 = por %p40, %p41
    %p43 = scmp.ne.s32.totalorder %s32, %s35
    %p44 = scmp.eq.s32.totalorder %s27, 1
    %p45 = por %p43, %p44
    %p46 = scmp.ne.s32.totalorder %s35, %s36
    %p47 = scmp.eq.s32.totalorder %s27, 0
    %p48 = por %p46, %p47
    %p49 = scmp.ne.s32.totalorder %s35, %s36
    %p50 = scmp.eq.s32.totalorder %s28, 1
    %p51 = por %p49, %p50
    %p53 = scmp.ne.s32.totalorder %s36, %s52
    %p54 = scmp.eq.s32.totalorder %s28, 0
    %p55 = por %p53, %p54
    %s56 = ssub.s32 %s22, %s29
    %p57 = scmp.eq.s32.totalorder %s56, 0
    %s59 = sadd.s32 %s58, 1
    %s60 = scalar_select %p57, %s58, %s59
    %p63 = pneg %p57
    %p64 = scmp.eq.s32.totalorder %s22, 1
    %p65 = por %p63, %p64
    %p66 = scmp.ne.s32.totalorder %s58, %s61
    %p67 = scmp.eq.s32.totalorder %s22, 0
    %p68 = por %p66, %p67
    %p69 = scmp.ne.s32.totalorder %s58, %s61
    %p70 = scmp.eq.s32.totalorder %s27, 1
    %p71 = por %p69, %p70
    %p72 = scmp.ne.s32.totalorder %s61, %s62
    %p73 = scmp.eq.s32.totalorder %s27, 0
    %p74 = por %p72, %p73
    %p75 = scmp.ne.s32.totalorder %s61, %s62
    %p76 = scmp.eq.s32.totalorder %s28, 1
    %p77 = por %p75, %p76
    %p79 = scmp.ne.s32.totalorder %s62, %s78
    %p80 = scmp.eq.s32.totalorder %s28, 0
    %p81 = por %p79, %p80
    %s83 = sadd.s32 %s82, 1
    %p86 = scmp.eq.s32.totalorder %s22, 1
    %p87 = scmp.ne.s32.totalorder %s82, %s84
    %p88 = scmp.eq.s32.totalorder %s22, 0
    %p89 = por %p87, %p88
    %p90 = scmp.ne.s32.totalorder %s82, %s84
    %p91 = scmp.eq.s32.totalorder %s27, 1
    %p92 = por %p90, %p91
    %p93 = scmp.ne.s32.totalorder %s84, %s85
    %p94 = scmp.eq.s32.totalorder %s27, 0
    %p95 = por %p93, %p94
    %p96 = scmp.ne.s32.totalorder %s84, %s85
    %p97 = scmp.eq.s32.totalorder %s28, 1
    %p98 = por %p96, %p97
    %p100 = scmp.ne.s32.totalorder %s85, %s99
    %p101 = scmp.eq.s32.totalorder %s28, 0
    %p102 = por %p100, %p101
    %s104 = sadd.s32 %s103, 1
    %p107 = scmp.eq.s32.totalorder %s22, 1
    %p108 = scmp.ne.s32.totalorder %s103, %s105
    %p109 = scmp.eq.s32.totalorder %s22, 0
    %p110 = por %p108, %p109
    %p111 = scmp.ne.s32.totalorder %s103, %s105
    %p112 = scmp.eq.s32.totalorder %s27, 1
    %p113 = por %p111, %p112
    %p114 = scmp.ne.s32.totalorder %s105, %s106
    %p115 = scmp.eq.s32.totalorder %s27, 0
    %p116 = por %p114, %p115
    %p117 = scmp.ne.s32.totalorder %s105, %s106
    %p118 = scmp.eq.s32.totalorder %s28, 1
    %p119 = por %p117, %p118
    %p121 = scmp.ne.s32.totalorder %s106, %s120
    %p122 = scmp.eq.s32.totalorder %s28, 0
    %p123 = por %p121, %p122
    %s125 = sadd.s32 %s124, 1
    %p128 = scmp.eq.s32.totalorder %s22, 1
    %p129 = scmp.ne.s32.totalorder %s124, %s126
    %p130 = scmp.eq.s32.totalorder %s22, 0
    %p131 = por %p129, %p130
    %p132 = scmp.ne.s32.totalorder %s124, %s126
    %p133 = scmp.eq.s32.totalorder %s27, 1
    %p134 = por %p132, %p133
    %p135 = scmp.ne.s32.totalorder %s126, %s127
    %p136 = scmp.eq.s32.totalorder %s27, 0
    %p137 = por %p135, %p136
    %p138 = scmp.ne.s32.totalorder %s126, %s127
    %p139 = scmp.eq.s32.totalorder %s28, 1
    %p140 = por %p138, %p139
    %p142 = scmp.ne.s32.totalorder %s127, %s141
    %p143 = scmp.eq.s32.totalorder %s28, 0
    %p144 = por %p142, %p143
    %s146 = sadd.s32 %s145, 1
    %p149 = scmp.eq.s32.totalorder %s22, 1
    %p150 = scmp.ne.s32.totalorder %s145, %s147
    %p151 = scmp.eq.s32.totalorder %s22, 0
    %p152 = por %p150, %p151
    %p153 = scmp.ne.s32.totalorder %s145, %s147
    %p154 = scmp.eq.s32.totalorder %s27, 1
    %p155 = por %p153, %p154
    %p156 = scmp.ne.s32.totalorder %s147, %s148
    %p157 = scmp.eq.s32.totalorder %s27, 0
    %p158 = por %p156, %p157
    %p159 = scmp.ne.s32.totalorder %s147, %s148
    %p160 = scmp.eq.s32.totalorder %s28, 1
    %p161 = por %p159, %p160
    %p163 = scmp.ne.s32.totalorder %s148, %s162
    %p164 = scmp.eq.s32.totalorder %s28, 0
    %p165 = por %p163, %p164
    %s167 = sadd.s32 %s166, 1
    %p170 = scmp.eq.s32.totalorder %s22, 1
    %p171 = scmp.ne.s32.totalorder %s166, %s168
    %p172 = scmp.eq.s32.totalorder %s22, 0
    %p173 = por %p171, %p172
    %p174 = scmp.ne.s32.totalorder %s166, %s168
    %p175 = scmp.eq.s32.totalorder %s27, 1
    %p176 = por %p174, %p175
    %p177 = scmp.ne.s32.totalorder %s168, %s169
    %p178 = scmp.eq.s32.totalorder %s27, 0
    %p179 = por %p177, %p178
    %p180 = scmp.ne.s32.totalorder %s168, %s169
    %p181 = scmp.eq.s32.totalorder %s28, 1
    %p182 = por %p180, %p181
    %p184 = scmp.ne.s32.totalorder %s169, %s183
    %p185 = scmp.eq.s32.totalorder %s28, 0
    %p186 = por %p184, %p185
    %s188 = sadd.s32 %s187, 1
    %p191 = scmp.eq.s32.totalorder %s22, 1
    %p192 = scmp.ne.s32.totalorder %s187, %s189
    %p193 = scmp.eq.s32.totalorder %s22, 0
    %p194 = por %p192, %p193
    %p195 = scmp.ne.s32.totalorder %s187, %s189
    %p196 = scmp.eq.s32.totalorder %s27, 1
    %p197 = por %p195, %p196
    %p198 = scmp.ne.s32.totalorder %s189, %s190
    %p199 = scmp.eq.s32.totalorder %s27, 0
    %p200 = por %p198, %p199
    %p201 = scmp.ne.s32.totalorder %s189, %s190
    %p202 = scmp.eq.s32.totalorder %s28, 1
    %p203 = por %p201, %p202
    %p205 = scmp.ne.s32.totalorder %s190, %s204
    %p206 = scmp.eq.s32.totalorder %s28, 0
    %p207 = por %p205, %p206
    %s209 = sadd.s32 %s208, 1
    %p212 = scmp.eq.s32.totalorder %s22, 1
    %p213 = scmp.ne.s32.totalorder %s208, %s210
    %p214 = scmp.eq.s32.totalorder %s22, 0
    %p215 = por %p213, %p214
    %p216 = scmp.ne.s32.totalorder %s208, %s210
    %p217 = scmp.eq.s32.totalorder %s27, 1
    %p218 = por %p216, %p217
    %p219 = scmp.ne.s32.totalorder %s210, %s211
    %p220 = scmp.eq.s32.totalorder %s27, 0
    %p221 = por %p219, %p220
    %p222 = scmp.ne.s32.totalorder %s210, %s211
    %p223 = scmp.eq.s32.totalorder %s28, 1
    %p224 = por %p222, %p223
    %p226 = scmp.ne.s32.totalorder %s211, %s225
    %p227 = scmp.eq.s32.totalorder %s28, 0
    %p228 = por %p226, %p227
    %s230 = sadd.s32 %s229, 1
    %p233 = scmp.eq.s32.totalorder %s22, 1
    %p234 = scmp.ne.s32.totalorder %s229, %s231
    %p235 = scmp.eq.s32.totalorder %s22, 0
    %p236 = por %p234, %p235
    %p237 = scmp.ne.s32.totalorder %s229, %s231
    %p238 = scmp.eq.s32.totalorder %s27, 1
    %p239 = por %p237, %p238
    %p240 = scmp.ne.s32.totalorder %s231, %s232
    %p241 = scmp.eq.s32.totalorder %s27, 0
    %p242 = por %p240, %p241
    %p243 = scmp.ne.s32.totalorder %s231, %s232
    %p244 = scmp.eq.s32.totalorder %s28, 1
    %p245 = por %p243, %p244
    %p247 = scmp.ne.s32.totalorder %s232, %s246
    %p248 = scmp.eq.s32.totalorder %s28, 0
    %p249 = por %p247, %p248
    %s251 = sadd.s32 %s250, 1
    %p254 = scmp.eq.s32.totalorder %s22, 1
    %p255 = scmp.ne.s32.totalorder %s250, %s252
    %p256 = scmp.eq.s32.totalorder %s22, 0
    %p257 = por %p255, %p256
    %p258 = scmp.ne.s32.totalorder %s250, %s252
    %p259 = scmp.eq.s32.totalorder %s27, 1
    %p260 = por %p258, %p259
    %p261 = scmp.ne.s32.totalorder %s252, %s253
    %p262 = scmp.eq.s32.totalorder %s27, 0
    %p263 = por %p261, %p262
    %p264 = scmp.ne.s32.totalorder %s252, %s253
    %p265 = scmp.eq.s32.totalorder %s28, 1
    %p266 = por %p264, %p265
    %p268 = scmp.ne.s32.totalorder %s253, %s267
    %p269 = scmp.eq.s32.totalorder %s28, 0
    %p270 = por %p268, %p269
    %s272 = sadd.s32 %s271, 1
    %p275 = scmp.eq.s32.totalorder %s22, 1
    %p276 = scmp.ne.s32.totalorder %s271, %s273
    %p277 = scmp.eq.s32.totalorder %s22, 0
    %p278 = por %p276, %p277
    %p279 = scmp.ne.s32.totalorder %s271, %s273
    %p280 = scmp.eq.s32.totalorder %s27, 1
    %p281 = por %p279, %p280
    %p282 = scmp.ne.s32.totalorder %s273, %s274
    %p283 = scmp.eq.s32.totalorder %s27, 0
    %p284 = por %p282, %p283
    %p285 = scmp.ne.s32.totalorder %s273, %s274
    %p286 = scmp.eq.s32.totalorder %s28, 1
    %p287 = por %p285, %p286
    %p289 = scmp.ne.s32.totalorder %s274, %s288
    %p290 = scmp.eq.s32.totalorder %s28, 0
    %p291 = por %p289, %p290
    %s293 = sadd.s32 %s292, 1
    %p296 = scmp.eq.s32.totalorder %s22, 1
    %p297 = scmp.ne.s32.totalorder %s292, %s294
    %p298 = scmp.eq.s32.totalorder %s22, 0
    %p299 = por %p297, %p298
    %p300 = scmp.ne.s32.totalorder %s292, %s294
    %p301 = scmp.eq.s32.totalorder %s27, 1
    %p302 = por %p300, %p301
    %p303 = scmp.ne.s32.totalorder %s294, %s295
    %p304 = scmp.eq.s32.totalorder %s27, 0
    %p305 = por %p303, %p304
    %p306 = scmp.ne.s32.totalorder %s294, %s295
    %p307 = scmp.eq.s32.totalorder %s28, 1
    %p308 = por %p306, %p307
    %p310 = scmp.ne.s32.totalorder %s295, %s309
    %p311 = scmp.eq.s32.totalorder %s28, 0
    %p312 = por %p310, %p311
    %s314 = sadd.s32 %s313, 1
    %p317 = scmp.eq.s32.totalorder %s22, 1
    %p318 = scmp.ne.s32.totalorder %s313, %s315
    %p319 = scmp.eq.s32.totalorder %s22, 0
    %p320 = por %p318, %p319
    %p321 = scmp.ne.s32.totalorder %s313, %s315
    %p322 = scmp.eq.s32.totalorder %s27, 1
    %p323 = por %p321, %p322
    %p324 = scmp.ne.s32.totalorder %s315, %s316
    %p325 = scmp.eq.s32.totalorder %s27, 0
    %p326 = por %p324, %p325
    %p327 = scmp.ne.s32.totalorder %s315, %s316
    %p328 = scmp.eq.s32.totalorder %s28, 1
    %p329 = por %p327, %p328
    %p331 = scmp.ne.s32.totalorder %s316, %s330
    %p332 = scmp.eq.s32.totalorder %s28, 0
    %p333 = por %p331, %p332
    %s334 = ssub.s32 %s22, %s29
    %p335 = scmp.eq.s32.totalorder %s334, 0
    %s337 = sadd.s32 %s336, 1
    %s338 = scalar_select %p335, %s336, %s337
    %p341 = pneg %p335
    %p342 = scmp.eq.s32.totalorder %s22, 1
    %p343 = por %p341, %p342
    %p344 = scmp.ne.s32.totalorder %s336, %s339
    %p345 = scmp.eq.s32.totalorder %s22, 0
    %p346 = por %p344, %p345
    %p347 = scmp.ne.s32.totalorder %s336, %s339
    %p348 = scmp.eq.s32.totalorder %s27, 1
    %p349 = por %p347, %p348
    %p350 = scmp.ne.s32.totalorder %s339, %s340
    %p351 = scmp.eq.s32.totalorder %s27, 0
    %p352 = por %p350, %p351
    %p353 = scmp.ne.s32.totalorder %s339, %s340
    %p354 = scmp.eq.s32.totalorder %s28, 1
    %p355 = por %p353, %p354
    %p357 = scmp.ne.s32.totalorder %s340, %s356
    %p358 = scmp.eq.s32.totalorder %s28, 0
    %p359 = por %p357, %p358
    %s360 = ssub.s32 %s22, %s29
    %p361 = scmp.eq.s32.totalorder %s360, 0
    %s363 = sadd.s32 %s362, 1
    %s364 = scalar_select %p361, %s362, %s363
    %p367 = pneg %p361
    %p368 = scmp.eq.s32.totalorder %s22, 1
    %p369 = por %p367, %p368
    %p370 = scmp.ne.s32.totalorder %s362, %s365
    %p371 = scmp.eq.s32.totalorder %s22, 0
    %p372 = por %p370, %p371
    %p373 = scmp.ne.s32.totalorder %s362, %s365
    %p374 = scmp.eq.s32.totalorder %s27, 1
    %p375 = por %p373, %p374
    %p376 = scmp.ne.s32.totalorder %s365, %s366
    %p377 = scmp.eq.s32.totalorder %s27, 0
    %p378 = por %p376, %p377
    %p379 = scmp.ne.s32.totalorder %s365, %s366
    %p380 = scmp.eq.s32.totalorder %s28, 1
    %p381 = por %p379, %p380
    %p383 = scmp.ne.s32.totalorder %s366, %s382
    %p384 = scmp.eq.s32.totalorder %s28, 0
    %p385 = por %p383, %p384
    %p386 = scmp.le.s32.totalorder 1, %s22
    %p387 = scmp.lt.s32.totalorder %s22, 3
    %p388 = pnand %p386, %p387
    %p389 = pneg %p388
    // Predicated region
    $region9: #{forward.6} parent=5 // pred_check
      _
    $region10: #{forward.6} parent=5 // pred_check_branch
      %391 = sbr.rel (%p388) target = $region12
    $region11: #{forward.6} parent=5 // pred_region
      %s392 = ssub.s32 %s22, 1
      // Predicated region
      $region13: #{forward.6} parent=11 // pred_check
        %p393 = pneg %p95
      $region14: #{forward.6} parent=11 // pred_check_branch
        %395 = sbr.rel (%p393) target = $region16
      $region15: #{forward.6} parent=11 // pred_region
        _
      $region16: #{forward.6} parent=11 // pred_fallthru
        _
      // Predicated region
      $region17: #{forward.6} parent=11 // pred_check
        %p396 = pneg %p116
      $region18: #{forward.6} parent=11 // pred_check_branch
        %398 = sbr.rel (%p396) target = $region20
      $region19: #{forward.6} parent=11 // pred_region
        _
      $region20: #{forward.6} parent=11 // pred_fallthru
        _
      // Predicated region
      $region21: #{forward.6} parent=11 // pred_check
        %p399 = pneg %p137
      $region22: #{forward.6} parent=11 // pred_check_branch
        %401 = sbr.rel (%p399) target = $region24
      $region23: #{forward.6} parent=11 // pred_region
        _
      $region24: #{forward.6} parent=11 // pred_fallthru
        _
      // Predicated region
      $region25: #{forward.6} parent=11 // pred_check
        %p402 = pneg %p158
      $region26: #{forward.6} parent=11 // pred_check_branch
        %404 = sbr.rel (%p402) target = $region28
      $region27: #{forward.6} parent=11 // pred_region
        _
      $region28: #{forward.6} parent=11 // pred_fallthru
        _
      // Predicated region
      $region29: #{forward.6} parent=11 // pred_check
        %p405 = pneg %p179
      $region30: #{forward.6} parent=11 // pred_check_branch
        %407 = sbr.rel (%p405) target = $region32
      $region31: #{forward.6} parent=11 // pred_region
        _
      $region32: #{forward.6} parent=11 // pred_fallthru
        _
      // Predicated region
      $region33: #{forward.6} parent=11 // pred_check
        %p408 = pneg %p200
      $region34: #{forward.6} parent=11 // pred_check_branch
        %410 = sbr.rel (%p408) target = $region36
      $region35: #{forward.6} parent=11 // pred_region
        _
      $region36: #{forward.6} parent=11 // pred_fallthru
        _
      // Predicated region
      $region37: #{forward.6} parent=11 // pred_check
        %p411 = pneg %p221
      $region38: #{forward.6} parent=11 // pred_check_branch
        %413 = sbr.rel (%p411) target = $region40
      $region39: #{forward.6} parent=11 // pred_region
        _
      $region40: #{forward.6} parent=11 // pred_fallthru
        _
      // Predicated region
      $region41: #{forward.6} parent=11 // pred_check
        %p414 = pneg %p242
      $region42: #{forward.6} parent=11 // pred_check_branch
        %416 = sbr.rel (%p414) target = $region44
      $region43: #{forward.6} parent=11 // pred_region
        _
      $region44: #{forward.6} parent=11 // pred_fallthru
        _
      // Predicated region
      $region45: #{forward.6} parent=11 // pred_check
        %p417 = pneg %p263
      $region46: #{forward.6} parent=11 // pred_check_branch
        %419 = sbr.rel (%p417) target = $region48
      $region47: #{forward.6} parent=11 // pred_region
        _
      $region48: #{forward.6} parent=11 // pred_fallthru
        _
      // Predicated region
      $region49: #{forward.6} parent=11 // pred_check
        %p420 = pneg %p284
      $region50: #{forward.6} parent=11 // pred_check_branch
        %422 = sbr.rel (%p420) target = $region52
      $region51: #{forward.6} parent=11 // pred_region
        _
      $region52: #{forward.6} parent=11 // pred_fallthru
        _
      // Predicated region
      $region53: #{forward.6} parent=11 // pred_check
        %p423 = pneg %p305
      $region54: #{forward.6} parent=11 // pred_check_branch
        %425 = sbr.rel (%p423) target = $region56
      $region55: #{forward.6} parent=11 // pred_region
        _
      $region56: #{forward.6} parent=11 // pred_fallthru
        _
      // Predicated region
      $region57: #{forward.6} parent=11 // pred_check
        %p426 = pneg %p326
      $region58: #{forward.6} parent=11 // pred_check_branch
        %428 = sbr.rel (%p426) target = $region60
      $region59: #{forward.6} parent=11 // pred_region
        _
      $region60: #{forward.6} parent=11 // pred_fallthru
        _
    $region12: #{forward.6} parent=5 // pred_fallthru
      _
    %p429 = scmp.lt.s32.totalorder %s22, 2
    // Predicated region
    $region61: #{forward.6} parent=5 // pred_check
      %p430 = pneg %p429
    $region62: #{forward.6} parent=5 // pred_check_branch
      %432 = sbr.rel (%p430) target = $region64
    $region63: #{forward.6} parent=5 // pred_region
      // Predicated region
      $region65: #{forward.6} parent=63 // pred_check
        %p433 = pneg %p42
      $region66: #{forward.6} parent=63 // pred_check_branch
        %435 = sbr.rel (%p433) target = $region68
      $region67: #{forward.6} parent=63 // pred_region
        %p436 = scmp.lt.s32.totalorder %s22, 1
        %s437 = scalar_select %p436, %s22, 1
        %s438 = smul.addr %s437, 8
        %s439 = scalar_lea.vmem %s0, %s438
      $region68: #{forward.6} parent=63 // pred_fallthru
        _
      // Predicated region
      $region69: #{forward.6} parent=63 // pred_check
        %p440 = pneg %p68
      $region70: #{forward.6} parent=63 // pred_check_branch
        %442 = sbr.rel (%p440) target = $region72
      $region71: #{forward.6} parent=63 // pred_region
        %p443 = scmp.lt.s32.totalorder %s22, 1
        %s444 = scalar_select %p443, %s22, 1
        %s445 = scalar_lea.vmem %s1, %s444
      $region72: #{forward.6} parent=63 // pred_fallthru
        _
    $region64: #{forward.6} parent=5 // pred_fallthru
      _
    %p446 = scmp.le.s32.totalorder 1, %s22
    %p447 = scmp.lt.s32.totalorder %s22, 3
    %p448 = pnand %p446, %p447
    %p449 = pneg %p448
    // Predicated region
    $region73: #{forward.6} parent=5 // pred_check
      _
    $region74: #{forward.6} parent=5 // pred_check_branch
      %451 = sbr.rel (%p448) target = $region76
    $region75: #{forward.6} parent=5 // pred_region
      %s452 = ssub.s32 %s22, 1
      %p453 = scmp.lt.s32.totalorder %s27, 1
      %s454 = scalar_select %p453, %s27, 1
      %s455 = smul.addr %s454, 8
      %s456 = scalar_lea.vmem %s0, %s455
      %p457 = pneg %p48
      %p458 = pneg %p45
      %p459 = scmp.lt.s32.totalorder %s27, 1
      %s460 = scalar_select %p459, %s27, 1
      %s461 = scalar_lea.vmem %s1, %s460
      %p462 = pneg %p74
      %p463 = pneg %p71
      %p464 = pneg %p95
      %p465 = pneg %p92
      %p466 = pneg %p116
      %p467 = pneg %p113
      %p468 = pneg %p137
      %p469 = pneg %p134
      %p470 = pneg %p158
      %p471 = pneg %p155
      %p472 = pneg %p179
      %p473 = pneg %p176
      %p474 = pneg %p200
      %p475 = pneg %p197
      %p476 = pneg %p221
      %p477 = pneg %p218
      %p478 = pneg %p242
      %p479 = pneg %p239
      %p480 = pneg %p263
      %p481 = pneg %p260
      %p482 = pneg %p284
      %p483 = pneg %p281
      %p484 = pneg %p305
      %p485 = pneg %p302
      %p486 = pneg %p326
      %p487 = pneg %p323
      %p488 = pneg %p352
      %p489 = pneg %p349
      %p490 = scmp.lt.s32.totalorder %s27, 1
      %s491 = scalar_select %p490, %s27, 1
      %s492 = smul.addr %s491, 8
      %s493 = scalar_lea.vmem %s14, %s492
      %p494 = pneg %p378
      %p495 = pneg %p375
      %p496 = scmp.lt.s32.totalorder %s27, 1
      %s497 = scalar_select %p496, %s27, 1
      %s498 = scalar_lea.vmem %s15, %s497
      %p499 = scmp.lt.s32.totalorder %s27, 1
      %s500 = scalar_select %p499, %s27, 1
      %s501 = smul.addr %s500, 8
      %s502 = scalar_lea.vmem %s0, %s501
      %p503 = scmp.lt.s32.totalorder %s27, 1
      %s504 = scalar_select %p503, %s27, 1
      %s505 = scalar_lea.vmem %s1, %s504
      %p506 = scmp.lt.s32.totalorder %s27, 1
      %s507 = scalar_select %p506, %s27, 1
      %s508 = smul.addr %s507, 8
      %s509 = scalar_lea.vmem %s14, %s508
      %p510 = scmp.lt.s32.totalorder %s27, 1
      %s511 = scalar_select %p510, %s27, 1
      %s512 = scalar_lea.vmem %s15, %s511
      %v514 = vld [vmem:[%s502] sm:$0xff]
      %v515 = vld [vmem:[%s505] sm:$0x1]
      %v516 = vld [vmem:[%s2] sm:$0xff]
      %v517 = vld [vmem:[%s2 + $0x8] sm:$0xff]
      %v518 = vld [vmem:[%s2 + $0x10] sm:$0xff]
      %v519 = vld [vmem:[%s2 + $0x18] sm:$0xff]
      %v520 = vpack.c.bf16 %v514, %v514
      %v521 = vpack.c.bf16 %v517, %v516
      %v522 = vpack.c.bf16 %v519, %v518
      %v523 = vld [vmem:[%s3] sm:$0x1]
      %v525 = vperm.slane %v523, 0
      %vm527 = vcmask 261120
      %v529 = vsel %vm527, %v520, 0
      %531 = vmatpush.bf16.msra.mxu0 0
      %532 = vmatpush.bf16.msra.mxu0 0
      %533 = vmatpush.bf16.msra.mxu0 0
      %534 = vmatpush.bf16.msra.mxu0 0
      %535 = vmatpush.bf16.msra.mxu0 0
      %536 = vmatpush.bf16.msra.mxu0 0
      %537 = vmatpush.bf16.msra.mxu0 %v522
      %538 = vmatpush.bf16.msra.mxu0 %v521
      %539 = vmatmul.bf16.gmra.mxu0 %v529
      %v540 = vpop.f32.mrf.mxu0
      %v541 = vadd.f32 %v525, %v540
      %v542 = vpop.f32.mrf.mxu0
      %543 = vdwg.mxu0
      %v544 = vpack.c.bf16 %v541, %v541
      %546 = vrot.lane.b32.xlu0 %v544, 96
      %v547 = vpop.permute.xlu0 %546
      %vm548 = vcmask 64512
      %v550 = vsel %vm548, %v544, 0
      %v553 = vsel %vm548, %v547, 0
      %555 = vmatpush.bf16.xpose.msra.mxu0 0
      %556 = vmatpush.bf16.xpose.msra.mxu0 0
      %557 = vmatpush.bf16.xpose.msra.mxu0 0
      %558 = vmatpush.bf16.xpose.msra.mxu0 0
      %559 = vmatpush.bf16.xpose.msra.mxu0 0
      %560 = vmatpush.bf16.xpose.msra.mxu0 0
      %561 = vmatpush.bf16.xpose.msra.mxu0 0
      %562 = vmatpush.bf16.xpose.msra.mxu0 %v553
      %563 = vmatmul.bf16.gmra.mxu0 %v550
      %v564 = vpop.f32.mrf.mxu0
      %v565 = vadd.f32 0.0, %v564
      %v566 = vpop.f32.mrf.mxu0
      %567 = vdwg.mxu0
      %v568 = vmul.f32 %v565, 0.35355338
      %v570 = vperm.slane %v515, 0
      %v572 = vadd.f32 %v568, %v570
      %v573 = vsel %vm548, %v572, -inf
      %574 = vmax.xlane.f32.xlu0 %v573
      %v575 = vpop.xlane.xlu0 %574
      %v576 = vsub.f32 %v572, %v575
      %v577 = vmul.f32 %v576, 1.442695
      %v578 = vpow.pop %v577
      %v579 = vsel %vm548, %v578, 0.0
      %580 = vadd.xlane.f32.xlu0 %v579
      %v581 = vpop.xlane.xlu0 %580
      %v582 = vrcp.pop %v581
      %v583 = vmul.f32 %v578, %v582
      %v584 = vadd.f32 %v583, 0.0
      %v585 = vpack.c.bf16 %v583, %v583
      %586 = vrot.lane.b32.xlu0 %v544, 64
      %v587 = vpop.permute.xlu0 %586
      %v589 = vsel %vm548, %v585, 0
      %vm591 = vcmask 1043456
      %v593 = vsel %vm591, %v587, 0
      %595 = vmatpush.bf16.msra.mxu0 0
      %596 = vmatpush.bf16.msra.mxu0 0
      %597 = vmatpush.bf16.msra.mxu0 0
      %598 = vmatpush.bf16.msra.mxu0 0
      %599 = vmatpush.bf16.msra.mxu0 0
      %600 = vmatpush.bf16.msra.mxu0 0
      %601 = vmatpush.bf16.msra.mxu0 0
      %602 = vmatpush.bf16.msra.mxu0 %v593
      %603 = vmatmul.bf16.gmra.mxu0 %v589
      %v604 = vpop.f32.mrf.mxu0
      %v605 = vadd.f32 0.0, %v604
      %v606 = vpop.f32.mrf.mxu0
      %607 = vdwg.mxu0
      %v608 = vld [vmem:[%s4] sm:$0xff]
      %v609 = vpack.c.bf16 %v605, %v605
      %v610 = vpack.c.bf16 %v608, %v608
      %611 = vrot.lane.b32.xlu0 %v544, 120
      %v612 = vpop.permute.xlu0 %611
      %613 = vrot.lane.b32.xlu0 %v544, 88
      %v614 = vpop.permute.xlu0 %613
      %v616 = vsel %vm548, %v612, 0
      %v619 = vsel %vm548, %v614, 0
      %621 = vmatpush.bf16.xpose.msra.mxu0 0
      %622 = vmatpush.bf16.xpose.msra.mxu0 0
      %623 = vmatpush.bf16.xpose.msra.mxu0 0
      %624 = vmatpush.bf16.xpose.msra.mxu0 0
      %625 = vmatpush.bf16.xpose.msra.mxu0 0
      %626 = vmatpush.bf16.xpose.msra.mxu0 0
      %627 = vmatpush.bf16.xpose.msra.mxu0 0
      %628 = vmatpush.bf16.xpose.msra.mxu0 %v619
      %629 = vmatmul.bf16.gmra.mxu0 %v616
      %v630 = vpop.f32.mrf.mxu0
      %v631 = vadd.f32 0.0, %v630
      %v632 = vpop.f32.mrf.mxu0
      %633 = vdwg.mxu0
      %v634 = vmul.f32 %v631, 0.35355338
      %v635 = vadd.f32 %v634, %v570
      %v636 = vsel %vm548, %v635, -inf
      %637 = vmax.xlane.f32.xlu0 %v636
      %v638 = vpop.xlane.xlu0 %637
      %v639 = vsub.f32 %v635, %v638
      %v640 = vmul.f32 %v639, 1.442695
      %v641 = vpow.pop %v640
      %v642 = vsel %vm548, %v641, 0.0
      %643 = vadd.xlane.f32.xlu0 %v642
      %v644 = vpop.xlane.xlu0 %643
      %v645 = vrcp.pop %v644
      %v646 = vmul.f32 %v641, %v645
      %v647 = vadd.f32 %v584, %v646
      %v648 = vpack.c.bf16 %v646, %v646
      %649 = vrot.lane.b32.xlu0 %v544, 56
      %v650 = vpop.permute.xlu0 %649
      %v652 = vsel %vm548, %v648, 0
      %v655 = vsel %vm591, %v650, 0
      %657 = vmatpush.bf16.msra.mxu0 0
      %658 = vmatpush.bf16.msra.mxu0 0
      %659 = vmatpush.bf16.msra.mxu0 0
      %660 = vmatpush.bf16.msra.mxu0 0
      %661 = vmatpush.bf16.msra.mxu0 0
      %662 = vmatpush.bf16.msra.mxu0 0
      %663 = vmatpush.bf16.msra.mxu0 0
      %664 = vmatpush.bf16.msra.mxu0 %v655
      %665 = vmatmul.bf16.gmra.mxu0 %v652
      %v666 = vpop.f32.mrf.mxu0
      %v667 = vadd.f32 0.0, %v666
      %v668 = vpop.f32.mrf.mxu0
      %669 = vdwg.mxu0
      %v670 = vld [vmem:[%s4 + $0x8] sm:$0xff]
      %v671 = vpack.c.bf16 %v667, %v667
      %v672 = vpack.c.bf16 %v670, %v670
      %v674 = vsel %vm548, %v671, 0
      %v677 = vsel %vm591, %v672, 0
      %679 = vmatpush.bf16.msra.mxu0 0
      %680 = vmatpush.bf16.msra.mxu0 0
      %681 = vmatpush.bf16.msra.mxu0 0
      %682 = vmatpush.bf16.msra.mxu0 0
      %683 = vmatpush.bf16.msra.mxu0 0
      %684 = vmatpush.bf16.msra.mxu0 0
      %685 = vmatpush.bf16.msra.mxu0 0
      %686 = vmatpush.bf16.msra.mxu0 %v677
      %687 = vmatmul.bf16.gmra.mxu0 %v674
      %v688 = vpop.f32.mrf.mxu0
      %v689 = vadd.f32 0.0, %v688
      %v690 = vpop.f32.mrf.mxu0
      %691 = vdwg.mxu0
      %v693 = vsel %vm548, %v609, 0
      %v696 = vsel %vm591, %v610, 0
      %698 = vmatpush.bf16.msra.mxu0 0
      %699 = vmatpush.bf16.msra.mxu0 0
      %700 = vmatpush.bf16.msra.mxu0 0
      %701 = vmatpush.bf16.msra.mxu0 0
      %702 = vmatpush.bf16.msra.mxu0 0
      %703 = vmatpush.bf16.msra.mxu0 0
      %704 = vmatpush.bf16.msra.mxu0 0
      %705 = vmatpush.bf16.msra.mxu0 %v696
      %706 = vmatmul.bf16.gmra.mxu0 %v693
      %v707 = vpop.f32.mrf.mxu0
      %v708 = vadd.f32 %v689, %v707
      %v709 = vpop.f32.mrf.mxu0
      %710 = vdwg.mxu0
      %711 = vrot.lane.b32.xlu0 %v544, 112
      %v712 = vpop.permute.xlu0 %711
      %713 = vrot.lane.b32.xlu0 %v544, 80
      %v714 = vpop.permute.xlu0 %713
      %v716 = vsel %vm548, %v712, 0
      %v719 = vsel %vm548, %v714, 0
      %721 = vmatpush.bf16.xpose.msra.mxu0 0
      %722 = vmatpush.bf16.xpose.msra.mxu0 0
      %723 = vmatpush.bf16.xpose.msra.mxu0 0
      %724 = vmatpush.bf16.xpose.msra.mxu0 0
      %725 = vmatpush.bf16.xpose.msra.mxu0 0
      %726 = vmatpush.bf16.xpose.msra.mxu0 0
      %727 = vmatpush.bf16.xpose.msra.mxu0 0
      %728 = vmatpush.bf16.xpose.msra.mxu0 %v719
      %729 = vmatmul.bf16.gmra.mxu0 %v716
      %v730 = vpop.f32.mrf.mxu0
      %v731 = vadd.f32 0.0, %v730
      %v732 = vpop.f32.mrf.mxu0
      %733 = vdwg.mxu0
      %v734 = vmul.f32 %v731, 0.35355338
      %v735 = vadd.f32 %v734, %v570
      %v736 = vsel %vm548, %v735, -inf
      %737 = vmax.xlane.f32.xlu0 %v736
      %v738 = vpop.xlane.xlu0 %737
      %v739 = vsub.f32 %v735, %v738
      %v740 = vmul.f32 %v739, 1.442695
      %v741 = vpow.pop %v740
      %v742 = vsel %vm548, %v741, 0.0
      %743 = vadd.xlane.f32.xlu0 %v742
      %v744 = vpop.xlane.xlu0 %743
      %v745 = vrcp.pop %v744
      %v746 = vmul.f32 %v741, %v745
      %v747 = vadd.f32 %v647, %v746
      %v748 = vpack.c.bf16 %v746, %v746
      %749 = vrot.lane.b32.xlu0 %v544, 48
      %v750 = vpop.permute.xlu0 %749
      %v752 = vsel %vm548, %v748, 0
      %v755 = vsel %vm591, %v750, 0
      %757 = vmatpush.bf16.msra.mxu0 0
      %758 = vmatpush.bf16.msra.mxu0 0
      %759 = vmatpush.bf16.msra.mxu0 0
      %760 = vmatpush.bf16.msra.mxu0 0
      %761 = vmatpush.bf16.msra.mxu0 0
      %762 = vmatpush.bf16.msra.mxu0 0
      %763 = vmatpush.bf16.msra.mxu0 0
      %764 = vmatpush.bf16.msra.mxu0 %v755
      %765 = vmatmul.bf16.gmra.mxu0 %v752
      %v766 = vpop.f32.mrf.mxu0
      %v767 = vadd.f32 0.0, %v766
      %v768 = vpop.f32.mrf.mxu0
      %769 = vdwg.mxu0
      %v770 = vld [vmem:[%s4 + $0x10] sm:$0xff]
      %v771 = vpack.c.bf16 %v767, %v767
      %v772 = vpack.c.bf16 %v770, %v770
      %v774 = vsel %vm548, %v771, 0
      %v777 = vsel %vm591, %v772, 0
      %779 = vmatpush.bf16.msra.mxu0 0
      %780 = vmatpush.bf16.msra.mxu0 0
      %781 = vmatpush.bf16.msra.mxu0 0
      %782 = vmatpush.bf16.msra.mxu0 0
      %783 = vmatpush.bf16.msra.mxu0 0
      %784 = vmatpush.bf16.msra.mxu0 0
      %785 = vmatpush.bf16.msra.mxu0 0
      %786 = vmatpush.bf16.msra.mxu0 %v777
      %787 = vmatmul.bf16.gmra.mxu0 %v774
      %v788 = vpop.f32.mrf.mxu0
      %v789 = vadd.f32 0.0, %v788
      %v790 = vpop.f32.mrf.mxu0
      %791 = vdwg.mxu0
      %v792 = vadd.f32 %v708, %v789
      %793 = vrot.lane.b32.xlu0 %v544, 104
      %v794 = vpop.permute.xlu0 %793
      %795 = vrot.lane.b32.xlu0 %v544, 72
      %v796 = vpop.permute.xlu0 %795
      %v798 = vsel %vm548, %v794, 0
      %v801 = vsel %vm548, %v796, 0
      %803 = vmatpush.bf16.xpose.msra.mxu0 0
      %804 = vmatpush.bf16.xpose.msra.mxu0 0
      %805 = vmatpush.bf16.xpose.msra.mxu0 0
      %806 = vmatpush.bf16.xpose.msra.mxu0 0
      %807 = vmatpush.bf16.xpose.msra.mxu0 0
      %808 = vmatpush.bf16.xpose.msra.mxu0 0
      %809 = vmatpush.bf16.xpose.msra.mxu0 0
      %810 = vmatpush.bf16.xpose.msra.mxu0 %v801
      %811 = vmatmul.bf16.gmra.mxu0 %v798
      %v812 = vpop.f32.mrf.mxu0
      %v813 = vadd.f32 0.0, %v812
      %v814 = vpop.f32.mrf.mxu0
      %815 = vdwg.mxu0
      %v816 = vmul.f32 %v813, 0.35355338
      %v817 = vadd.f32 %v816, %v570
      %v818 = vsel %vm548, %v817, -inf
      %819 = vmax.xlane.f32.xlu0 %v818
      %v820 = vpop.xlane.xlu0 %819
      %v821 = vsub.f32 %v817, %v820
      %v822 = vmul.f32 %v821, 1.442695
      %v823 = vpow.pop %v822
      %v824 = vsel %vm548, %v823, 0.0
      %825 = vadd.xlane.f32.xlu0 %v824
      %v826 = vpop.xlane.xlu0 %825
      %v827 = vrcp.pop %v826
      %v828 = vmul.f32 %v823, %v827
      %v829 = vadd.f32 %v747, %v828
      %v830 = vpack.c.bf16 %v828, %v828
      %831 = vrot.lane.b32.xlu0 %v544, 40
      %v832 = vpop.permute.xlu0 %831
      %v834 = vsel %vm548, %v830, 0
      %v837 = vsel %vm591, %v832, 0
      %839 = vmatpush.bf16.msra.mxu0 0
      %840 = vmatpush.bf16.msra.mxu0 0
      %841 = vmatpush.bf16.msra.mxu0 0
      %842 = vmatpush.bf16.msra.mxu0 0
      %843 = vmatpush.bf16.msra.mxu0 0
      %844 = vmatpush.bf16.msra.mxu0 0
      %845 = vmatpush.bf16.msra.mxu0 0
      %846 = vmatpush.bf16.msra.mxu0 %v837
      %847 = vmatmul.bf16.gmra.mxu0 %v834
      %v848 = vpop.f32.mrf.mxu0
      %v849 = vadd.f32 0.0, %v848
      %v850 = vpop.f32.mrf.mxu0
      %851 = vdwg.mxu0
      %v852 = vld [vmem:[%s4 + $0x18] sm:$0xff]
      %v853 = vpack.c.bf16 %v849, %v849
      %v854 = vpack.c.bf16 %v852, %v852
      %v856 = vsel %vm548, %v853, 0
      %v859 = vsel %vm591, %v854, 0
      %861 = vmatpush.bf16.msra.mxu0 0
      %862 = vmatpush.bf16.msra.mxu0 0
      %863 = vmatpush.bf16.msra.mxu0 0
      %864 = vmatpush.bf16.msra.mxu0 0
      %865 = vmatpush.bf16.msra.mxu0 0
      %866 = vmatpush.bf16.msra.mxu0 0
      %867 = vmatpush.bf16.msra.mxu0 0
      %868 = vmatpush.bf16.msra.mxu0 %v859
      %869 = vmatmul.bf16.gmra.mxu0 %v856
      %v870 = vpop.f32.mrf.mxu0
      %v871 = vadd.f32 0.0, %v870
      %v872 = vpop.f32.mrf.mxu0
      %873 = vdwg.mxu0
      %v874 = vadd.f32 %v792, %v871
      %v875 = vmul.f32 %v829, 0.25
      %vm876 = vcmask 57344
      %877 = vst.msk [vmem:[%s512] sm:$0x1] %vm876, %v875
      %v878 = vld [vmem:[%s5] sm:$0x1]
      %v880 = vperm.slane %v878, 0
      %v882 = vadd.f32 %v874, %v880
      %v883 = vadd.f32 %v882, %v514
      %v884 = vld [vmem:[%s6] sm:$0x1]
      %v885 = vld [vmem:[%s7] sm:$0x1]
      %v886 = vsel %vm527, %v883, 0.0
      %887 = vadd.xlane.f32.xlu0 %v886
      %v888 = vpop.xlane.xlu0 %887
      %v889 = vrcp.pop 32.0
      %v890 = vmul.f32 32.0, %v889
      %v891 = vsub.f32 1.0, %v890
      %v892 = vmul.f32 %v889, %v891
      %v893 = vadd.f32 %v889, %v892
      %vm894 = vweird.f32 %v889
      %v895 = vsel %vm894, %v889, %v893
      %v896 = vmul.f32 %v888, %v895
      %v897 = vsub.f32 %v883, %v896
      %v898 = vmul.f32 %v897, %v897
      %v899 = vsel %vm527, %v898, 0.0
      %900 = vadd.xlane.f32.xlu0 %v899
      %v901 = vpop.xlane.xlu0 %900
      %v902 = vmul.f32 %v901, %v895
      %v903 = vadd.f32 %v902, 1e-12
      %v904 = vrsqrt.pop %v903
      %v905 = vmul.f32 %v904, %v903
      %v906 = vmul.f32 %v905, %v904
      %v907 = vmul.f32 0.5, %v906
      %v908 = vsub.f32 1.5, %v907
      %v909 = vmul.f32 %v904, %v908
      %vm910 = vweird.f32 %v903
      %vm911 = vweird.f32 %v904
      %vm912 = vmor %vm910, %vm911
      %v913 = vsel %vm912, %v904, %v909
      %v914 = vmul.f32 %v897, %v913
      %v916 = vperm.slane %v884, 0
      %v918 = vmul.f32 %v914, %v916
      %v920 = vperm.slane %v885, 0
      %v922 = vadd.f32 %v918, %v920
      %v923 = vld [vmem:[%s8] sm:$0xff]
      %v924 = vld [vmem:[%s8 + $0x8] sm:$0xff]
      %v925 = vld [vmem:[%s8 + $0x10] sm:$0xff]
      %v926 = vld [vmem:[%s8 + $0x18] sm:$0xff]
      %v927 = vpack.c.bf16 %v922, %v922
      %v928 = vpack.c.bf16 %v924, %v923
      %v929 = vpack.c.bf16 %v926, %v925
      %v930 = vld [vmem:[%s9] sm:$0x1]
      %v932 = vperm.slane %v930, 0
      %v935 = vsel %vm527, %v927, 0
      %937 = vmatpush.bf16.msra.mxu0 0
      %938 = vmatpush.bf16.msra.mxu0 0
      %939 = vmatpush.bf16.msra.mxu0 0
      %940 = vmatpush.bf16.msra.mxu0 0
      %941 = vmatpush.bf16.msra.mxu0 0
      %942 = vmatpush.bf16.msra.mxu0 0
      %943 = vmatpush.bf16.msra.mxu0 %v929
      %944 = vmatpush.bf16.msra.mxu0 %v928
      %945 = vmatmul.bf16.gmra.mxu0 %v935
      %v946 = vpop.f32.mrf.mxu0
      %v947 = vadd.f32 %v932, %v946
      %v948 = vpop.f32.mrf.mxu0
      %949 = vdwg.mxu0
      %v950 = vmul.f32 %v947, %v947
      %v951 = vmul.f32 %v947, %v950
      %v952 = vmul.f32 %v951, 0.044715
      %v953 = vadd.f32 %v947, %v952
      %v954 = vmul.f32 %v953, 0.7978846
      %v955 = vtanh.pop %v954
      %v956 = vadd.f32 %v955, 1.0
      %v957 = vmul.f32 %v956, 0.5
      %v958 = vmul.f32 %v947, %v957
      %v959 = vld [vmem:[%s10] sm:$0xff]
      %v960 = vld [vmem:[%s10 + $0x8] sm:$0xff]
      %v961 = vld [vmem:[%s10 + $0x10] sm:$0xff]
      %v962 = vld [vmem:[%s10 + $0x18] sm:$0xff]
      %v963 = vld [vmem:[%s10 + $0x20] sm:$0xff]
      %v964 = vld [vmem:[%s10 + $0x28] sm:$0xff]
      %v965 = vld [vmem:[%s10 + $0x30] sm:$0xff]
      %v966 = vld [vmem:[%s10 + $0x38] sm:$0xff]
      %v967 = vpack.c.bf16 %v958, %v958
      %v968 = vpack.c.bf16 %v960, %v959
      %v969 = vpack.c.bf16 %v962, %v961
      %v970 = vpack.c.bf16 %v964, %v963
      %v971 = vpack.c.bf16 %v966, %v965
      %v972 = vld [vmem:[%s11] sm:$0x1]
      %v974 = vperm.slane %v972, 0
      %vm976 = vcmask 523264
      %v978 = vsel %vm976, %v967, 0
      %980 = vmatpush.bf16.msra.mxu0 0
      %981 = vmatpush.bf16.msra.mxu0 0
      %982 = vmatpush.bf16.msra.mxu0 0
      %983 = vmatpush.bf16.msra.mxu0 0
      %984 = vmatpush.bf16.msra.mxu0 %v971
      %985 = vmatpush.bf16.msra.mxu0 %v970
      %986 = vmatpush.bf16.msra.mxu0 %v969
      %987 = vmatpush.bf16.msra.mxu0 %v968
      %988 = vmatmul.bf16.gmra.mxu0 %v978
      %v989 = vpop.f32.mrf.mxu0
      %v990 = vadd.f32 %v974, %v989
      %v991 = vpop.f32.mrf.mxu0
      %992 = vdwg.mxu0
      %v993 = vadd.f32 %v990, %v922
      %v994 = vld [vmem:[%s12] sm:$0x1]
      %v995 = vld [vmem:[%s13] sm:$0x1]
      %v996 = vsel %vm527, %v993, 0.0
      %997 = vadd.xlane.f32.xlu0 %v996
      %v998 = vpop.xlane.xlu0 %997
      %v999 = vmul.f32 %v998, %v895
      %v1000 = vsub.f32 %v993, %v999
      %v1001 = vmul.f32 %v1000, %v1000
      %v1002 = vsel %vm527, %v1001, 0.0
      %1003 = vadd.xlane.f32.xlu0 %v1002
      %v1004 = vpop.xlane.xlu0 %1003
      %v1005 = vmul.f32 %v1004, %v895
      %v1006 = vadd.f32 %v1005, 1e-12
      %v1007 = vrsqrt.pop %v1006
      %v1008 = vmul.f32 %v1007, %v1006
      %v1009 = vmul.f32 %v1008, %v1007
      %v1010 = vmul.f32 0.5, %v1009
      %v1011 = vsub.f32 1.5, %v1010
      %v1012 = vmul.f32 %v1007, %v1011
      %vm1013 = vweird.f32 %v1006
      %vm1014 = vweird.f32 %v1007
      %vm1015 = vmor %vm1013, %vm1014
      %v1016 = vsel %vm1015, %v1007, %v1012
      %v1017 = vmul.f32 %v1000, %v1016
      %v1019 = vperm.slane %v994, 0
      %v1021 = vmul.f32 %v1017, %v1019
      %v1023 = vperm.slane %v995, 0
      %v1025 = vadd.f32 %v1021, %v1023
      %1026 = vst.msk [vmem:[%s509] sm:$0xff] %vm527, %v1025
      %p1027 = scmp.lt.s32.totalorder %s27, 1
      %s1028 = scalar_select %p1027, %s27, 1
      %s1029 = smul.addr %s1028, 8
      %s1030 = scalar_lea.vmem %s14, %s1029
      %p1031 = scmp.lt.s32.totalorder %s27, 1
      %s1032 = scalar_select %p1031, %s27, 1
      %s1033 = scalar_lea.vmem %s15, %s1032
      // Predicated region
      $region77: #{forward.6} parent=75 // pred_check
        %p1034 = pneg %p349
      $region78: #{forward.6} parent=75 // pred_check_branch
        %1036 = sbr.rel (%p1034) target = $region80
      $region79: #{forward.6} parent=75 // pred_region
        _
      $region80: #{forward.6} parent=75 // pred_fallthru
        _
      // Predicated region
      $region81: #{forward.6} parent=75 // pred_check
        %p1037 = pneg %p375
      $region82: #{forward.6} parent=75 // pred_check_branch
        %1039 = sbr.rel (%p1037) target = $region84
      $region83: #{forward.6} parent=75 // pred_region
        _
      $region84: #{forward.6} parent=75 // pred_fallthru
        _
    $region76: #{forward.6} parent=5 // pred_fallthru
      _
    %p1040 = scmp.le.s32.totalorder 2, %s22
    // Predicated region
    $region85: #{forward.6} parent=5 // pred_check
      %p1041 = pneg %p1040
    $region86: #{forward.6} parent=5 // pred_check_branch
      %1043 = sbr.rel (%p1041) target = $region88
    $region87: #{forward.6} parent=5 // pred_region
      %s1044 = ssub.s32 %s22, 2
      // Predicated region
      $region89: #{forward.6} parent=87 // pred_check
        %p1045 = pneg %p355
      $region90: #{forward.6} parent=87 // pred_check_branch
        %1047 = sbr.rel (%p1045) target = $region92
      $region91: #{forward.6} parent=87 // pred_region
        %p1048 = scmp.lt.s32.totalorder %s28, 1
        %s1049 = scalar_select %p1048, %s28, 1
        %s1050 = smul.addr %s1049, 8
        %s1051 = scalar_lea.vmem %s14, %s1050
      $region92: #{forward.6} parent=87 // pred_fallthru
        _
      // Predicated region
      $region93: #{forward.6} parent=87 // pred_check
        %p1052 = pneg %p381
      $region94: #{forward.6} parent=87 // pred_check_branch
        %1054 = sbr.rel (%p1052) target = $region96
      $region95: #{forward.6} parent=87 // pred_region
        %p1055 = scmp.lt.s32.totalorder %s28, 1
        %s1056 = scalar_select %p1055, %s28, 1
        %s1057 = scalar_lea.vmem %s15, %s1056
      $region96: #{forward.6} parent=87 // pred_fallthru
        _
    $region88: #{forward.6} parent=5 // pred_fallthru
      _
  $region6: #{forward.6} parent=0 // loop_footer
    %s26 = sadd.s32 1, %s22
  $region7: #{forward.6} parent=0 // loop_footer_branch
    %21 = sbr.rel target = $region3
  $region8: #{forward.6} parent=0 // loop_exit
    _

</llo_original>
